<compile_context>
chip_gen: v7x
topology: tpu7x:2x2x1
jax: 0.10.0
libtpu: 0.0.40
codegen_flags: <defaults>
</compile_context>

<pallas_src>
import math
import jax
import jax.numpy as jnp
from jax.experimental import pallas as pl
from jax.experimental.pallas import tpu as pltpu


def _fold_bn(gamma, beta, mean, var, eps=1e-5):
    scale = (gamma / jnp.sqrt(var + eps)).astype(jnp.float32)
    bias = (beta - mean * scale).astype(jnp.float32)
    return scale, bias


def _pick_row_tile(H, W):
    """Output-row tile: multiple of 8 that divides H, aiming for ~128 matmul rows."""
    target = max(8, -(-128 // max(W, 1)))      # ceil(128 / W), at least 8
    t = target
    while t < H:
        if H % t == 0 and t % 8 == 0:
            return t
        t += 8
    return H


# ---------------------------------------------------------------------------
# Fused bottleneck kernel: conv1+bn1+relu -> conv2(3x3)+bn2+relu
#                          -> conv3+bn3 + residual + relu, all in VMEM.
# ---------------------------------------------------------------------------
def _make_bottleneck_kernel(th, H, W, Cin, planes, Cout, im2col, lane_dense):
    TH = th + 2            # y1 rows needed per tile (1-row halo on each side)
    ROWS = th * W          # output pixels per tile

    def kernel(x_mid_ref, x_top_ref, x_bot_ref,
               w1_ref, w2_ref, w3_ref,
               s1_ref, b1_ref, s2_ref, b2_ref, s3_ref, b3_ref,
               o_ref, y1p_ref):
        i = pl.program_id(1)

        # ---- gather the th+2 input rows this tile needs (3x3 halo) ---------
        x_mid = x_mid_ref[0]                                   # [th, W, Cin] f32
        x_win = jnp.concatenate(
            [x_top_ref[0], x_mid, x_bot_ref[0]], axis=0)       # [TH, W, Cin]

        # ---- conv1 (1x1) + bn1 + relu: one bf16 MXU matmul, f32 epilogue ---
        a1 = jnp.dot(x_win.reshape(TH * W, Cin).astype(jnp.bfloat16),
                     w1_ref[...], preferred_element_type=jnp.float32)
        y1 = jnp.maximum(a1 * s1_ref[...] + b1_ref[...], 0.0)
        y1 = y1.reshape(TH, W, planes)

        # conv2's zero padding applies to y1 (post BN/ReLU): zero the halo
        # rows that fall outside the image.
        row = jax.lax.broadcasted_iota(jnp.int32, (TH, 1, 1), 0) + i * th - 1
        y1 = jnp.where((row >= 0) & (row < H), y1, 0.0)

        # Stage y1 into a VMEM scratch with 1-pixel zero padding along W.
        y1p_ref[...] = jnp.zeros((TH, W + 2, planes), jnp.float32)
        y1p_ref[:, 1:W + 1, :] = y1

        # ---- conv2 (3x3, pad=1) + bn2 + relu --------------------------------
        if im2col:
            # Single K = 9*planes matmul on im2col patches.
            cols = [y1p_ref[kh:kh + th, kw:kw + W, :].reshape(ROWS, planes)
                    for kh in range(3) for kw in range(3)]
            patches = jnp.concatenate(cols, axis=-1).astype(jnp.bfloat16)
            a2 = jnp.dot(patches, w2_ref[...].reshape(9 * planes, planes),
                         preferred_element_type=jnp.float32)
        else:
            # Layout-conservative fallback: 9 accumulated taps.
            a2 = jnp.zeros((ROWS, planes), jnp.float32)
            for kh in range(3):
                for kw in range(3):
                    tap = y1p_ref[kh:kh + th, kw:kw + W, :].reshape(ROWS, planes)
                    a2 = a2 + jnp.dot(tap.astype(jnp.bfloat16),
                                      w2_ref[kh * 3 + kw],
                                      preferred_element_type=jnp.float32)
        y2 = jnp.maximum(a2 * s2_ref[...] + b2_ref[...], 0.0)

        # ---- conv3 (1x1) + bn3 + residual (x already in VMEM) + relu --------
        a3 = jnp.dot(y2.astype(jnp.bfloat16), w3_ref[...],
                     preferred_element_type=jnp.float32)
        y3 = a3 * s3_ref[...] + b3_ref[...] + x_mid.reshape(ROWS, Cout)
        y3 = jnp.maximum(y3, 0.0)

        if lane_dense:
            # Lane-dense store: [th, W*Cout] slab -> unmasked wide stores.
            o_ref[...] = y3.reshape(1, th, W * Cout).astype(o_ref.dtype)
        else:
            o_ref[...] = y3.reshape(1, th, W, Cout).astype(o_ref.dtype)

    return kernel


def _bottleneck_pallas(x_nhwc, w1, w2, w3, s1, b1, s2, b2, s3, b3,
                       *, planes, im2col, lane_dense):
    N, H, W, Cin = x_nhwc.shape
    Cout = w3.shape[1]
    th = _pick_row_tile(H, W)
    grid = (N, H // th)

    kern = _make_bottleneck_kernel(th, H, W, Cin, planes, Cout,
                                   im2col, lane_dense)

    # x is passed three times: the interior row tile plus its two halo rows.
    x_specs = [
        pl.BlockSpec((1, th, W, Cin), lambda n, i: (n, i, 0, 0)),
        pl.BlockSpec((1, 1, W, Cin),
                     lambda n, i: (n, jnp.maximum(i * th - 1, 0), 0, 0)),
        pl.BlockSpec((1, 1, W, Cin),
                     lambda n, i: (n, jnp.minimum((i + 1) * th, H - 1), 0, 0)),
    ]
    w_specs = [
        pl.BlockSpec((Cin, planes), lambda n, i: (0, 0)),
        pl.BlockSpec((9, planes, planes), lambda n, i: (0, 0, 0)),
        pl.BlockSpec((planes, Cout), lambda n, i: (0, 0)),
    ]
    sb_specs = ([pl.BlockSpec((1, planes), lambda n, i: (0, 0))] * 4
                + [pl.BlockSpec((1, Cout), lambda n, i: (0, 0))] * 2)

    if lane_dense:
        out_shape = jax.ShapeDtypeStruct((N, H, W * Cout), x_nhwc.dtype)
        out_specs = pl.BlockSpec((1, th, W * Cout), lambda n, i: (n, i, 0))
    else:
        out_shape = jax.ShapeDtypeStruct((N, H, W, Cout), x_nhwc.dtype)
        out_specs = pl.BlockSpec((1, th, W, Cout), lambda n, i: (n, i, 0, 0))

    flops = 2 * N * H * W * planes * (Cin + 9 * planes + Cout)
    bytes_acc = (4 * N * H * W * (Cin + Cout)
                 + 2 * planes * (Cin + 9 * planes + Cout))

    out = pl.pallas_call(
        kern,
        out_shape=out_shape,
        grid=grid,
        in_specs=x_specs + w_specs + sb_specs,
        out_specs=out_specs,
        scratch_shapes=[pltpu.VMEM((th + 2, W + 2, planes), jnp.float32)],
        compiler_params=pltpu.CompilerParams(
            dimension_semantics=("parallel", "parallel"),
            vmem_limit_bytes=32 * 1024 * 1024),
        cost_estimate=pl.CostEstimate(flops=flops, transcendentals=0,
                                      bytes_accessed=bytes_acc),
    )(x_nhwc, x_nhwc, x_nhwc, w1, w2, w3, s1, b1, s2, b2, s3, b3)

    return out.reshape(N, H, W, Cout)


# ---------------------------------------------------------------------------
# Bottleneck forward (NHWC core + NCHW wrapper matching the PyTorch module)
# ---------------------------------------------------------------------------
def bottleneck_forward_nhwc(x_nhwc, params, stride=1, eps=1e-5):
    # TODO(synk): stride > 1 and the downsample branch are not implemented;
    # this module instance uses downsample=None (identity residual), which
    # requires stride == 1 and Cin == planes * expansion.
    assert stride == 1, "identity-residual bottleneck requires stride == 1"
    N, H, W, Cin = x_nhwc.shape
    planes = params["conv1_w"].shape[0]
    Cout = params["conv3_w"].shape[0]
    assert Cin == Cout, "identity residual requires matching channel counts"

    # TODO(synk): training-mode BatchNorm (batch statistics) not implemented;
    # BN is folded into per-channel scale/bias from the running statistics.
    s1, b1 = _fold_bn(params["bn1_gamma"], params["bn1_beta"],
                      params["bn1_mean"], params["bn1_var"], eps)
    s2, b2 = _fold_bn(params["bn2_gamma"], params["bn2_beta"],
                      params["bn2_mean"], params["bn2_var"], eps)
    s3, b3 = _fold_bn(params["bn3_gamma"], params["bn3_beta"],
                      params["bn3_mean"], params["bn3_var"], eps)

    # Weights: cast to bf16 once, laid out for channel matmuls / im2col.
    w1 = jnp.transpose(params["conv1_w"][:, :, 0, 0]).astype(jnp.bfloat16)
    w2 = jnp.transpose(params["conv2_w"], (2, 3, 1, 0)) \
            .reshape(9, planes, planes).astype(jnp.bfloat16)
    w3 = jnp.transpose(params["conv3_w"][:, :, 0, 0]).astype(jnp.bfloat16)

    args = (x_nhwc, w1, w2, w3,
            s1.reshape(1, planes), b1.reshape(1, planes),
            s2.reshape(1, planes), b2.reshape(1, planes),
            s3.reshape(1, Cout), b3.reshape(1, Cout))

    try:
        # Preferred variant: single im2col matmul for the 3x3 conv and
        # lane-dense [N, H, W*Cout] output stores.
        return _bottleneck_pallas(*args, planes=planes,
                                  im2col=True, lane_dense=True)
    except Exception:
        # Layout-conservative fallback for Mosaic builds that cannot lower the
        # minor-dim concatenate / repack used by the preferred variant.
        return _bottleneck_pallas(*args, planes=planes,
                                  im2col=False, lane_dense=False)


def bottleneck_forward(x_nchw, params, stride=1, eps=1e-5):
    x_nhwc = jnp.transpose(x_nchw, (0, 2, 3, 1))
    out = bottleneck_forward_nhwc(x_nhwc, params, stride=stride, eps=eps)
    return jnp.transpose(out, (0, 3, 1, 2))


# ---------------------------------------------------------------------------
# Pure-JAX reference (inference-mode BN), for correctness checking.
# ---------------------------------------------------------------------------
def _ref_bottleneck(x, p, stride=1, eps=1e-5, matmul_dtype=jnp.float32):
    def conv(v, w, s, pad):
        return jax.lax.conv_general_dilated(
            v.astype(matmul_dtype), w.astype(matmul_dtype),
            window_strides=(s, s), padding=[(pad, pad), (pad, pad)],
            dimension_numbers=("NCHW", "OIHW", "NCHW"),
            preferred_element_type=jnp.float32)

    def bn(v, pre):
        g, b = p[pre + "_gamma"], p[pre + "_beta"]
        m, var = p[pre + "_mean"], p[pre + "_var"]
        inv = g / jnp.sqrt(var + eps)
        return v * inv[None, :, None, None] + (b - m * inv)[None, :, None, None]

    out = jax.nn.relu(bn(conv(x, p["conv1_w"], 1, 0), "bn1"))
    out = jax.nn.relu(bn(conv(out, p["conv2_w"], stride, 1), "bn2"))
    out = bn(conv(out, p["conv3_w"], 1, 0), "bn3")
    return jax.nn.relu(out + x)          # downsample is None -> identity


if __name__ == "__main__":
    key = jax.random.PRNGKey(0)
    ks = jax.random.split(key, 16)

    # Self-consistent Bottleneck config: inplanes = planes * expansion,
    # stride = 1, downsample = None (identity residual).
    N, planes, expansion = 2, 8, 4
    inplanes = planes * expansion          # 32
    H = W = 16
    stride = 1

    x = jax.random.normal(ks[0], (N, inplanes, H, W), dtype=jnp.float32)

    def w_init(k, shape):
        fan_in = shape[1] * shape[2] * shape[3]
        return jax.random.normal(k, shape, dtype=jnp.float32) / math.sqrt(fan_in)

    params = {
        "conv1_w": w_init(ks[1], (planes, inplanes, 1, 1)),
        "conv2_w": w_init(ks[2], (planes, planes, 3, 3)),
        "conv3_w": w_init(ks[3], (planes * expansion, planes, 1, 1)),
    }
    for i, (pre, c) in enumerate(
            [("bn1", planes), ("bn2", planes), ("bn3", planes * expansion)]):
        base = 4 + 4 * i
        params[pre + "_gamma"] = jax.random.uniform(ks[base + 0], (c,), jnp.float32, 0.5, 1.5)
        params[pre + "_beta"] = 0.1 * jax.random.normal(ks[base + 1], (c,), jnp.float32)
        params[pre + "_mean"] = 0.1 * jax.random.normal(ks[base + 2], (c,), jnp.float32)
        params[pre + "_var"] = jax.random.uniform(ks[base + 3], (c,), jnp.float32, 0.5, 1.5)

    out = jax.block_until_ready(bottleneck_forward(x, params, stride=stride))
    assert out.shape == (N, planes * expansion, H, W)

    # Quantization-matched reference (bf16 matmul inputs, f32 accumulation):
    # checks kernel structure independently of the intentional bf16 MXU cast.
    ref_bf16 = _ref_bottleneck(x, params, stride=stride, matmul_dtype=jnp.bfloat16)
    err_bf16 = float(jnp.max(jnp.abs(out - ref_bf16)))
    assert jnp.allclose(out, ref_bf16, atol=2e-2, rtol=2e-2), err_bf16

    # Loose sanity bound against the full-f32 reference (bf16 MXU rounding).
    ref_f32 = _ref_bottleneck(x, params, stride=stride, matmul_dtype=jnp.float32)
    err_f32 = float(jnp.max(jnp.abs(out - ref_f32)))
    assert jnp.allclose(out, ref_f32, atol=2.5e-1, rtol=1e-1), err_f32

    print("KERNEL_OK")
</pallas_src>

<mosaic_0001>
module attributes {stable_mosaic.version = 11 : i64} {
  func.func @kernel(%arg0: i32, %arg1: i32, %arg2: memref<1x8x16x32xf32, #tpu.memory_space<vmem>>, %arg3: memref<1x1x16x32xf32, #tpu.memory_space<vmem>>, %arg4: memref<1x1x16x32xf32, #tpu.memory_space<vmem>>, %arg5: memref<32x8xbf16, #tpu.memory_space<vmem>>, %arg6: memref<9x8x8xbf16, #tpu.memory_space<vmem>>, %arg7: memref<8x32xbf16, #tpu.memory_space<vmem>>, %arg8: memref<1x8xf32, #tpu.memory_space<vmem>>, %arg9: memref<1x8xf32, #tpu.memory_space<vmem>>, %arg10: memref<1x8xf32, #tpu.memory_space<vmem>>, %arg11: memref<1x8xf32, #tpu.memory_space<vmem>>, %arg12: memref<1x32xf32, #tpu.memory_space<vmem>>, %arg13: memref<1x32xf32, #tpu.memory_space<vmem>>, %arg14: memref<1x8x512xf32, #tpu.memory_space<vmem>>, %arg15: memref<10x18x8xf32, #tpu.memory_space<vmem>>) attributes {dimension_semantics = [#tpu.dimension_semantics<parallel>, #tpu.dimension_semantics<parallel>], iteration_bounds = array<i64: 2, 2>, scalar_prefetch = 0 : i64, scratch_operands = 1 : i64, tpu.core_type = #tpu.core_type<tc>, window_params = [{transform_indices = @transform_0, window_bounds = array<i64: 1, 8, 16, 32>}, {transform_indices = @transform_1, window_bounds = array<i64: 1, 1, 16, 32>}, {transform_indices = @transform_2, window_bounds = array<i64: 1, 1, 16, 32>}, {pipeline_mode = #tpu.pipeline_mode<synchronous>, transform_indices = @transform_3, window_bounds = array<i64: 32, 8>}, {pipeline_mode = #tpu.pipeline_mode<synchronous>, transform_indices = @transform_4, window_bounds = array<i64: 9, 8, 8>}, {pipeline_mode = #tpu.pipeline_mode<synchronous>, transform_indices = @transform_5, window_bounds = array<i64: 8, 32>}, {pipeline_mode = #tpu.pipeline_mode<synchronous>, transform_indices = @transform_6, window_bounds = array<i64: 1, 8>}, {pipeline_mode = #tpu.pipeline_mode<synchronous>, transform_indices = @transform_7, window_bounds = array<i64: 1, 8>}, {pipeline_mode = #tpu.pipeline_mode<synchronous>, transform_indices = @transform_8, window_bounds = array<i64: 1, 8>}, {pipeline_mode = #tpu.pipeline_mode<synchronous>, transform_indices = @transform_9, window_bounds = array<i64: 1, 8>}, {pipeline_mode = #tpu.pipeline_mode<synchronous>, transform_indices = @transform_10, window_bounds = array<i64: 1, 32>}, {pipeline_mode = #tpu.pipeline_mode<synchronous>, transform_indices = @transform_11, window_bounds = array<i64: 1, 32>}, {transform_indices = @transform_12, window_bounds = array<i64: 1, 8, 512>}]} {
    %c0 = arith.constant 0 : index
    %c0_0 = arith.constant 0 : index
    %c0_1 = arith.constant 0 : index
    %c0_2 = arith.constant 0 : index
    %0 = vector.load %arg2[%c0, %c0_0, %c0_1, %c0_2] : memref<1x8x16x32xf32, #tpu.memory_space<vmem>>, vector<1x8x16x32xf32>
    %1 = vector.shape_cast %0 : vector<1x8x16x32xf32> to vector<8x16x32xf32>
    %c0_3 = arith.constant 0 : index
    %c0_4 = arith.constant 0 : index
    %c0_5 = arith.constant 0 : index
    %c0_6 = arith.constant 0 : index
    %2 = vector.load %arg3[%c0_3, %c0_4, %c0_5, %c0_6] : memref<1x1x16x32xf32, #tpu.memory_space<vmem>>, vector<1x1x16x32xf32>
    %3 = vector.shape_cast %2 : vector<1x1x16x32xf32> to vector<1x16x32xf32>
    %c0_7 = arith.constant 0 : index
    %c0_8 = arith.constant 0 : index
    %c0_9 = arith.constant 0 : index
    %c0_10 = arith.constant 0 : index
    %4 = vector.load %arg4[%c0_7, %c0_8, %c0_9, %c0_10] : memref<1x1x16x32xf32, #tpu.memory_space<vmem>>, vector<1x1x16x32xf32>
    %5 = vector.shape_cast %4 : vector<1x1x16x32xf32> to vector<1x16x32xf32>
    %6 = tpu.concatenate %3, %1, %5 in 0 : vector<1x16x32xf32>, vector<8x16x32xf32>, vector<1x16x32xf32> -> vector<10x16x32xf32>
    %7 = vector.shape_cast %6 : vector<10x16x32xf32> to vector<160x32xf32>
    %8 = arith.truncf %7 : vector<160x32xf32> to vector<160x32xbf16>
    %c0_11 = arith.constant 0 : index
    %c0_12 = arith.constant 0 : index
    %9 = vector.load %arg5[%c0_11, %c0_12] : memref<32x8xbf16, #tpu.memory_space<vmem>>, vector<32x8xbf16>
    %cst = arith.constant dense<0.000000e+00> : vector<160x8xf32>
    %10 = tpu.matmul %8, %9, %cst {dimension_numbers = #tpu.dot_dimension_numbers<[1], [0], [0], [1], [0, 0, 1, 1], [], []>} : vector<160x32xbf16>, vector<32x8xbf16>, vector<160x8xf32> -> vector<160x8xf32>
    %c0_13 = arith.constant 0 : index
    %c0_14 = arith.constant 0 : index
    %11 = vector.load %arg8[%c0_13, %c0_14] : memref<1x8xf32, #tpu.memory_space<vmem>>, vector<1x8xf32>
    %12 = vector.broadcast %11 : vector<1x8xf32> to vector<160x8xf32>
    %13 = arith.mulf %10, %12 : vector<160x8xf32>
    %c0_15 = arith.constant 0 : index
    %c0_16 = arith.constant 0 : index
    %14 = vector.load %arg9[%c0_15, %c0_16] : memref<1x8xf32, #tpu.memory_space<vmem>>, vector<1x8xf32>
    %15 = vector.broadcast %14 : vector<1x8xf32> to vector<160x8xf32>
    %16 = arith.addf %13, %15 : vector<160x8xf32>
    %cst_17 = arith.constant 0.000000e+00 : f32
    %17 = vector.broadcast %cst_17 : f32 to vector<160x8xf32>
    %18 = arith.maximumf %16, %17 : vector<160x8xf32>
    %19 = vector.shape_cast %18 : vector<160x8xf32> to vector<10x16x8xf32>
    %20 = tpu.iota {dimensions = array<i32: 0>} : vector<10x1x1xi32>
    %c8_i32 = arith.constant 8 : i32
    %21 = arith.muli %arg1, %c8_i32 : i32
    %22 = vector.broadcast %21 : i32 to vector<10x1x1xi32>
    %23 = arith.addi %20, %22 : vector<10x1x1xi32>
    %c1_i32 = arith.constant 1 : i32
    %24 = vector.broadcast %c1_i32 : i32 to vector<10x1x1xi32>
    %25 = arith.subi %23, %24 : vector<10x1x1xi32>
    %c0_i32 = arith.constant 0 : i32
    %26 = vector.broadcast %c0_i32 : i32 to vector<10x1x1xi32>
    %27 = arith.cmpi sge, %25, %26 : vector<10x1x1xi32>
    %c16_i32 = arith.constant 16 : i32
    %28 = vector.broadcast %c16_i32 : i32 to vector<10x1x1xi32>
    %29 = arith.cmpi slt, %25, %28 : vector<10x1x1xi32>
    %30 = arith.andi %27, %29 : vector<10x1x1xi1>
    %cst_18 = arith.constant 0.000000e+00 : f32
    %31 = vector.shape_cast %30 : vector<10x1x1xi1> to vector<10x1x1xi1>
    %32 = vector.broadcast %31 : vector<10x1x1xi1> to vector<10x16x8xi1>
    %33 = vector.broadcast %cst_18 : f32 to vector<10x16x8xf32>
    %34 = arith.select %32, %19, %33 : vector<10x16x8xi1>, vector<10x16x8xf32>
    %cst_19 = arith.constant 0.000000e+00 : f32
    %35 = vector.broadcast %cst_19 : f32 to vector<10x18x8xf32>
    %c0_20 = arith.constant 0 : index
    %c0_21 = arith.constant 0 : index
    %c0_22 = arith.constant 0 : index
    %36 = vector.load %arg15[%c0_20, %c0_21, %c0_22] : memref<10x18x8xf32, #tpu.memory_space<vmem>>, vector<10x18x8xf32>
    tpu.vector_store %arg15[%c0_20, %c0_21, %c0_22], %35 {strides = array<i32>} : memref<10x18x8xf32, #tpu.memory_space<vmem>>, vector<10x18x8xf32>,
    %c0_23 = arith.constant 0 : index
    %c1 = arith.constant 1 : index
    %c0_24 = arith.constant 0 : index
    %37 = vector.load %arg15[%c0_23, %c1, %c0_24] : memref<10x18x8xf32, #tpu.memory_space<vmem>>, vector<10x16x8xf32>
    tpu.vector_store %arg15[%c0_23, %c1, %c0_24], %34 {strides = array<i32>} : memref<10x18x8xf32, #tpu.memory_space<vmem>>, vector<10x16x8xf32>,
    %c0_25 = arith.constant 0 : index
    %c0_26 = arith.constant 0 : index
    %c0_27 = arith.constant 0 : index
    %38 = vector.load %arg15[%c0_25, %c0_26, %c0_27] : memref<10x18x8xf32, #tpu.memory_space<vmem>>, vector<8x16x8xf32>
    %39 = vector.shape_cast %38 : vector<8x16x8xf32> to vector<128x8xf32>
    %c0_28 = arith.constant 0 : index
    %c1_29 = arith.constant 1 : index
    %c0_30 = arith.constant 0 : index
    %40 = vector.load %arg15[%c0_28, %c1_29, %c0_30] : memref<10x18x8xf32, #tpu.memory_space<vmem>>, vector<8x16x8xf32>
    %41 = vector.shape_cast %40 : vector<8x16x8xf32> to vector<128x8xf32>
    %c0_31 = arith.constant 0 : index
    %c2 = arith.constant 2 : index
    %c0_32 = arith.constant 0 : index
    %42 = vector.load %arg15[%c0_31, %c2, %c0_32] : memref<10x18x8xf32, #tpu.memory_space<vmem>>, vector<8x16x8xf32>
    %43 = vector.shape_cast %42 : vector<8x16x8xf32> to vector<128x8xf32>
    %c1_33 = arith.constant 1 : index
    %c0_34 = arith.constant 0 : index
    %c0_35 = arith.constant 0 : index
    %44 = vector.load %arg15[%c1_33, %c0_34, %c0_35] : memref<10x18x8xf32, #tpu.memory_space<vmem>>, vector<8x16x8xf32>
    %45 = vector.shape_cast %44 : vector<8x16x8xf32> to vector<128x8xf32>
    %c1_36 = arith.constant 1 : index
    %c1_37 = arith.constant 1 : index
    %c0_38 = arith.constant 0 : index
    %46 = vector.load %arg15[%c1_36, %c1_37, %c0_38] : memref<10x18x8xf32, #tpu.memory_space<vmem>>, vector<8x16x8xf32>
    %47 = vector.shape_cast %46 : vector<8x16x8xf32> to vector<128x8xf32>
    %c1_39 = arith.constant 1 : index
    %c2_40 = arith.constant 2 : index
    %c0_41 = arith.constant 0 : index
    %48 = vector.load %arg15[%c1_39, %c2_40, %c0_41] : memref<10x18x8xf32, #tpu.memory_space<vmem>>, vector<8x16x8xf32>
    %49 = vector.shape_cast %48 : vector<8x16x8xf32> to vector<128x8xf32>
    %c2_42 = arith.constant 2 : index
    %c0_43 = arith.constant 0 : index
    %c0_44 = arith.constant 0 : index
    %50 = vector.load %arg15[%c2_42, %c0_43, %c0_44] : memref<10x18x8xf32, #tpu.memory_space<vmem>>, vector<8x16x8xf32>
    %51 = vector.shape_cast %50 : vector<8x16x8xf32> to vector<128x8xf32>
    %c2_45 = arith.constant 2 : index
    %c1_46 = arith.constant 1 : index
    %c0_47 = arith.constant 0 : index
    %52 = vector.load %arg15[%c2_45, %c1_46, %c0_47] : memref<10x18x8xf32, #tpu.memory_space<vmem>>, vector<8x16x8xf32>
    %53 = vector.shape_cast %52 : vector<8x16x8xf32> to vector<128x8xf32>
    %c2_48 = arith.constant 2 : index
    %c2_49 = arith.constant 2 : index
    %c0_50 = arith.constant 0 : index
    %54 = vector.load %arg15[%c2_48, %c2_49, %c0_50] : memref<10x18x8xf32, #tpu.memory_space<vmem>>, vector<8x16x8xf32>
    %55 = vector.shape_cast %54 : vector<8x16x8xf32> to vector<128x8xf32>
    %56 = tpu.concatenate %39, %41, %43, %45, %47, %49, %51, %53, %55 in 1 : vector<128x8xf32>, vector<128x8xf32>, vector<128x8xf32>, vector<128x8xf32>, vector<128x8xf32>, vector<128x8xf32>, vector<128x8xf32>, vector<128x8xf32>, vector<128x8xf32> -> vector<128x72xf32>
    %57 = arith.truncf %56 : vector<128x72xf32> to vector<128x72xbf16>
    %c0_51 = arith.constant 0 : index
    %c0_52 = arith.constant 0 : index
    %c0_53 = arith.constant 0 : index
    %58 = vector.load %arg6[%c0_51, %c0_52, %c0_53] : memref<9x8x8xbf16, #tpu.memory_space<vmem>>, vector<9x8x8xbf16>
    %59 = vector.shape_cast %58 : vector<9x8x8xbf16> to vector<72x8xbf16>
    %cst_54 = arith.constant dense<0.000000e+00> : vector<128x8xf32>
    %60 = tpu.matmul %57, %59, %cst_54 {dimension_numbers = #tpu.dot_dimension_numbers<[1], [0], [0], [1], [0, 0, 1, 1], [], []>} : vector<128x72xbf16>, vector<72x8xbf16>, vector<128x8xf32> -> vector<128x8xf32>
    %c0_55 = arith.constant 0 : index
    %c0_56 = arith.constant 0 : index
    %61 = vector.load %arg10[%c0_55, %c0_56] : memref<1x8xf32, #tpu.memory_space<vmem>>, vector<1x8xf32>
    %62 = vector.broadcast %61 : vector<1x8xf32> to vector<128x8xf32>
    %63 = arith.mulf %60, %62 : vector<128x8xf32>
    %c0_57 = arith.constant 0 : index
    %c0_58 = arith.constant 0 : index
    %64 = vector.load %arg11[%c0_57, %c0_58] : memref<1x8xf32, #tpu.memory_space<vmem>>, vector<1x8xf32>
    %65 = vector.broadcast %64 : vector<1x8xf32> to vector<128x8xf32>
    %66 = arith.addf %63, %65 : vector<128x8xf32>
    %cst_59 = arith.constant 0.000000e+00 : f32
    %67 = vector.broadcast %cst_59 : f32 to vector<128x8xf32>
    %68 = arith.maximumf %66, %67 : vector<128x8xf32>
    %69 = arith.truncf %68 : vector<128x8xf32> to vector<128x8xbf16>
    %c0_60 = arith.constant 0 : index
    %c0_61 = arith.constant 0 : index
    %70 = vector.load %arg7[%c0_60, %c0_61] : memref<8x32xbf16, #tpu.memory_space<vmem>>, vector<8x32xbf16>
    %cst_62 = arith.constant dense<0.000000e+00> : vector<128x32xf32>
    %71 = tpu.matmul %69, %70, %cst_62 {dimension_numbers = #tpu.dot_dimension_numbers<[1], [0], [0], [1], [0, 0, 1, 1], [], []>} : vector<128x8xbf16>, vector<8x32xbf16>, vector<128x32xf32> -> vector<128x32xf32>
    %c0_63 = arith.constant 0 : index
    %c0_64 = arith.constant 0 : index
    %72 = vector.load %arg12[%c0_63, %c0_64] : memref<1x32xf32, #tpu.memory_space<vmem>>, vector<1x32xf32>
    %73 = vector.broadcast %72 : vector<1x32xf32> to vector<128x32xf32>
    %74 = arith.mulf %71, %73 : vector<128x32xf32>
    %c0_65 = arith.constant 0 : index
    %c0_66 = arith.constant 0 : index
    %75 = vector.load %arg13[%c0_65, %c0_66] : memref<1x32xf32, #tpu.memory_space<vmem>>, vector<1x32xf32>
    %76 = vector.broadcast %75 : vector<1x32xf32> to vector<128x32xf32>
    %77 = arith.addf %74, %76 : vector<128x32xf32>
    %78 = vector.shape_cast %1 : vector<8x16x32xf32> to vector<128x32xf32>
    %79 = arith.addf %77, %78 : vector<128x32xf32>
    %cst_67 = arith.constant 0.000000e+00 : f32
    %80 = vector.broadcast %cst_67 : f32 to vector<128x32xf32>
    %81 = arith.maximumf %79, %80 : vector<128x32xf32>
    %82 = vector.shape_cast %81 : vector<128x32xf32> to vector<1x8x512xf32>
    %c0_68 = arith.constant 0 : index
    %c0_69 = arith.constant 0 : index
    %c0_70 = arith.constant 0 : index
    %83 = vector.load %arg14[%c0_68, %c0_69, %c0_70] : memref<1x8x512xf32, #tpu.memory_space<vmem>>, vector<1x8x512xf32>
    tpu.vector_store %arg14[%c0_68, %c0_69, %c0_70], %82 {strides = array<i32>} : memref<1x8x512xf32, #tpu.memory_space<vmem>>, vector<1x8x512xf32>,
    return
  }
  func.func @transform_0(%arg0: i32, %arg1: i32) -> (i32, i32, i32, i32) {
    %c0_i32 = arith.constant 0 : i32
    %c0_i32_0 = arith.constant 0 : i32
    %c0_i32_1 = arith.constant 0 : i32
    return %arg0, %arg1, %c0_i32, %c0_i32_0 : i32, i32, i32, i32
  }
  func.func @transform_1(%arg0: i32, %arg1: i32) -> (i32, i32, i32, i32) {
    %c8_i32 = arith.constant 8 : i32
    %0 = arith.muli %arg1, %c8_i32 : i32
    %c1_i32 = arith.constant 1 : i32
    %1 = arith.subi %0, %c1_i32 : i32
    %c0_i32 = arith.constant 0 : i32
    %2 = arith.maxsi %1, %c0_i32 : i32
    %c0_i32_0 = arith.constant 0 : i32
    %c0_i32_1 = arith.constant 0 : i32
    %c0_i32_2 = arith.constant 0 : i32
    return %arg0, %2, %c0_i32_0, %c0_i32_1 : i32, i32, i32, i32
  }
  func.func @transform_2(%arg0: i32, %arg1: i32) -> (i32, i32, i32, i32) {
    %c1_i32 = arith.constant 1 : i32
    %0 = arith.addi %arg1, %c1_i32 : i32
    %c8_i32 = arith.constant 8 : i32
    %1 = arith.muli %0, %c8_i32 : i32
    %c15_i32 = arith.constant 15 : i32
    %2 = arith.minsi %1, %c15_i32 : i32
    %c0_i32 = arith.constant 0 : i32
    %c0_i32_0 = arith.constant 0 : i32
    %c0_i32_1 = arith.constant 0 : i32
    return %arg0, %2, %c0_i32, %c0_i32_0 : i32, i32, i32, i32
  }
  func.func @transform_3(%arg0: i32, %arg1: i32) -> (i32, i32) {
    %c0_i32 = arith.constant 0 : i32
    %c0_i32_0 = arith.constant 0 : i32
    %c0_i32_1 = arith.constant 0 : i32
    return %c0_i32, %c0_i32_0 : i32, i32
  }
  func.func @transform_4(%arg0: i32, %arg1: i32) -> (i32, i32, i32) {
    %c0_i32 = arith.constant 0 : i32
    %c0_i32_0 = arith.constant 0 : i32
    %c0_i32_1 = arith.constant 0 : i32
    %c0_i32_2 = arith.constant 0 : i32
    return %c0_i32, %c0_i32_0, %c0_i32_1 : i32, i32, i32
  }
  func.func @transform_5(%arg0: i32, %arg1: i32) -> (i32, i32) {
    %c0_i32 = arith.constant 0 : i32
    %c0_i32_0 = arith.constant 0 : i32
    %c0_i32_1 = arith.constant 0 : i32
    return %c0_i32, %c0_i32_0 : i32, i32
  }
  func.func @transform_6(%arg0: i32, %arg1: i32) -> (i32, i32) {
    %c0_i32 = arith.constant 0 : i32
    %c0_i32_0 = arith.constant 0 : i32
    %c0_i32_1 = arith.constant 0 : i32
    return %c0_i32, %c0_i32_0 : i32, i32
  }
  func.func @transform_7(%arg0: i32, %arg1: i32) -> (i32, i32) {
    %c0_i32 = arith.constant 0 : i32
    %c0_i32_0 = arith.constant 0 : i32
    %c0_i32_1 = arith.constant 0 : i32
    return %c0_i32, %c0_i32_0 : i32, i32
  }
  func.func @transform_8(%arg0: i32, %arg1: i32) -> (i32, i32) {
    %c0_i32 = arith.constant 0 : i32
    %c0_i32_0 = arith.constant 0 : i32
    %c0_i32_1 = arith.constant 0 : i32
    return %c0_i32, %c0_i32_0 : i32, i32
  }
  func.func @transform_9(%arg0: i32, %arg1: i32) -> (i32, i32) {
    %c0_i32 = arith.constant 0 : i32
    %c0_i32_0 = arith.constant 0 : i32
    %c0_i32_1 = arith.constant 0 : i32
    return %c0_i32, %c0_i32_0 : i32, i32
  }
  func.func @transform_10(%arg0: i32, %arg1: i32) -> (i32, i32) {
    %c0_i32 = arith.constant 0 : i32
    %c0_i32_0 = arith.constant 0 : i32
    %c0_i32_1 = arith.constant 0 : i32
    return %c0_i32, %c0_i32_0 : i32, i32
  }
  func.func @transform_11(%arg0: i32, %arg1: i32) -> (i32, i32) {
    %c0_i32 = arith.constant 0 : i32
    %c0_i32_0 = arith.constant 0 : i32
    %c0_i32_1 = arith.constant 0 : i32
    return %c0_i32, %c0_i32_0 : i32, i32
  }
  func.func @transform_12(%arg0: i32, %arg1: i32) -> (i32, i32, i32) {
    %c0_i32 = arith.constant 0 : i32
    %c0_i32_0 = arith.constant 0 : i32
    return %arg0, %arg1, %c0_i32 : i32, i32, i32
  }
}

module attributes {stable_mosaic.version = 11 : i64} {
  func.func @kernel(%arg0: i32, %arg1: i32, %arg2: memref<1x8x16x32xf32, #tpu.memory_space<vmem>>, %arg3: memref<1x1x16x32xf32, #tpu.memory_space<vmem>>, %arg4: memref<1x1x16x32xf32, #tpu.memory_space<vmem>>, %arg5: memref<32x8xbf16, #tpu.memory_space<vmem>>, %arg6: memref<9x8x8xbf16, #tpu.memory_space<vmem>>, %arg7: memref<8x32xbf16, #tpu.memory_space<vmem>>, %arg8: memref<1x8xf32, #tpu.memory_space<vmem>>, %arg9: memref<1x8xf32, #tpu.memory_space<vmem>>, %arg10: memref<1x8xf32, #tpu.memory_space<vmem>>, %arg11: memref<1x8xf32, #tpu.memory_space<vmem>>, %arg12: memref<1x32xf32, #tpu.memory_space<vmem>>, %arg13: memref<1x32xf32, #tpu.memory_space<vmem>>, %arg14: memref<1x8x16x32xf32, #tpu.memory_space<vmem>>, %arg15: memref<10x18x8xf32, #tpu.memory_space<vmem>>) attributes {dimension_semantics = [#tpu.dimension_semantics<parallel>, #tpu.dimension_semantics<parallel>], iteration_bounds = array<i64: 2, 2>, scalar_prefetch = 0 : i64, scratch_operands = 1 : i64, tpu.core_type = #tpu.core_type<tc>, window_params = [{transform_indices = @transform_0, window_bounds = array<i64: 1, 8, 16, 32>}, {transform_indices = @transform_1, window_bounds = array<i64: 1, 1, 16, 32>}, {transform_indices = @transform_2, window_bounds = array<i64: 1, 1, 16, 32>}, {pipeline_mode = #tpu.pipeline_mode<synchronous>, transform_indices = @transform_3, window_bounds = array<i64: 32, 8>}, {pipeline_mode = #tpu.pipeline_mode<synchronous>, transform_indices = @transform_4, window_bounds = array<i64: 9, 8, 8>}, {pipeline_mode = #tpu.pipeline_mode<synchronous>, transform_indices = @transform_5, window_bounds = array<i64: 8, 32>}, {pipeline_mode = #tpu.pipeline_mode<synchronous>, transform_indices = @transform_6, window_bounds = array<i64: 1, 8>}, {pipeline_mode = #tpu.pipeline_mode<synchronous>, transform_indices = @transform_7, window_bounds = array<i64: 1, 8>}, {pipeline_mode = #tpu.pipeline_mode<synchronous>, transform_indices = @transform_8, window_bounds = array<i64: 1, 8>}, {pipeline_mode = #tpu.pipeline_mode<synchronous>, transform_indices = @transform_9, window_bounds = array<i64: 1, 8>}, {pipeline_mode = #tpu.pipeline_mode<synchronous>, transform_indices = @transform_10, window_bounds = array<i64: 1, 32>}, {pipeline_mode = #tpu.pipeline_mode<synchronous>, transform_indices = @transform_11, window_bounds = array<i64: 1, 32>}, {transform_indices = @transform_12, window_bounds = array<i64: 1, 8, 16, 32>}]} {
    %c0 = arith.constant 0 : index
    %c0_0 = arith.constant 0 : index
    %c0_1 = arith.constant 0 : index
    %c0_2 = arith.constant 0 : index
    %0 = vector.load %arg2[%c0, %c0_0, %c0_1, %c0_2] : memref<1x8x16x32xf32, #tpu.memory_space<vmem>>, vector<1x8x16x32xf32>
    %1 = vector.shape_cast %0 : vector<1x8x16x32xf32> to vector<8x16x32xf32>
    %c0_3 = arith.constant 0 : index
    %c0_4 = arith.constant 0 : index
    %c0_5 = arith.constant 0 : index
    %c0_6 = arith.constant 0 : index
    %2 = vector.load %arg3[%c0_3, %c0_4, %c0_5, %c0_6] : memref<1x1x16x32xf32, #tpu.memory_space<vmem>>, vector<1x1x16x32xf32>
    %3 = vector.shape_cast %2 : vector<1x1x16x32xf32> to vector<1x16x32xf32>
    %c0_7 = arith.constant 0 : index
    %c0_8 = arith.constant 0 : index
    %c0_9 = arith.constant 0 : index
    %c0_10 = arith.constant 0 : index
    %4 = vector.load %arg4[%c0_7, %c0_8, %c0_9, %c0_10] : memref<1x1x16x32xf32, #tpu.memory_space<vmem>>, vector<1x1x16x32xf32>
    %5 = vector.shape_cast %4 : vector<1x1x16x32xf32> to vector<1x16x32xf32>
    %6 = tpu.concatenate %3, %1, %5 in 0 : vector<1x16x32xf32>, vector<8x16x32xf32>, vector<1x16x32xf32> -> vector<10x16x32xf32>
    %7 = vector.shape_cast %6 : vector<10x16x32xf32> to vector<160x32xf32>
    %8 = arith.truncf %7 : vector<160x32xf32> to vector<160x32xbf16>
    %c0_11 = arith.constant 0 : index
    %c0_12 = arith.constant 0 : index
    %9 = vector.load %arg5[%c0_11, %c0_12] : memref<32x8xbf16, #tpu.memory_space<vmem>>, vector<32x8xbf16>
    %cst = arith.constant dense<0.000000e+00> : vector<160x8xf32>
    %10 = tpu.matmul %8, %9, %cst {dimension_numbers = #tpu.dot_dimension_numbers<[1], [0], [0], [1], [0, 0, 1, 1], [], []>} : vector<160x32xbf16>, vector<32x8xbf16>, vector<160x8xf32> -> vector<160x8xf32>
    %c0_13 = arith.constant 0 : index
    %c0_14 = arith.constant 0 : index
    %11 = vector.load %arg8[%c0_13, %c0_14] : memref<1x8xf32, #tpu.memory_space<vmem>>, vector<1x8xf32>
    %12 = vector.broadcast %11 : vector<1x8xf32> to vector<160x8xf32>
    %13 = arith.mulf %10, %12 : vector<160x8xf32>
    %c0_15 = arith.constant 0 : index
    %c0_16 = arith.constant 0 : index
    %14 = vector.load %arg9[%c0_15, %c0_16] : memref<1x8xf32, #tpu.memory_space<vmem>>, vector<1x8xf32>
    %15 = vector.broadcast %14 : vector<1x8xf32> to vector<160x8xf32>
    %16 = arith.addf %13, %15 : vector<160x8xf32>
    %cst_17 = arith.constant 0.000000e+00 : f32
    %17 = vector.broadcast %cst_17 : f32 to vector<160x8xf32>
    %18 = arith.maximumf %16, %17 : vector<160x8xf32>
    %19 = vector.shape_cast %18 : vector<160x8xf32> to vector<10x16x8xf32>
    %20 = tpu.iota {dimensions = array<i32: 0>} : vector<10x1x1xi32>
    %c8_i32 = arith.constant 8 : i32
    %21 = arith.muli %arg1, %c8_i32 : i32
    %22 = vector.broadcast %21 : i32 to vector<10x1x1xi32>
    %23 = arith.addi %20, %22 : vector<10x1x1xi32>
    %c1_i32 = arith.constant 1 : i32
    %24 = vector.broadcast %c1_i32 : i32 to vector<10x1x1xi32>
    %25 = arith.subi %23, %24 : vector<10x1x1xi32>
    %c0_i32 = arith.constant 0 : i32
    %26 = vector.broadcast %c0_i32 : i32 to vector<10x1x1xi32>
    %27 = arith.cmpi sge, %25, %26 : vector<10x1x1xi32>
    %c16_i32 = arith.constant 16 : i32
    %28 = vector.broadcast %c16_i32 : i32 to vector<10x1x1xi32>
    %29 = arith.cmpi slt, %25, %28 : vector<10x1x1xi32>
    %30 = arith.andi %27, %29 : vector<10x1x1xi1>
    %cst_18 = arith.constant 0.000000e+00 : f32
    %31 = vector.shape_cast %30 : vector<10x1x1xi1> to vector<10x1x1xi1>
    %32 = vector.broadcast %31 : vector<10x1x1xi1> to vector<10x16x8xi1>
    %33 = vector.broadcast %cst_18 : f32 to vector<10x16x8xf32>
    %34 = arith.select %32, %19, %33 : vector<10x16x8xi1>, vector<10x16x8xf32>
    %cst_19 = arith.constant 0.000000e+00 : f32
    %35 = vector.broadcast %cst_19 : f32 to vector<10x18x8xf32>
    %c0_20 = arith.constant 0 : index
    %c0_21 = arith.constant 0 : index
    %c0_22 = arith.constant 0 : index
    %36 = vector.load %arg15[%c0_20, %c0_21, %c0_22] : memref<10x18x8xf32, #tpu.memory_space<vmem>>, vector<10x18x8xf32>
    tpu.vector_store %arg15[%c0_20, %c0_21, %c0_22], %35 {strides = array<i32>} : memref<10x18x8xf32, #tpu.memory_space<vmem>>, vector<10x18x8xf32>,
    %c0_23 = arith.constant 0 : index
    %c1 = arith.constant 1 : index
    %c0_24 = arith.constant 0 : index
    %37 = vector.load %arg15[%c0_23, %c1, %c0_24] : memref<10x18x8xf32, #tpu.memory_space<vmem>>, vector<10x16x8xf32>
    tpu.vector_store %arg15[%c0_23, %c1, %c0_24], %34 {strides = array<i32>} : memref<10x18x8xf32, #tpu.memory_space<vmem>>, vector<10x16x8xf32>,
    %cst_25 = arith.constant 0.000000e+00 : f32
    %38 = vector.broadcast %cst_25 : f32 to vector<128x8xf32>
    %c0_26 = arith.constant 0 : index
    %c0_27 = arith.constant 0 : index
    %c0_28 = arith.constant 0 : index
    %39 = vector.load %arg15[%c0_26, %c0_27, %c0_28] : memref<10x18x8xf32, #tpu.memory_space<vmem>>, vector<8x16x8xf32>
    %40 = vector.shape_cast %39 : vector<8x16x8xf32> to vector<128x8xf32>
    %41 = arith.truncf %40 : vector<128x8xf32> to vector<128x8xbf16>
    %c0_29 = arith.constant 0 : index
    %c0_30 = arith.constant 0 : index
    %c0_31 = arith.constant 0 : index
    %42 = vector.load %arg6[%c0_29, %c0_30, %c0_31] : memref<9x8x8xbf16, #tpu.memory_space<vmem>>, vector<1x8x8xbf16>
    %43 = vector.shape_cast %42 : vector<1x8x8xbf16> to vector<8x8xbf16>
    %cst_32 = arith.constant dense<0.000000e+00> : vector<128x8xf32>
    %44 = tpu.matmul %41, %43, %cst_32 {dimension_numbers = #tpu.dot_dimension_numbers<[1], [0], [0], [1], [0, 0, 1, 1], [], []>} : vector<128x8xbf16>, vector<8x8xbf16>, vector<128x8xf32> -> vector<128x8xf32>
    %45 = arith.addf %38, %44 : vector<128x8xf32>
    %c0_33 = arith.constant 0 : index
    %c1_34 = arith.constant 1 : index
    %c0_35 = arith.constant 0 : index
    %46 = vector.load %arg15[%c0_33, %c1_34, %c0_35] : memref<10x18x8xf32, #tpu.memory_space<vmem>>, vector<8x16x8xf32>
    %47 = vector.shape_cast %46 : vector<8x16x8xf32> to vector<128x8xf32>
    %48 = arith.truncf %47 : vector<128x8xf32> to vector<128x8xbf16>
    %c1_36 = arith.constant 1 : index
    %c0_37 = arith.constant 0 : index
    %c0_38 = arith.constant 0 : index
    %49 = vector.load %arg6[%c1_36, %c0_37, %c0_38] : memref<9x8x8xbf16, #tpu.memory_space<vmem>>, vector<1x8x8xbf16>
    %50 = vector.shape_cast %49 : vector<1x8x8xbf16> to vector<8x8xbf16>
    %cst_39 = arith.constant dense<0.000000e+00> : vector<128x8xf32>
    %51 = tpu.matmul %48, %50, %cst_39 {dimension_numbers = #tpu.dot_dimension_numbers<[1], [0], [0], [1], [0, 0, 1, 1], [], []>} : vector<128x8xbf16>, vector<8x8xbf16>, vector<128x8xf32> -> vector<128x8xf32>
    %52 = arith.addf %45, %51 : vector<128x8xf32>
    %c0_40 = arith.constant 0 : index
    %c2 = arith.constant 2 : index
    %c0_41 = arith.constant 0 : index
    %53 = vector.load %arg15[%c0_40, %c2, %c0_41] : memref<10x18x8xf32, #tpu.memory_space<vmem>>, vector<8x16x8xf32>
    %54 = vector.shape_cast %53 : vector<8x16x8xf32> to vector<128x8xf32>
    %55 = arith.truncf %54 : vector<128x8xf32> to vector<128x8xbf16>
    %c2_42 = arith.constant 2 : index
    %c0_43 = arith.constant 0 : index
    %c0_44 = arith.constant 0 : index
    %56 = vector.load %arg6[%c2_42, %c0_43, %c0_44] : memref<9x8x8xbf16, #tpu.memory_space<vmem>>, vector<1x8x8xbf16>
    %57 = vector.shape_cast %56 : vector<1x8x8xbf16> to vector<8x8xbf16>
    %cst_45 = arith.constant dense<0.000000e+00> : vector<128x8xf32>
    %58 = tpu.matmul %55, %57, %cst_45 {dimension_numbers = #tpu.dot_dimension_numbers<[1], [0], [0], [1], [0, 0, 1, 1], [], []>} : vector<128x8xbf16>, vector<8x8xbf16>, vector<128x8xf32> -> vector<128x8xf32>
    %59 = arith.addf %52, %58 : vector<128x8xf32>
    %c1_46 = arith.constant 1 : index
    %c0_47 = arith.constant 0 : index
    %c0_48 = arith.constant 0 : index
    %60 = vector.load %arg15[%c1_46, %c0_47, %c0_48] : memref<10x18x8xf32, #tpu.memory_space<vmem>>, vector<8x16x8xf32>
    %61 = vector.shape_cast %60 : vector<8x16x8xf32> to vector<128x8xf32>
    %62 = arith.truncf %61 : vector<128x8xf32> to vector<128x8xbf16>
    %c3 = arith.constant 3 : index
    %c0_49 = arith.constant 0 : index
    %c0_50 = arith.constant 0 : index
    %63 = vector.load %arg6[%c3, %c0_49, %c0_50] : memref<9x8x8xbf16, #tpu.memory_space<vmem>>, vector<1x8x8xbf16>
    %64 = vector.shape_cast %63 : vector<1x8x8xbf16> to vector<8x8xbf16>
    %cst_51 = arith.constant dense<0.000000e+00> : vector<128x8xf32>
    %65 = tpu.matmul %62, %64, %cst_51 {dimension_numbers = #tpu.dot_dimension_numbers<[1], [0], [0], [1], [0, 0, 1, 1], [], []>} : vector<128x8xbf16>, vector<8x8xbf16>, vector<128x8xf32> -> vector<128x8xf32>
    %66 = arith.addf %59, %65 : vector<128x8xf32>
    %c1_52 = arith.constant 1 : index
    %c1_53 = arith.constant 1 : index
    %c0_54 = arith.constant 0 : index
    %67 = vector.load %arg15[%c1_52, %c1_53, %c0_54] : memref<10x18x8xf32, #tpu.memory_space<vmem>>, vector<8x16x8xf32>
    %68 = vector.shape_cast %67 : vector<8x16x8xf32> to vector<128x8xf32>
    %69 = arith.truncf %68 : vector<128x8xf32> to vector<128x8xbf16>
    %c4 = arith.constant 4 : index
    %c0_55 = arith.constant 0 : index
    %c0_56 = arith.constant 0 : index
    %70 = vector.load %arg6[%c4, %c0_55, %c0_56] : memref<9x8x8xbf16, #tpu.memory_space<vmem>>, vector<1x8x8xbf16>
    %71 = vector.shape_cast %70 : vector<1x8x8xbf16> to vector<8x8xbf16>
    %cst_57 = arith.constant dense<0.000000e+00> : vector<128x8xf32>
    %72 = tpu.matmul %69, %71, %cst_57 {dimension_numbers = #tpu.dot_dimension_numbers<[1], [0], [0], [1], [0, 0, 1, 1], [], []>} : vector<128x8xbf16>, vector<8x8xbf16>, vector<128x8xf32> -> vector<128x8xf32>
    %73 = arith.addf %66, %72 : vector<128x8xf32>
    %c1_58 = arith.constant 1 : index
    %c2_59 = arith.constant 2 : index
    %c0_60 = arith.constant 0 : index
    %74 = vector.load %arg15[%c1_58, %c2_59, %c0_60] : memref<10x18x8xf32, #tpu.memory_space<vmem>>, vector<8x16x8xf32>
    %75 = vector.shape_cast %74 : vector<8x16x8xf32> to vector<128x8xf32>
    %76 = arith.truncf %75 : vector<128x8xf32> to vector<128x8xbf16>
    %c5 = arith.constant 5 : index
    %c0_61 = arith.constant 0 : index
    %c0_62 = arith.constant 0 : index
    %77 = vector.load %arg6[%c5, %c0_61, %c0_62] : memref<9x8x8xbf16, #tpu.memory_space<vmem>>, vector<1x8x8xbf16>
    %78 = vector.shape_cast %77 : vector<1x8x8xbf16> to vector<8x8xbf16>
    %cst_63 = arith.constant dense<0.000000e+00> : vector<128x8xf32>
    %79 = tpu.matmul %76, %78, %cst_63 {dimension_numbers = #tpu.dot_dimension_numbers<[1], [0], [0], [1], [0, 0, 1, 1], [], []>} : vector<128x8xbf16>, vector<8x8xbf16>, vector<128x8xf32> -> vector<128x8xf32>
    %80 = arith.addf %73, %79 : vector<128x8xf32>
    %c2_64 = arith.constant 2 : index
    %c0_65 = arith.constant 0 : index
    %c0_66 = arith.constant 0 : index
    %81 = vector.load %arg15[%c2_64, %c0_65, %c0_66] : memref<10x18x8xf32, #tpu.memory_space<vmem>>, vector<8x16x8xf32>
    %82 = vector.shape_cast %81 : vector<8x16x8xf32> to vector<128x8xf32>
    %83 = arith.truncf %82 : vector<128x8xf32> to vector<128x8xbf16>
    %c6 = arith.constant 6 : index
    %c0_67 = arith.constant 0 : index
    %c0_68 = arith.constant 0 : index
    %84 = vector.load %arg6[%c6, %c0_67, %c0_68] : memref<9x8x8xbf16, #tpu.memory_space<vmem>>, vector<1x8x8xbf16>
    %85 = vector.shape_cast %84 : vector<1x8x8xbf16> to vector<8x8xbf16>
    %cst_69 = arith.constant dense<0.000000e+00> : vector<128x8xf32>
    %86 = tpu.matmul %83, %85, %cst_69 {dimension_numbers = #tpu.dot_dimension_numbers<[1], [0], [0], [1], [0, 0, 1, 1], [], []>} : vector<128x8xbf16>, vector<8x8xbf16>, vector<128x8xf32> -> vector<128x8xf32>
    %87 = arith.addf %80, %86 : vector<128x8xf32>
    %c2_70 = arith.constant 2 : index
    %c1_71 = arith.constant 1 : index
    %c0_72 = arith.constant 0 : index
    %88 = vector.load %arg15[%c2_70, %c1_71, %c0_72] : memref<10x18x8xf32, #tpu.memory_space<vmem>>, vector<8x16x8xf32>
    %89 = vector.shape_cast %88 : vector<8x16x8xf32> to vector<128x8xf32>
    %90 = arith.truncf %89 : vector<128x8xf32> to vector<128x8xbf16>
    %c7 = arith.constant 7 : index
    %c0_73 = arith.constant 0 : index
    %c0_74 = arith.constant 0 : index
    %91 = vector.load %arg6[%c7, %c0_73, %c0_74] : memref<9x8x8xbf16, #tpu.memory_space<vmem>>, vector<1x8x8xbf16>
    %92 = vector.shape_cast %91 : vector<1x8x8xbf16> to vector<8x8xbf16>
    %cst_75 = arith.constant dense<0.000000e+00> : vector<128x8xf32>
    %93 = tpu.matmul %90, %92, %cst_75 {dimension_numbers = #tpu.dot_dimension_numbers<[1], [0], [0], [1], [0, 0, 1, 1], [], []>} : vector<128x8xbf16>, vector<8x8xbf16>, vector<128x8xf32> -> vector<128x8xf32>
    %94 = arith.addf %87, %93 : vector<128x8xf32>
    %c2_76 = arith.constant 2 : index
    %c2_77 = arith.constant 2 : index
    %c0_78 = arith.constant 0 : index
    %95 = vector.load %arg15[%c2_76, %c2_77, %c0_78] : memref<10x18x8xf32, #tpu.memory_space<vmem>>, vector<8x16x8xf32>
    %96 = vector.shape_cast %95 : vector<8x16x8xf32> to vector<128x8xf32>
    %97 = arith.truncf %96 : vector<128x8xf32> to vector<128x8xbf16>
    %c8 = arith.constant 8 : index
    %c0_79 = arith.constant 0 : index
    %c0_80 = arith.constant 0 : index
    %98 = vector.load %arg6[%c8, %c0_79, %c0_80] : memref<9x8x8xbf16, #tpu.memory_space<vmem>>, vector<1x8x8xbf16>
    %99 = vector.shape_cast %98 : vector<1x8x8xbf16> to vector<8x8xbf16>
    %cst_81 = arith.constant dense<0.000000e+00> : vector<128x8xf32>
    %100 = tpu.matmul %97, %99, %cst_81 {dimension_numbers = #tpu.dot_dimension_numbers<[1], [0], [0], [1], [0, 0, 1, 1], [], []>} : vector<128x8xbf16>, vector<8x8xbf16>, vector<128x8xf32> -> vector<128x8xf32>
    %101 = arith.addf %94, %100 : vector<128x8xf32>
    %c0_82 = arith.constant 0 : index
    %c0_83 = arith.constant 0 : index
    %102 = vector.load %arg10[%c0_82, %c0_83] : memref<1x8xf32, #tpu.memory_space<vmem>>, vector<1x8xf32>
    %103 = vector.broadcast %102 : vector<1x8xf32> to vector<128x8xf32>
    %104 = arith.mulf %101, %103 : vector<128x8xf32>
    %c0_84 = arith.constant 0 : index
    %c0_85 = arith.constant 0 : index
    %105 = vector.load %arg11[%c0_84, %c0_85] : memref<1x8xf32, #tpu.memory_space<vmem>>, vector<1x8xf32>
    %106 = vector.broadcast %105 : vector<1x8xf32> to vector<128x8xf32>
    %107 = arith.addf %104, %106 : vector<128x8xf32>
    %cst_86 = arith.constant 0.000000e+00 : f32
    %108 = vector.broadcast %cst_86 : f32 to vector<128x8xf32>
    %109 = arith.maximumf %107, %108 : vector<128x8xf32>
    %110 = arith.truncf %109 : vector<128x8xf32> to vector<128x8xbf16>
    %c0_87 = arith.constant 0 : index
    %c0_88 = arith.constant 0 : index
    %111 = vector.load %arg7[%c0_87, %c0_88] : memref<8x32xbf16, #tpu.memory_space<vmem>>, vector<8x32xbf16>
    %cst_89 = arith.constant dense<0.000000e+00> : vector<128x32xf32>
    %112 = tpu.matmul %110, %111, %cst_89 {dimension_numbers = #tpu.dot_dimension_numbers<[1], [0], [0], [1], [0, 0, 1, 1], [], []>} : vector<128x8xbf16>, vector<8x32xbf16>, vector<128x32xf32> -> vector<128x32xf32>
    %c0_90 = arith.constant 0 : index
    %c0_91 = arith.constant 0 : index
    %113 = vector.load %arg12[%c0_90, %c0_91] : memref<1x32xf32, #tpu.memory_space<vmem>>, vector<1x32xf32>
    %114 = vector.broadcast %113 : vector<1x32xf32> to vector<128x32xf32>
    %115 = arith.mulf %112, %114 : vector<128x32xf32>
    %c0_92 = arith.constant 0 : index
    %c0_93 = arith.constant 0 : index
    %116 = vector.load %arg13[%c0_92, %c0_93] : memref<1x32xf32, #tpu.memory_space<vmem>>, vector<1x32xf32>
    %117 = vector.broadcast %116 : vector<1x32xf32> to vector<128x32xf32>
    %118 = arith.addf %115, %117 : vector<128x32xf32>
    %119 = vector.shape_cast %1 : vector<8x16x32xf32> to vector<128x32xf32>
    %120 = arith.addf %118, %119 : vector<128x32xf32>
    %cst_94 = arith.constant 0.000000e+00 : f32
    %121 = vector.broadcast %cst_94 : f32 to vector<128x32xf32>
    %122 = arith.maximumf %120, %121 : vector<128x32xf32>
    %123 = vector.shape_cast %122 : vector<128x32xf32> to vector<1x8x16x32xf32>
    %c0_95 = arith.constant 0 : index
    %c0_96 = arith.constant 0 : index
    %c0_97 = arith.constant 0 : index
    %c0_98 = arith.constant 0 : index
    %124 = vector.load %arg14[%c0_95, %c0_96, %c0_97, %c0_98] : memref<1x8x16x32xf32, #tpu.memory_space<vmem>>, vector<1x8x16x32xf32>
    tpu.vector_store %arg14[%c0_95, %c0_96, %c0_97, %c0_98], %123 {strides = array<i32>} : memref<1x8x16x32xf32, #tpu.memory_space<vmem>>, vector<1x8x16x32xf32>,
    return
  }
  func.func @transform_0(%arg0: i32, %arg1: i32) -> (i32, i32, i32, i32) {
    %c0_i32 = arith.constant 0 : i32
    %c0_i32_0 = arith.constant 0 : i32
    %c0_i32_1 = arith.constant 0 : i32
    return %arg0, %arg1, %c0_i32, %c0_i32_0 : i32, i32, i32, i32
  }
  func.func @transform_1(%arg0: i32, %arg1: i32) -> (i32, i32, i32, i32) {
    %c8_i32 = arith.constant 8 : i32
    %0 = arith.muli %arg1, %c8_i32 : i32
    %c1_i32 = arith.constant 1 : i32
    %1 = arith.subi %0, %c1_i32 : i32
    %c0_i32 = arith.constant 0 : i32
    %2 = arith.maxsi %1, %c0_i32 : i32
    %c0_i32_0 = arith.constant 0 : i32
    %c0_i32_1 = arith.constant 0 : i32
    %c0_i32_2 = arith.constant 0 : i32
    return %arg0, %2, %c0_i32_0, %c0_i32_1 : i32, i32, i32, i32
  }
  func.func @transform_2(%arg0: i32, %arg1: i32) -> (i32, i32, i32, i32) {
    %c1_i32 = arith.constant 1 : i32
    %0 = arith.addi %arg1, %c1_i32 : i32
    %c8_i32 = arith.constant 8 : i32
    %1 = arith.muli %0, %c8_i32 : i32
    %c15_i32 = arith.constant 15 : i32
    %2 = arith.minsi %1, %c15_i32 : i32
    %c0_i32 = arith.constant 0 : i32
    %c0_i32_0 = arith.constant 0 : i32
    %c0_i32_1 = arith.constant 0 : i32
    return %arg0, %2, %c0_i32, %c0_i32_0 : i32, i32, i32, i32
  }
  func.func @transform_3(%arg0: i32, %arg1: i32) -> (i32, i32) {
    %c0_i32 = arith.constant 0 : i32
    %c0_i32_0 = arith.constant 0 : i32
    %c0_i32_1 = arith.constant 0 : i32
    return %c0_i32, %c0_i32_0 : i32, i32
  }
  func.func @transform_4(%arg0: i32, %arg1: i32) -> (i32, i32, i32) {
    %c0_i32 = arith.constant 0 : i32
    %c0_i32_0 = arith.constant 0 : i32
    %c0_i32_1 = arith.constant 0 : i32
    %c0_i32_2 = arith.constant 0 : i32
    return %c0_i32, %c0_i32_0, %c0_i32_1 : i32, i32, i32
  }
  func.func @transform_5(%arg0: i32, %arg1: i32) -> (i32, i32) {
    %c0_i32 = arith.constant 0 : i32
    %c0_i32_0 = arith.constant 0 : i32
    %c0_i32_1 = arith.constant 0 : i32
    return %c0_i32, %c0_i32_0 : i32, i32
  }
  func.func @transform_6(%arg0: i32, %arg1: i32) -> (i32, i32) {
    %c0_i32 = arith.constant 0 : i32
    %c0_i32_0 = arith.constant 0 : i32
    %c0_i32_1 = arith.constant 0 : i32
    return %c0_i32, %c0_i32_0 : i32, i32
  }
  func.func @transform_7(%arg0: i32, %arg1: i32) -> (i32, i32) {
    %c0_i32 = arith.constant 0 : i32
    %c0_i32_0 = arith.constant 0 : i32
    %c0_i32_1 = arith.constant 0 : i32
    return %c0_i32, %c0_i32_0 : i32, i32
  }
  func.func @transform_8(%arg0: i32, %arg1: i32) -> (i32, i32) {
    %c0_i32 = arith.constant 0 : i32
    %c0_i32_0 = arith.constant 0 : i32
    %c0_i32_1 = arith.constant 0 : i32
    return %c0_i32, %c0_i32_0 : i32, i32
  }
  func.func @transform_9(%arg0: i32, %arg1: i32) -> (i32, i32) {
    %c0_i32 = arith.constant 0 : i32
    %c0_i32_0 = arith.constant 0 : i32
    %c0_i32_1 = arith.constant 0 : i32
    return %c0_i32, %c0_i32_0 : i32, i32
  }
  func.func @transform_10(%arg0: i32, %arg1: i32) -> (i32, i32) {
    %c0_i32 = arith.constant 0 : i32
    %c0_i32_0 = arith.constant 0 : i32
    %c0_i32_1 = arith.constant 0 : i32
    return %c0_i32, %c0_i32_0 : i32, i32
  }
  func.func @transform_11(%arg0: i32, %arg1: i32) -> (i32, i32) {
    %c0_i32 = arith.constant 0 : i32
    %c0_i32_0 = arith.constant 0 : i32
    %c0_i32_1 = arith.constant 0 : i32
    return %c0_i32, %c0_i32_0 : i32, i32
  }
  func.func @transform_12(%arg0: i32, %arg1: i32) -> (i32, i32, i32, i32) {
    %c0_i32 = arith.constant 0 : i32
    %c0_i32_0 = arith.constant 0 : i32
    %c0_i32_1 = arith.constant 0 : i32
    return %arg0, %arg1, %c0_i32, %c0_i32_0 : i32, i32, i32, i32
  }
}

</mosaic_0001>

<llo_original>
// kernel: tpu_custom_call.1
$region0: #{tpu_custom_call.1}
  #allocation0 [shape = 'u32[]', space=smem, size = 0x4, offset = 0x4, fixed_abs, tag = 'smem constant byte address 0x4 - core index']
  #allocation1 [shape = 'u32[144,128]{1,0:T(1,128)}', space=vmem, size = 0x12000, scoped, tag = 'internal scratch']
  #allocation2 [shape = 'f32[10,18,8]{2,1,0:T(8,128)}', space=vmem, size = 0x1e000, scoped, tag = 'scratch operand']
  %s0 = inlined_call_operand.hbm [shape: f32[2,16,16,32], index: 0, kind: input, shape index: {}]
  %s1 = inlined_call_operand.hbm [shape: f32[2,16,16,32], index: 1, kind: input, shape index: {}]
  %s2 = inlined_call_operand.hbm [shape: f32[2,16,16,32], index: 2, kind: input, shape index: {}]
  %s3 = inlined_call_operand.vmem [shape: bf16[32,8], index: 3, kind: input, shape index: {}]
  %s4 = inlined_call_operand.vmem [shape: bf16[9,8,8], index: 4, kind: input, shape index: {}]
  %s5 = inlined_call_operand.vmem [shape: bf16[8,32], index: 5, kind: input, shape index: {}]
  %s6 = inlined_call_operand.vmem [shape: f32[1,8], index: 6, kind: input, shape index: {}]
  %s7 = inlined_call_operand.vmem [shape: f32[1,8], index: 7, kind: input, shape index: {}]
  %s8 = inlined_call_operand.vmem [shape: f32[1,8], index: 8, kind: input, shape index: {}]
  %s9 = inlined_call_operand.vmem [shape: f32[1,8], index: 9, kind: input, shape index: {}]
  %s10 = inlined_call_operand.vmem [shape: f32[1,32], index: 10, kind: input, shape index: {}]
  %s11 = inlined_call_operand.vmem [shape: f32[1,32], index: 11, kind: input, shape index: {}]
  %s12 = inlined_call_operand.hbm [shape: f32[2,16,16,32], index: 12, kind: output, shape index: {}]
  %s13 = sld [smem:[#allocation0]]
  $region93: #{tpu_custom_call.1} parent=0
    _
  %s15 = ssub.s32 1, %s13
  %s16 = scalar_select 0, %s15, %s13
  $region1: #{tpu_custom_call.1} parent=0
    #allocation3 [shape = 'u8[131072]{0}', space=vmem, size = 0x20000, scoped, tag = 'input window, operand 0']
    #allocation4 [shape = 's32[2]{0}', space=sflag, size = 0x8, scoped, tag = 'scoped memory for tpu_custom_call.1']
    #allocation5 [shape = 's32[2]{0}', space=sflag, size = 0x8, scoped, tag = 'scoped memory for tpu_custom_call.1']
    #allocation6 [shape = 'u8[16384]{0}', space=vmem, size = 0x4000, scoped, tag = 'input window, operand 1']
    #allocation7 [shape = 's32[2]{0}', space=sflag, size = 0x8, scoped, tag = 'scoped memory for tpu_custom_call.1']
    #allocation8 [shape = 'u8[16384]{0}', space=vmem, size = 0x4000, scoped, tag = 'input window, operand 2']
    #allocation9 [shape = 'u8[131072]{0}', space=vmem, size = 0x20000, scoped, tag = 'output window, operand 0']
    %17 = vsyncpa [#allocation4], 0
    %s18 = scalar_lea.sflag [#allocation4], 1
    %19 = vsyncpa %s18, 0
    %20 = vsyncpa [#allocation7], 0
    %s21 = scalar_lea.sflag [#allocation7], 1
    %22 = vsyncpa %s21, 0
    %23 = vsyncpa [#allocation5], 0
    %s24 = scalar_lea.sflag [#allocation5], 1
    %25 = vsyncpa %s24, 0
    loop: start=0, step=1, limit=6
    $region2: #{tpu_custom_call.1} parent=1 // loop_pre_header
      _
    $region3: #{tpu_custom_call.1} parent=1 // loop_header
      %s27 = sphi 0, %s31
      %p28 = scmp.ge.s32.totalorder %s27, 6
      %s34 = sphi 0, %s46
      %s35 = sphi 0, %s42
      %s36 = sphi 0, %s34
      %s37 = sphi 0, %s35
      %s38 = sphi 0, %s36
      %s39 = sphi 0, %s37
      %s51 = sphi 0, %s53
      %s54 = sphi 0, %s51
      %s55 = sphi 0, %s54
      %s71 = sphi 0, %s55
      %s87 = sphi 0, %s89
      %s90 = sphi 0, %s87
      %s91 = sphi 0, %s90
      %s107 = sphi 0, %s91
      %s123 = sphi 0, %s125
      %s126 = sphi 0, %s123
      %s127 = sphi 0, %s126
      %s143 = sphi 0, %s127
      %s147 = sphi 0, %s147
      %s149 = sphi 0, %s147
      %s150 = sphi 0, %s149
      %s164 = sphi 0, %s150
      %s168 = sphi 0, %s168
      %s170 = sphi 0, %s168
      %s171 = sphi 0, %s170
      %s185 = sphi 0, %s171
      %s189 = sphi 0, %s189
      %s191 = sphi 0, %s189
      %s192 = sphi 0, %s191
      %s206 = sphi 0, %s192
      %s210 = sphi 0, %s210
      %s212 = sphi 0, %s210
      %s213 = sphi 0, %s212
      %s227 = sphi 0, %s213
      %s231 = sphi 0, %s231
      %s233 = sphi 0, %s231
      %s234 = sphi 0, %s233
      %s248 = sphi 0, %s234
      %s252 = sphi 0, %s252
      %s254 = sphi 0, %s252
      %s255 = sphi 0, %s254
      %s269 = sphi 0, %s255
      %s273 = sphi 0, %s273
      %s275 = sphi 0, %s273
      %s276 = sphi 0, %s275
      %s290 = sphi 0, %s276
      %s294 = sphi 0, %s294
      %s296 = sphi 0, %s294
      %s297 = sphi 0, %s296
      %s311 = sphi 0, %s297
      %s315 = sphi 0, %s315
      %s317 = sphi 0, %s315
      %s318 = sphi 0, %s317
      %s332 = sphi 0, %s318
      %s340 = sphi 0, %s342
      %s343 = sphi 0, %s340
      %s344 = sphi 0, %s343
      %s360 = sphi 0, %s344
    $region4: #{tpu_custom_call.1} parent=1 // loop_header_branch
      %30 = sbr.rel (%p28) target = $region8
    $region5: #{tpu_custom_call.1} parent=1 // loop_body
      %s32 = ssub.s32 %s27, 1
      %s33 = ssub.s32 %s27, 2
      %s40 = sadd.s32 1, %s35
      %p41 = scmp.ge.s32.totalorder %s40, 2
      %s42 = scalar_select %p41, 0, %s40
      %s43 = sadd.s32 1, %s34
      %s44 = scalar_select %p41, %s43, %s34
      %p45 = scmp.ge.s32.totalorder %s44, 2
      %s46 = scalar_select %p45, 0, %s44
      %s47 = ssub.s32 %s34, %s46
      %s48 = ssub.s32 %s35, %s42
      %s49 = sor.u32 %s47, %s48
      %p50 = scmp.eq.s32.totalorder %s49, 0
      %s52 = sadd.s32 %s51, 1
      %s53 = scalar_select %p50, %s51, %s52
      %p56 = pneg %p50
      %p57 = scmp.eq.s32.totalorder %s27, 3
      %p58 = por %p56, %p57
      %p59 = scmp.ne.s32.totalorder %s51, %s54
      %p60 = scmp.eq.s32.totalorder %s27, 0
      %p61 = por %p59, %p60
      %p62 = scmp.ne.s32.totalorder %s51, %s54
      %p63 = scmp.eq.s32.totalorder %s32, 3
      %p64 = por %p62, %p63
      %p65 = scmp.ne.s32.totalorder %s54, %s55
      %p66 = scmp.eq.s32.totalorder %s32, 0
      %p67 = por %p65, %p66
      %p68 = scmp.ne.s32.totalorder %s54, %s55
      %p69 = scmp.eq.s32.totalorder %s33, 3
      %p70 = por %p68, %p69
      %p72 = scmp.ne.s32.totalorder %s55, %s71
      %p73 = scmp.eq.s32.totalorder %s33, 0
      %p74 = por %p72, %p73
      %s75 = smul.u32 %s35, 8
      %s76 = ssub.s32 %s75, 1
      %p77 = scmp.gt.s32.totalorder %s76, 0
      %s78 = scalar_select %p77, %s76, 0
      %s79 = smul.u32 %s42, 8
      %s80 = ssub.s32 %s79, 1
      %p81 = scmp.gt.s32.totalorder %s80, 0
      %s82 = scalar_select %p81, %s80, 0
      %s83 = ssub.s32 %s34, %s46
      %s84 = ssub.s32 %s78, %s82
      %s85 = sor.u32 %s83, %s84
      %p86 = scmp.eq.s32.totalorder %s85, 0
      %s88 = sadd.s32 %s87, 1
      %s89 = scalar_select %p86, %s87, %s88
      %p92 = pneg %p86
      %p93 = scmp.eq.s32.totalorder %s27, 3
      %p94 = por %p92, %p93
      %p95 = scmp.ne.s32.totalorder %s87, %s90
      %p96 = scmp.eq.s32.totalorder %s27, 0
      %p97 = por %p95, %p96
      %p98 = scmp.ne.s32.totalorder %s87, %s90
      %p99 = scmp.eq.s32.totalorder %s32, 3
      %p100 = por %p98, %p99
      %p101 = scmp.ne.s32.totalorder %s90, %s91
      %p102 = scmp.eq.s32.totalorder %s32, 0
      %p103 = por %p101, %p102
      %p104 = scmp.ne.s32.totalorder %s90, %s91
      %p105 = scmp.eq.s32.totalorder %s33, 3
      %p106 = por %p104, %p105
      %p108 = scmp.ne.s32.totalorder %s91, %s107
      %p109 = scmp.eq.s32.totalorder %s33, 0
      %p110 = por %p108, %p109
      %s111 = sadd.s32 %s35, 1
      %s112 = smul.u32 %s111, 8
      %p113 = scmp.lt.s32.totalorder %s112, 15
      %s114 = scalar_select %p113, %s112, 15
      %s115 = sadd.s32 %s42, 1
      %s116 = smul.u32 %s115, 8
      %p117 = scmp.lt.s32.totalorder %s116, 15
      %s118 = scalar_select %p117, %s116, 15
      %s119 = ssub.s32 %s34, %s46
      %s120 = ssub.s32 %s114, %s118
      %s121 = sor.u32 %s119, %s120
      %p122 = scmp.eq.s32.totalorder %s121, 0
      %s124 = sadd.s32 %s123, 1
      %s125 = scalar_select %p122, %s123, %s124
      %p128 = pneg %p122
      %p129 = scmp.eq.s32.totalorder %s27, 3
      %p130 = por %p128, %p129
      %p131 = scmp.ne.s32.totalorder %s123, %s126
      %p132 = scmp.eq.s32.totalorder %s27, 0
      %p133 = por %p131, %p132
      %p134 = scmp.ne.s32.totalorder %s123, %s126
      %p135 = scmp.eq.s32.totalorder %s32, 3
      %p136 = por %p134, %p135
      %p137 = scmp.ne.s32.totalorder %s126, %s127
      %p138 = scmp.eq.s32.totalorder %s32, 0
      %p139 = por %p137, %p138
      %p140 = scmp.ne.s32.totalorder %s126, %s127
      %p141 = scmp.eq.s32.totalorder %s33, 3
      %p142 = por %p140, %p141
      %p144 = scmp.ne.s32.totalorder %s127, %s143
      %p145 = scmp.eq.s32.totalorder %s33, 0
      %p146 = por %p144, %p145
      %s148 = sadd.s32 %s147, 1
      %p151 = scmp.eq.s32.totalorder %s27, 3
      %p152 = scmp.ne.s32.totalorder %s147, %s149
      %p153 = scmp.eq.s32.totalorder %s27, 0
      %p154 = por %p152, %p153
      %p155 = scmp.ne.s32.totalorder %s147, %s149
      %p156 = scmp.eq.s32.totalorder %s32, 3
      %p157 = por %p155, %p156
      %p158 = scmp.ne.s32.totalorder %s149, %s150
      %p159 = scmp.eq.s32.totalorder %s32, 0
      %p160 = por %p158, %p159
      %p161 = scmp.ne.s32.totalorder %s149, %s150
      %p162 = scmp.eq.s32.totalorder %s33, 3
      %p163 = por %p161, %p162
      %p165 = scmp.ne.s32.totalorder %s150, %s164
      %p166 = scmp.eq.s32.totalorder %s33, 0
      %p167 = por %p165, %p166
      %s169 = sadd.s32 %s168, 1
      %p172 = scmp.eq.s32.totalorder %s27, 3
      %p173 = scmp.ne.s32.totalorder %s168, %s170
      %p174 = scmp.eq.s32.totalorder %s27, 0
      %p175 = por %p173, %p174
      %p176 = scmp.ne.s32.totalorder %s168, %s170
      %p177 = scmp.eq.s32.totalorder %s32, 3
      %p178 = por %p176, %p177
      %p179 = scmp.ne.s32.totalorder %s170, %s171
      %p180 = scmp.eq.s32.totalorder %s32, 0
      %p181 = por %p179, %p180
      %p182 = scmp.ne.s32.totalorder %s170, %s171
      %p183 = scmp.eq.s32.totalorder %s33, 3
      %p184 = por %p182, %p183
      %p186 = scmp.ne.s32.totalorder %s171, %s185
      %p187 = scmp.eq.s32.totalorder %s33, 0
      %p188 = por %p186, %p187
      %s190 = sadd.s32 %s189, 1
      %p193 = scmp.eq.s32.totalorder %s27, 3
      %p194 = scmp.ne.s32.totalorder %s189, %s191
      %p195 = scmp.eq.s32.totalorder %s27, 0
      %p196 = por %p194, %p195
      %p197 = scmp.ne.s32.totalorder %s189, %s191
      %p198 = scmp.eq.s32.totalorder %s32, 3
      %p199 = por %p197, %p198
      %p200 = scmp.ne.s32.totalorder %s191, %s192
      %p201 = scmp.eq.s32.totalorder %s32, 0
      %p202 = por %p200, %p201
      %p203 = scmp.ne.s32.totalorder %s191, %s192
      %p204 = scmp.eq.s32.totalorder %s33, 3
      %p205 = por %p203, %p204
      %p207 = scmp.ne.s32.totalorder %s192, %s206
      %p208 = scmp.eq.s32.totalorder %s33, 0
      %p209 = por %p207, %p208
      %s211 = sadd.s32 %s210, 1
      %p214 = scmp.eq.s32.totalorder %s27, 3
      %p215 = scmp.ne.s32.totalorder %s210, %s212
      %p216 = scmp.eq.s32.totalorder %s27, 0
      %p217 = por %p215, %p216
      %p218 = scmp.ne.s32.totalorder %s210, %s212
      %p219 = scmp.eq.s32.totalorder %s32, 3
      %p220 = por %p218, %p219
      %p221 = scmp.ne.s32.totalorder %s212, %s213
      %p222 = scmp.eq.s32.totalorder %s32, 0
      %p223 = por %p221, %p222
      %p224 = scmp.ne.s32.totalorder %s212, %s213
      %p225 = scmp.eq.s32.totalorder %s33, 3
      %p226 = por %p224, %p225
      %p228 = scmp.ne.s32.totalorder %s213, %s227
      %p229 = scmp.eq.s32.totalorder %s33, 0
      %p230 = por %p228, %p229
      %s232 = sadd.s32 %s231, 1
      %p235 = scmp.eq.s32.totalorder %s27, 3
      %p236 = scmp.ne.s32.totalorder %s231, %s233
      %p237 = scmp.eq.s32.totalorder %s27, 0
      %p238 = por %p236, %p237
      %p239 = scmp.ne.s32.totalorder %s231, %s233
      %p240 = scmp.eq.s32.totalorder %s32, 3
      %p241 = por %p239, %p240
      %p242 = scmp.ne.s32.totalorder %s233, %s234
      %p243 = scmp.eq.s32.totalorder %s32, 0
      %p244 = por %p242, %p243
      %p245 = scmp.ne.s32.totalorder %s233, %s234
      %p246 = scmp.eq.s32.totalorder %s33, 3
      %p247 = por %p245, %p246
      %p249 = scmp.ne.s32.totalorder %s234, %s248
      %p250 = scmp.eq.s32.totalorder %s33, 0
      %p251 = por %p249, %p250
      %s253 = sadd.s32 %s252, 1
      %p256 = scmp.eq.s32.totalorder %s27, 3
      %p257 = scmp.ne.s32.totalorder %s252, %s254
      %p258 = scmp.eq.s32.totalorder %s27, 0
      %p259 = por %p257, %p258
      %p260 = scmp.ne.s32.totalorder %s252, %s254
      %p261 = scmp.eq.s32.totalorder %s32, 3
      %p262 = por %p260, %p261
      %p263 = scmp.ne.s32.totalorder %s254, %s255
      %p264 = scmp.eq.s32.totalorder %s32, 0
      %p265 = por %p263, %p264
      %p266 = scmp.ne.s32.totalorder %s254, %s255
      %p267 = scmp.eq.s32.totalorder %s33, 3
      %p268 = por %p266, %p267
      %p270 = scmp.ne.s32.totalorder %s255, %s269
      %p271 = scmp.eq.s32.totalorder %s33, 0
      %p272 = por %p270, %p271
      %s274 = sadd.s32 %s273, 1
      %p277 = scmp.eq.s32.totalorder %s27, 3
      %p278 = scmp.ne.s32.totalorder %s273, %s275
      %p279 = scmp.eq.s32.totalorder %s27, 0
      %p280 = por %p278, %p279
      %p281 = scmp.ne.s32.totalorder %s273, %s275
      %p282 = scmp.eq.s32.totalorder %s32, 3
      %p283 = por %p281, %p282
      %p284 = scmp.ne.s32.totalorder %s275, %s276
      %p285 = scmp.eq.s32.totalorder %s32, 0
      %p286 = por %p284, %p285
      %p287 = scmp.ne.s32.totalorder %s275, %s276
      %p288 = scmp.eq.s32.totalorder %s33, 3
      %p289 = por %p287, %p288
      %p291 = scmp.ne.s32.totalorder %s276, %s290
      %p292 = scmp.eq.s32.totalorder %s33, 0
      %p293 = por %p291, %p292
      %s295 = sadd.s32 %s294, 1
      %p298 = scmp.eq.s32.totalorder %s27, 3
      %p299 = scmp.ne.s32.totalorder %s294, %s296
      %p300 = scmp.eq.s32.totalorder %s27, 0
      %p301 = por %p299, %p300
      %p302 = scmp.ne.s32.totalorder %s294, %s296
      %p303 = scmp.eq.s32.totalorder %s32, 3
      %p304 = por %p302, %p303
      %p305 = scmp.ne.s32.totalorder %s296, %s297
      %p306 = scmp.eq.s32.totalorder %s32, 0
      %p307 = por %p305, %p306
      %p308 = scmp.ne.s32.totalorder %s296, %s297
      %p309 = scmp.eq.s32.totalorder %s33, 3
      %p310 = por %p308, %p309
      %p312 = scmp.ne.s32.totalorder %s297, %s311
      %p313 = scmp.eq.s32.totalorder %s33, 0
      %p314 = por %p312, %p313
      %s316 = sadd.s32 %s315, 1
      %p319 = scmp.eq.s32.totalorder %s27, 3
      %p320 = scmp.ne.s32.totalorder %s315, %s317
      %p321 = scmp.eq.s32.totalorder %s27, 0
      %p322 = por %p320, %p321
      %p323 = scmp.ne.s32.totalorder %s315, %s317
      %p324 = scmp.eq.s32.totalorder %s32, 3
      %p325 = por %p323, %p324
      %p326 = scmp.ne.s32.totalorder %s317, %s318
      %p327 = scmp.eq.s32.totalorder %s32, 0
      %p328 = por %p326, %p327
      %p329 = scmp.ne.s32.totalorder %s317, %s318
      %p330 = scmp.eq.s32.totalorder %s33, 3
      %p331 = por %p329, %p330
      %p333 = scmp.ne.s32.totalorder %s318, %s332
      %p334 = scmp.eq.s32.totalorder %s33, 0
      %p335 = por %p333, %p334
      %s336 = ssub.s32 %s34, %s46
      %s337 = ssub.s32 %s35, %s42
      %s338 = sor.u32 %s336, %s337
      %p339 = scmp.eq.s32.totalorder %s338, 0
      %s341 = sadd.s32 %s340, 1
      %s342 = scalar_select %p339, %s340, %s341
      %p345 = pneg %p339
      %p346 = scmp.eq.s32.totalorder %s27, 3
      %p347 = por %p345, %p346
      %p348 = scmp.ne.s32.totalorder %s340, %s343
      %p349 = scmp.eq.s32.totalorder %s27, 0
      %p350 = por %p348, %p349
      %p351 = scmp.ne.s32.totalorder %s340, %s343
      %p352 = scmp.eq.s32.totalorder %s32, 3
      %p353 = por %p351, %p352
      %p354 = scmp.ne.s32.totalorder %s343, %s344
      %p355 = scmp.eq.s32.totalorder %s32, 0
      %p356 = por %p354, %p355
      %p357 = scmp.ne.s32.totalorder %s343, %s344
      %p358 = scmp.eq.s32.totalorder %s33, 3
      %p359 = por %p357, %p358
      %p361 = scmp.ne.s32.totalorder %s344, %s360
      %p362 = scmp.eq.s32.totalorder %s33, 0
      %p363 = por %p361, %p362
      %p364 = scmp.le.s32.totalorder 1, %s27
      %p365 = scmp.lt.s32.totalorder %s27, 5
      %p366 = pnand %p364, %p365
      %p367 = pneg %p366
      // Predicated region
      $region9: #{tpu_custom_call.1} parent=5 // pred_check
        _
      $region10: #{tpu_custom_call.1} parent=5 // pred_check_branch
        %369 = sbr.rel (%p366) target = $region12
      $region11: #{tpu_custom_call.1} parent=5 // pred_region
        %s370 = ssub.s32 %s27, 1
        // Predicated region
        $region13: #{tpu_custom_call.1} parent=11 // pred_check
          %p371 = pneg %p160
        $region14: #{tpu_custom_call.1} parent=11 // pred_check_branch
          %373 = sbr.rel (%p371) target = $region16
        $region15: #{tpu_custom_call.1} parent=11 // pred_region
          _
        $region16: #{tpu_custom_call.1} parent=11 // pred_fallthru
          _
        // Predicated region
        $region17: #{tpu_custom_call.1} parent=11 // pred_check
          %p374 = pneg %p181
        $region18: #{tpu_custom_call.1} parent=11 // pred_check_branch
          %376 = sbr.rel (%p374) target = $region20
        $region19: #{tpu_custom_call.1} parent=11 // pred_region
          _
        $region20: #{tpu_custom_call.1} parent=11 // pred_fallthru
          _
        // Predicated region
        $region21: #{tpu_custom_call.1} parent=11 // pred_check
          %p377 = pneg %p202
        $region22: #{tpu_custom_call.1} parent=11 // pred_check_branch
          %379 = sbr.rel (%p377) target = $region24
        $region23: #{tpu_custom_call.1} parent=11 // pred_region
          _
        $region24: #{tpu_custom_call.1} parent=11 // pred_fallthru
          _
        // Predicated region
        $region25: #{tpu_custom_call.1} parent=11 // pred_check
          %p380 = pneg %p223
        $region26: #{tpu_custom_call.1} parent=11 // pred_check_branch
          %382 = sbr.rel (%p380) target = $region28
        $region27: #{tpu_custom_call.1} parent=11 // pred_region
          _
        $region28: #{tpu_custom_call.1} parent=11 // pred_fallthru
          _
        // Predicated region
        $region29: #{tpu_custom_call.1} parent=11 // pred_check
          %p383 = pneg %p244
        $region30: #{tpu_custom_call.1} parent=11 // pred_check_branch
          %385 = sbr.rel (%p383) target = $region32
        $region31: #{tpu_custom_call.1} parent=11 // pred_region
          _
        $region32: #{tpu_custom_call.1} parent=11 // pred_fallthru
          _
        // Predicated region
        $region33: #{tpu_custom_call.1} parent=11 // pred_check
          %p386 = pneg %p265
        $region34: #{tpu_custom_call.1} parent=11 // pred_check_branch
          %388 = sbr.rel (%p386) target = $region36
        $region35: #{tpu_custom_call.1} parent=11 // pred_region
          _
        $region36: #{tpu_custom_call.1} parent=11 // pred_fallthru
          _
        // Predicated region
        $region37: #{tpu_custom_call.1} parent=11 // pred_check
          %p389 = pneg %p286
        $region38: #{tpu_custom_call.1} parent=11 // pred_check_branch
          %391 = sbr.rel (%p389) target = $region40
        $region39: #{tpu_custom_call.1} parent=11 // pred_region
          _
        $region40: #{tpu_custom_call.1} parent=11 // pred_fallthru
          _
        // Predicated region
        $region41: #{tpu_custom_call.1} parent=11 // pred_check
          %p392 = pneg %p307
        $region42: #{tpu_custom_call.1} parent=11 // pred_check_branch
          %394 = sbr.rel (%p392) target = $region44
        $region43: #{tpu_custom_call.1} parent=11 // pred_region
          _
        $region44: #{tpu_custom_call.1} parent=11 // pred_fallthru
          _
        // Predicated region
        $region45: #{tpu_custom_call.1} parent=11 // pred_check
          %p395 = pneg %p328
        $region46: #{tpu_custom_call.1} parent=11 // pred_check_branch
          %397 = sbr.rel (%p395) target = $region48
        $region47: #{tpu_custom_call.1} parent=11 // pred_region
          _
        $region48: #{tpu_custom_call.1} parent=11 // pred_fallthru
          _
      $region12: #{tpu_custom_call.1} parent=5 // pred_fallthru
        _
      %p398 = scmp.lt.s32.totalorder %s27, 4
      // Predicated region
      $region49: #{tpu_custom_call.1} parent=5 // pred_check
        %p399 = pneg %p398
      $region50: #{tpu_custom_call.1} parent=5 // pred_check_branch
        %401 = sbr.rel (%p399) target = $region52
      $region51: #{tpu_custom_call.1} parent=5 // pred_region
        // Predicated region
        $region53: #{tpu_custom_call.1} parent=51 // pred_check
          %p402 = pneg %p61
        $region54: #{tpu_custom_call.1} parent=51 // pred_check_branch
          %404 = sbr.rel (%p402) target = $region56
        $region55: #{tpu_custom_call.1} parent=51 // pred_region
          %s405 = sand.u32 %s51, 1
          %s406 = scalar_lea.sflag [#allocation4], %s405
          %s407 = sand.u32 %s51, 1
          %s408 = smul.addr %s407, 128
          %s409 = scalar_lea.vmem [#allocation3], %s408
          %s410 = smul.u32 8, %s35
          %s412 = ssub.s32 2048, 2048
          %413 = vsyncadd %s406, %s412
          %s414 = smul.addr %s410, 2
          %s415 = smul.addr %s34, 32
          %s416 = sadd.s32 %s414, %s415
          %s417 = smul.addr %s416, 128
          %s418 = scalar_lea.hbm %s0, %s417
          %s419 = sshll.u32 %s409, 4
          %s420 = int_to_ptr.vmem [resolvable:$true] %s419
          %425 = dma.hbm_to_vmem [thread:$0]  %s418, 2048, %s420, %s406, 128, 128, 8
        $region56: #{tpu_custom_call.1} parent=51 // pred_fallthru
          _
        // Predicated region
        $region57: #{tpu_custom_call.1} parent=51 // pred_check
          %p426 = pneg %p97
        $region58: #{tpu_custom_call.1} parent=51 // pred_check_branch
          %428 = sbr.rel (%p426) target = $region60
        $region59: #{tpu_custom_call.1} parent=51 // pred_region
          %s429 = sand.u32 %s27, 1
          %s430 = scalar_lea.sflag [#allocation7], %s429
          %s431 = sand.u32 %s87, 1
          %s432 = smul.addr %s431, 16
          %s433 = scalar_lea.vmem [#allocation6], %s432
          %s434 = smul.u32 %s35, 8
          %s435 = ssub.s32 %s434, 1
          %p436 = scmp.gt.s32.totalorder %s435, 0
          %s437 = scalar_select %p436, %s435, 0
          %s439 = ssub.s32 256, 256
          %440 = vsyncadd %s430, %s439
          %s441 = smul.addr %s437, 2
          %s442 = smul.addr %s34, 32
          %s443 = sadd.s32 %s441, %s442
          %s444 = smul.addr %s443, 128
          %s445 = scalar_lea.hbm %s1, %s444
          %s446 = sshll.u32 %s433, 4
          %s447 = int_to_ptr.vmem [resolvable:$true] %s446
          %452 = dma.hbm_to_vmem [thread:$0]  %s445, 256, %s447, %s430, 128, 128, 8
        $region60: #{tpu_custom_call.1} parent=51 // pred_fallthru
          _
        // Predicated region
        $region61: #{tpu_custom_call.1} parent=51 // pred_check
          %p453 = pneg %p133
        $region62: #{tpu_custom_call.1} parent=51 // pred_check_branch
          %455 = sbr.rel (%p453) target = $region64
        $region63: #{tpu_custom_call.1} parent=51 // pred_region
          %s456 = sand.u32 %s27, 1
          %s457 = scalar_lea.sflag [#allocation7], %s456
          %s458 = sand.u32 %s123, 1
          %s459 = smul.addr %s458, 16
          %s460 = scalar_lea.vmem [#allocation8], %s459
          %s461 = sadd.s32 %s35, 1
          %s462 = smul.u32 %s461, 8
          %p463 = scmp.lt.s32.totalorder %s462, 15
          %s464 = scalar_select %p463, %s462, 15
          %s466 = ssub.s32 256, 256
          %467 = vsyncadd %s457, %s466
          %s468 = smul.addr %s464, 2
          %s469 = smul.addr %s34, 32
          %s470 = sadd.s32 %s468, %s469
          %s471 = smul.addr %s470, 128
          %s472 = scalar_lea.hbm %s2, %s471
          %s473 = sshll.u32 %s460, 4
          %s474 = int_to_ptr.vmem [resolvable:$true] %s473
          %479 = dma.hbm_to_vmem [thread:$0]  %s472, 256, %s474, %s457, 128, 128, 8
        $region64: #{tpu_custom_call.1} parent=51 // pred_fallthru
          _
      $region52: #{tpu_custom_call.1} parent=5 // pred_fallthru
        _
      %p480 = scmp.le.s32.totalorder 1, %s27
      %p481 = scmp.lt.s32.totalorder %s27, 5
      %p482 = pnand %p480, %p481
      %p483 = pneg %p482
      // Predicated region
      $region65: #{tpu_custom_call.1} parent=5 // pred_check
        _
      $region66: #{tpu_custom_call.1} parent=5 // pred_check_branch
        %485 = sbr.rel (%p482) target = $region68
      $region67: #{tpu_custom_call.1} parent=5 // pred_region
        %s486 = ssub.s32 %s27, 1
        %s487 = sand.u32 %s54, 1
        %s488 = scalar_lea.sflag [#allocation4], %s487
        %s489 = sand.u32 %s54, 1
        %s490 = smul.addr %s489, 128
        %s491 = scalar_lea.vmem [#allocation3], %s490
        // Predicated region
        $region69: #{tpu_custom_call.1} parent=67 // pred_check
          %p492 = pneg %p67
        $region70: #{tpu_custom_call.1} parent=67 // pred_check_branch
          %494 = sbr.rel (%p492) target = $region72
        $region71: #{tpu_custom_call.1} parent=67 // pred_region
          %495 = dma.done %s488, 2048
        $region72: #{tpu_custom_call.1} parent=67 // pred_fallthru
          _
        %s496 = sand.u32 %s32, 1
        %s497 = scalar_lea.sflag [#allocation7], %s496
        %s498 = sand.u32 %s90, 1
        %s499 = smul.addr %s498, 16
        %s500 = scalar_lea.vmem [#allocation6], %s499
        // Predicated region
        $region73: #{tpu_custom_call.1} parent=67 // pred_check
          %p501 = pneg %p103
        $region74: #{tpu_custom_call.1} parent=67 // pred_check_branch
          %503 = sbr.rel (%p501) target = $region76
        $region75: #{tpu_custom_call.1} parent=67 // pred_region
          %504 = dma.done %s497, 256
        $region76: #{tpu_custom_call.1} parent=67 // pred_fallthru
          _
        %s505 = sand.u32 %s32, 1
        %s506 = scalar_lea.sflag [#allocation7], %s505
        %s507 = sand.u32 %s126, 1
        %s508 = smul.addr %s507, 16
        %s509 = scalar_lea.vmem [#allocation8], %s508
        // Predicated region
        $region77: #{tpu_custom_call.1} parent=67 // pred_check
          %p510 = pneg %p139
        $region78: #{tpu_custom_call.1} parent=67 // pred_check_branch
          %512 = sbr.rel (%p510) target = $region80
        $region79: #{tpu_custom_call.1} parent=67 // pred_region
          %513 = dma.done %s506, 256
        $region80: #{tpu_custom_call.1} parent=67 // pred_fallthru
          _
        %s514 = sand.u32 %s54, 1
        %s515 = scalar_lea.sflag [#allocation4], %s514
        %s516 = sand.u32 %s54, 1
        %s517 = smul.addr %s516, 128
        %s518 = scalar_lea.vmem [#allocation3], %s517
        %p519 = pneg %p67
        %p520 = pneg %p64
        %s521 = sand.u32 %s32, 1
        %s522 = scalar_lea.sflag [#allocation7], %s521
        %s523 = sand.u32 %s90, 1
        %s524 = smul.addr %s523, 16
        %s525 = scalar_lea.vmem [#allocation6], %s524
        %p526 = pneg %p103
        %p527 = pneg %p100
        %s528 = sand.u32 %s32, 1
        %s529 = scalar_lea.sflag [#allocation7], %s528
        %s530 = sand.u32 %s126, 1
        %s531 = smul.addr %s530, 16
        %s532 = scalar_lea.vmem [#allocation8], %s531
        %p533 = pneg %p139
        %p534 = pneg %p136
        %p535 = pneg %p160
        %p536 = pneg %p157
        %p537 = pneg %p181
        %p538 = pneg %p178
        %p539 = pneg %p202
        %p540 = pneg %p199
        %p541 = pneg %p223
        %p542 = pneg %p220
        %p543 = pneg %p244
        %p544 = pneg %p241
        %p545 = pneg %p265
        %p546 = pneg %p262
        %p547 = pneg %p286
        %p548 = pneg %p283
        %p549 = pneg %p307
        %p550 = pneg %p304
        %p551 = pneg %p328
        %p552 = pneg %p325
        %p553 = pneg %p356
        %p554 = pneg %p353
        %s555 = sand.u32 %s343, 1
        %s556 = scalar_lea.sflag [#allocation5], %s555
        %s557 = sand.u32 %s343, 1
        %s558 = smul.addr %s557, 128
        %s559 = scalar_lea.vmem [#allocation9], %s558
        %s560 = smul.u32 8, %s37
        %s561 = smul.u32 %s37, 8
        %s562 = ssub.s32 %s561, 1
        %p563 = scmp.gt.s32.totalorder %s562, 0
        %s564 = scalar_select %p563, %s562, 0
        %s565 = sadd.s32 %s37, 1
        %s566 = smul.u32 %s565, 8
        %p567 = scmp.lt.s32.totalorder %s566, 15
        %s568 = scalar_select %p567, %s566, 15
        %s569 = smul.u32 8, %s37
        %v571 = vld [vmem:[%s491] sm:$0xff]
        %v572 = vld [vmem:[%s491 + $0x8] sm:$0xff]
        %v573 = vld [vmem:[%s491 + $0x10] sm:$0xff]
        %v574 = vld [vmem:[%s491 + $0x18] sm:$0xff]
        %v575 = vld [vmem:[%s491 + $0x20] sm:$0xff]
        %v576 = vld [vmem:[%s491 + $0x28] sm:$0xff]
        %v577 = vld [vmem:[%s491 + $0x30] sm:$0xff]
        %v578 = vld [vmem:[%s491 + $0x38] sm:$0xff]
        %v579 = vld [vmem:[%s491 + $0x40] sm:$0xff]
        %v580 = vld [vmem:[%s491 + $0x48] sm:$0xff]
        %v581 = vld [vmem:[%s491 + $0x50] sm:$0xff]
        %v582 = vld [vmem:[%s491 + $0x58] sm:$0xff]
        %v583 = vld [vmem:[%s491 + $0x60] sm:$0xff]
        %v584 = vld [vmem:[%s491 + $0x68] sm:$0xff]
        %v585 = vld [vmem:[%s491 + $0x70] sm:$0xff]
        %v586 = vld [vmem:[%s491 + $0x78] sm:$0xff]
        %v587 = vld [vmem:[%s500] sm:$0xff]
        %v588 = vld [vmem:[%s500 + $0x8] sm:$0xff]
        %v589 = vld [vmem:[%s509] sm:$0xff]
        %v590 = vld [vmem:[%s509 + $0x8] sm:$0xff]
        %v591 = vpack.c.bf16 %v588, %v587
        %v592 = vpack.c.bf16 %v572, %v571
        %v593 = vpack.c.bf16 %v574, %v573
        %v594 = vpack.c.bf16 %v576, %v575
        %v595 = vpack.c.bf16 %v578, %v577
        %v596 = vpack.c.bf16 %v580, %v579
        %v597 = vpack.c.bf16 %v582, %v581
        %v598 = vpack.c.bf16 %v584, %v583
        %v599 = vpack.c.bf16 %v586, %v585
        %v600 = vpack.c.bf16 %v590, %v589
        %v601 = vld [vmem:[%s3] sm:$0xf]
        %v602 = vld [vmem:[%s3 + $0x4] sm:$0xf]
        %v603 = vld [vmem:[%s3 + $0x8] sm:$0xf]
        %v604 = vld [vmem:[%s3 + $0xc] sm:$0xf]
        %v609 = vunpack.c.l.b16 %v601
        %v610 = vunpack.c.l.b16 %v602
        %v611 = vunpack.c.l.b16 %v603
        %v612 = vunpack.c.l.b16 %v604
        %v613 = vpack.c.b16 %v610, %v609
        %v614 = vpack.c.b16 %v612, %v611
        %vm617 = vcmask 261120
        %v619 = vsel %vm617, %v591, 0
        %v622 = vsel %vm617, %v592, 0
        %v625 = vsel %vm617, %v593, 0
        %v628 = vsel %vm617, %v594, 0
        %v631 = vsel %vm617, %v595, 0
        %v634 = vsel %vm617, %v596, 0
        %v637 = vsel %vm617, %v597, 0
        %v640 = vsel %vm617, %v598, 0
        %v643 = vsel %vm617, %v599, 0
        %v646 = vsel %vm617, %v600, 0
        %648 = vmatprep.subr.bf16.mxu0 0
        %649 = vmatpush1.bf16.msra.mxu0 %v613
        %650 = vmatprep.subr.bf16.mxu0 0
        %651 = vmatpush1.bf16.msra.mxu0 %v614
        %652 = vmatprep.subr.bf16.mxu0 0
        %653 = vmatpush1.bf16.msra.mxu0 0
        %654 = vmatprep.subr.bf16.mxu0 0
        %655 = vmatpush1.bf16.msra.mxu0 0
        %656 = vmatprep.subr.bf16.mxu0 0
        %657 = vmatpush1.bf16.msra.mxu0 0
        %658 = vmatprep.subr.bf16.mxu0 0
        %659 = vmatpush1.bf16.msra.mxu0 0
        %660 = vmatprep.subr.bf16.mxu0 0
        %661 = vmatpush1.bf16.msra.mxu0 0
        %662 = vmatprep.subr.bf16.mxu0 0
        %663 = vmatpush1.bf16.msra.mxu0 0
        %664 = vmatprep.subr.bf16.mxu0 0
        %665 = vmatpush1.bf16.msra.mxu0 0
        %666 = vmatprep.subr.bf16.mxu0 0
        %667 = vmatpush1.bf16.msra.mxu0 0
        %668 = vmatprep.subr.bf16.mxu0 0
        %669 = vmatpush1.bf16.msra.mxu0 0
        %670 = vmatprep.subr.bf16.mxu0 0
        %671 = vmatpush1.bf16.msra.mxu0 0
        %672 = vmatprep.subr.bf16.mxu0 0
        %673 = vmatpush1.bf16.msra.mxu0 0
        %674 = vmatprep.subr.bf16.mxu0 0
        %675 = vmatpush1.bf16.msra.mxu0 0
        %676 = vmatprep.subr.bf16.mxu0 0
        %677 = vmatpush1.bf16.msra.mxu0 0
        %678 = vmatprep.subr.bf16.mxu0 0
        %679 = vmatpush1.bf16.msra.mxu0 0
        %680 = vmatprep.mubr.bf16.mxu0 0
        %681 = vmatmul.mubr.bf16.gmra.mrb[0].mxu0 %v619
        %v682 = vpop.f32.mrb[0].mxu0
        %v683 = vadd.f32 0.0, %v682
        %v684 = vpop.f32.mrb[0].mxu0
        %v685 = vpop.f32.mrb[0].mxu0
        %v686 = vadd.f32 0.0, %v685
        %v687 = vpop.f32.mrb[0].mxu0
        %688 = vmatprep.mubr.bf16.mxu0 0
        %689 = vmatmul.mubr.bf16.gmra.mrb[0].mxu0 %v622
        %v690 = vpop.f32.mrb[0].mxu0
        %v691 = vadd.f32 0.0, %v690
        %v692 = vpop.f32.mrb[0].mxu0
        %v693 = vpop.f32.mrb[0].mxu0
        %v694 = vadd.f32 0.0, %v693
        %v695 = vpop.f32.mrb[0].mxu0
        %696 = vmatprep.mubr.bf16.mxu0 0
        %697 = vmatmul.mubr.bf16.gmra.mrb[0].mxu0 %v625
        %v698 = vpop.f32.mrb[0].mxu0
        %v699 = vadd.f32 0.0, %v698
        %v700 = vpop.f32.mrb[0].mxu0
        %v701 = vpop.f32.mrb[0].mxu0
        %v702 = vadd.f32 0.0, %v701
        %v703 = vpop.f32.mrb[0].mxu0
        %704 = vmatprep.mubr.bf16.mxu0 0
        %705 = vmatmul.mubr.bf16.gmra.mrb[0].mxu0 %v628
        %v706 = vpop.f32.mrb[0].mxu0
        %v707 = vadd.f32 0.0, %v706
        %v708 = vpop.f32.mrb[0].mxu0
        %v709 = vpop.f32.mrb[0].mxu0
        %v710 = vadd.f32 0.0, %v709
        %v711 = vpop.f32.mrb[0].mxu0
        %712 = vmatprep.mubr.bf16.mxu0 0
        %713 = vmatmul.mubr.bf16.gmra.mrb[0].mxu0 %v631
        %v714 = vpop.f32.mrb[0].mxu0
        %v715 = vadd.f32 0.0, %v714
        %v716 = vpop.f32.mrb[0].mxu0
        %v717 = vpop.f32.mrb[0].mxu0
        %v718 = vadd.f32 0.0, %v717
        %v719 = vpop.f32.mrb[0].mxu0
        %720 = vmatprep.mubr.bf16.mxu0 0
        %721 = vmatmul.mubr.bf16.gmra.mrb[0].mxu0 %v634
        %v722 = vpop.f32.mrb[0].mxu0
        %v723 = vadd.f32 0.0, %v722
        %v724 = vpop.f32.mrb[0].mxu0
        %v725 = vpop.f32.mrb[0].mxu0
        %v726 = vadd.f32 0.0, %v725
        %v727 = vpop.f32.mrb[0].mxu0
        %728 = vmatprep.mubr.bf16.mxu0 0
        %729 = vmatmul.mubr.bf16.gmra.mrb[0].mxu0 %v637
        %v730 = vpop.f32.mrb[0].mxu0
        %v731 = vadd.f32 0.0, %v730
        %v732 = vpop.f32.mrb[0].mxu0
        %v733 = vpop.f32.mrb[0].mxu0
        %v734 = vadd.f32 0.0, %v733
        %v735 = vpop.f32.mrb[0].mxu0
        %736 = vmatprep.mubr.bf16.mxu0 0
        %737 = vmatmul.mubr.bf16.gmra.mrb[0].mxu0 %v640
        %v738 = vpop.f32.mrb[0].mxu0
        %v739 = vadd.f32 0.0, %v738
        %v740 = vpop.f32.mrb[0].mxu0
        %v741 = vpop.f32.mrb[0].mxu0
        %v742 = vadd.f32 0.0, %v741
        %v743 = vpop.f32.mrb[0].mxu0
        %744 = vmatprep.mubr.bf16.mxu0 0
        %745 = vmatmul.mubr.bf16.gmra.mrb[0].mxu0 %v643
        %v746 = vpop.f32.mrb[0].mxu0
        %v747 = vadd.f32 0.0, %v746
        %v748 = vpop.f32.mrb[0].mxu0
        %v749 = vpop.f32.mrb[0].mxu0
        %v750 = vadd.f32 0.0, %v749
        %v751 = vpop.f32.mrb[0].mxu0
        %752 = vmatprep.mubr.bf16.mxu0 0
        %753 = vmatmul.mubr.bf16.gmra.mrb[0].mxu0 %v646
        %v754 = vpop.f32.mrb[0].mxu0
        %v755 = vadd.f32 0.0, %v754
        %v756 = vpop.f32.mrb[0].mxu0
        %v757 = vpop.f32.mrb[0].mxu0
        %v758 = vadd.f32 0.0, %v757
        %v759 = vpop.f32.mrb[0].mxu0
        %760 = vdwg.mxu0
        %v761 = vld [vmem:[%s6] sm:$0x1]
        %v763 = vlaneseq
        %v764 = vshrl.u32 %v763, 7
        %v765 = vsub.s32 0, %v764
        %v766 = vrot.slane %v761, %v765
        %v768 = vmul.f32 %v683, %v766
        %v769 = vmul.f32 %v686, %v766
        %v770 = vmul.f32 %v691, %v766
        %v771 = vmul.f32 %v694, %v766
        %v772 = vmul.f32 %v699, %v766
        %v773 = vmul.f32 %v702, %v766
        %v774 = vmul.f32 %v707, %v766
        %v775 = vmul.f32 %v710, %v766
        %v776 = vmul.f32 %v715, %v766
        %v777 = vmul.f32 %v718, %v766
        %v778 = vmul.f32 %v723, %v766
        %v779 = vmul.f32 %v726, %v766
        %v780 = vmul.f32 %v731, %v766
        %v781 = vmul.f32 %v734, %v766
        %v782 = vmul.f32 %v739, %v766
        %v783 = vmul.f32 %v742, %v766
        %v784 = vmul.f32 %v747, %v766
        %v785 = vmul.f32 %v750, %v766
        %v786 = vmul.f32 %v755, %v766
        %v787 = vmul.f32 %v758, %v766
        %v788 = vld [vmem:[%s7] sm:$0x1]
        %v790 = vlaneseq
        %v791 = vshrl.u32 %v790, 7
        %v792 = vsub.s32 0, %v791
        %v793 = vrot.slane %v788, %v792
        %v795 = vadd.f32 %v768, %v793
        %v796 = vadd.f32 %v769, %v793
        %v797 = vadd.f32 %v770, %v793
        %v798 = vadd.f32 %v771, %v793
        %v799 = vadd.f32 %v772, %v793
        %v800 = vadd.f32 %v773, %v793
        %v801 = vadd.f32 %v774, %v793
        %v802 = vadd.f32 %v775, %v793
        %v803 = vadd.f32 %v776, %v793
        %v804 = vadd.f32 %v777, %v793
        %v805 = vadd.f32 %v778, %v793
        %v806 = vadd.f32 %v779, %v793
        %v807 = vadd.f32 %v780, %v793
        %v808 = vadd.f32 %v781, %v793
        %v809 = vadd.f32 %v782, %v793
        %v810 = vadd.f32 %v783, %v793
        %v811 = vadd.f32 %v784, %v793
        %v812 = vadd.f32 %v785, %v793
        %v813 = vadd.f32 %v786, %v793
        %v814 = vadd.f32 %v787, %v793
        %v815 = vmax.f32 %v795, 0.0
        %v816 = vmax.f32 %v796, 0.0
        %v817 = vmax.f32 %v797, 0.0
        %v818 = vmax.f32 %v798, 0.0
        %v819 = vmax.f32 %v799, 0.0
        %v820 = vmax.f32 %v800, 0.0
        %v821 = vmax.f32 %v801, 0.0
        %v822 = vmax.f32 %v802, 0.0
        %v823 = vmax.f32 %v803, 0.0
        %v824 = vmax.f32 %v804, 0.0
        %v825 = vmax.f32 %v805, 0.0
        %v826 = vmax.f32 %v806, 0.0
        %v827 = vmax.f32 %v807, 0.0
        %v828 = vmax.f32 %v808, 0.0
        %v829 = vmax.f32 %v809, 0.0
        %v830 = vmax.f32 %v810, 0.0
        %v831 = vmax.f32 %v811, 0.0
        %v832 = vmax.f32 %v812, 0.0
        %v833 = vmax.f32 %v813, 0.0
        %v834 = vmax.f32 %v814, 0.0
        %s835 = smul.u32 %s37, 8
        %v836 = vstv %s835
        %v837 = vadd.s32 %v836, 2
        %v838 = vadd.s32 %v836, 3
        %v839 = vadd.s32 %v836, 4
        %v840 = vadd.s32 %v836, 5
        %v841 = vadd.s32 %v836, 6
        %v842 = vadd.s32 %v836, 7
        %v843 = vadd.s32 %v836, 8
        %v844 = vadd.s32 %v836, 9
        %v845 = vsub.s32 %v836, 1
        %v846 = vsub.s32 %v837, 1
        %v847 = vsub.s32 %v838, 1
        %v848 = vsub.s32 %v839, 1
        %v849 = vsub.s32 %v840, 1
        %v850 = vsub.s32 %v841, 1
        %v851 = vsub.s32 %v842, 1
        %v852 = vsub.s32 %v843, 1
        %v853 = vsub.s32 %v844, 1
        %vm854 = vcmp.ge.s32.totalorder %v845, 0
        %vm855 = vcmp.ge.s32.totalorder %v836, 0
        %vm856 = vcmp.ge.s32.totalorder %v846, 0
        %vm857 = vcmp.ge.s32.totalorder %v847, 0
        %vm858 = vcmp.ge.s32.totalorder %v848, 0
        %vm859 = vcmp.ge.s32.totalorder %v849, 0
        %vm860 = vcmp.ge.s32.totalorder %v850, 0
        %vm861 = vcmp.ge.s32.totalorder %v851, 0
        %vm862 = vcmp.ge.s32.totalorder %v852, 0
        %vm863 = vcmp.ge.s32.totalorder %v853, 0
        %vm864 = vcmp.lt.s32.totalorder %v845, 16
        %vm865 = vcmp.lt.s32.totalorder %v836, 16
        %vm866 = vcmp.lt.s32.totalorder %v846, 16
        %vm867 = vcmp.lt.s32.totalorder %v847, 16
        %vm868 = vcmp.lt.s32.totalorder %v848, 16
        %vm869 = vcmp.lt.s32.totalorder %v849, 16
        %vm870 = vcmp.lt.s32.totalorder %v850, 16
        %vm871 = vcmp.lt.s32.totalorder %v851, 16
        %vm872 = vcmp.lt.s32.totalorder %v852, 16
        %vm873 = vcmp.lt.s32.totalorder %v853, 16
        %vm874 = vmand %vm854, %vm864
        %vm875 = vmand %vm855, %vm865
        %vm876 = vmand %vm856, %vm866
        %vm877 = vmand %vm857, %vm867
        %vm878 = vmand %vm858, %vm868
        %vm879 = vmand %vm859, %vm869
        %vm880 = vmand %vm860, %vm870
        %vm881 = vmand %vm861, %vm871
        %vm882 = vmand %vm862, %vm872
        %vm883 = vmand %vm863, %vm873
        %v884 = vsel %vm874, 1, 0
        %v885 = vsel %vm875, 1, 0
        %v886 = vsel %vm876, 1, 0
        %v887 = vsel %vm877, 1, 0
        %v888 = vsel %vm878, 1, 0
        %v889 = vsel %vm879, 1, 0
        %v890 = vsel %vm880, 1, 0
        %v891 = vsel %vm881, 1, 0
        %v892 = vsel %vm882, 1, 0
        %v893 = vsel %vm883, 1, 0
        %vm894 = vcmp.eq.s32.totalorder %v884, 1
        %vm895 = vcmp.eq.s32.totalorder %v885, 1
        %vm896 = vcmp.eq.s32.totalorder %v886, 1
        %vm897 = vcmp.eq.s32.totalorder %v887, 1
        %vm898 = vcmp.eq.s32.totalorder %v888, 1
        %vm899 = vcmp.eq.s32.totalorder %v889, 1
        %vm900 = vcmp.eq.s32.totalorder %v890, 1
        %vm901 = vcmp.eq.s32.totalorder %v891, 1
        %vm902 = vcmp.eq.s32.totalorder %v892, 1
        %vm903 = vcmp.eq.s32.totalorder %v893, 1
        %v904 = vsel %vm894, %v815, 0.0
        %v905 = vsel %vm894, %v816, 0.0
        %v906 = vsel %vm895, %v817, 0.0
        %v907 = vsel %vm895, %v818, 0.0
        %v908 = vsel %vm896, %v819, 0.0
        %v909 = vsel %vm896, %v820, 0.0
        %v910 = vsel %vm897, %v821, 0.0
        %v911 = vsel %vm897, %v822, 0.0
        %v912 = vsel %vm898, %v823, 0.0
        %v913 = vsel %vm898, %v824, 0.0
        %v914 = vsel %vm899, %v825, 0.0
        %v915 = vsel %vm899, %v826, 0.0
        %v916 = vsel %vm900, %v827, 0.0
        %v917 = vsel %vm900, %v828, 0.0
        %v918 = vsel %vm901, %v829, 0.0
        %v919 = vsel %vm901, %v830, 0.0
        %v920 = vsel %vm902, %v831, 0.0
        %v921 = vsel %vm902, %v832, 0.0
        %v922 = vsel %vm903, %v833, 0.0
        %v923 = vsel %vm903, %v834, 0.0
        %vm924 = vcmask 64512
        %925 = vst.msk [vmem:[#allocation2] sm:$0xff] %vm924, 0.0
        %926 = vst.msk [vmem:[#allocation2 + $0x8] sm:$0xff] %vm924, 0.0
        %vm927 = vcmask 58368
        %928 = vst.msk [vmem:[#allocation2 + $0x10] sm:$0x3] %vm927, 0.0
        %929 = vst.msk [vmem:[#allocation2 + $0x18] sm:$0xff] %vm924, 0.0
        %930 = vst.msk [vmem:[#allocation2 + $0x20] sm:$0xff] %vm924, 0.0
        %931 = vst.msk [vmem:[#allocation2 + $0x28] sm:$0x3] %vm927, 0.0
        %932 = vst.msk [vmem:[#allocation2 + $0x30] sm:$0xff] %vm924, 0.0
        %933 = vst.msk [vmem:[#allocation2 + $0x38] sm:$0xff] %vm924, 0.0
        %934 = vst.msk [vmem:[#allocation2 + $0x40] sm:$0x3] %vm927, 0.0
        %935 = vst.msk [vmem:[#allocation2 + $0x48] sm:$0xff] %vm924, 0.0
        %936 = vst.msk [vmem:[#allocation2 + $0x50] sm:$0xff] %vm924, 0.0
        %937 = vst.msk [vmem:[#allocation2 + $0x58] sm:$0x3] %vm927, 0.0
        %938 = vst.msk [vmem:[#allocation2 + $0x60] sm:$0xff] %vm924, 0.0
        %939 = vst.msk [vmem:[#allocation2 + $0x68] sm:$0xff] %vm924, 0.0
        %940 = vst.msk [vmem:[#allocation2 + $0x70] sm:$0x3] %vm927, 0.0
        %941 = vst.msk [vmem:[#allocation2 + $0x78] sm:$0xff] %vm924, 0.0
        %942 = vst.msk [vmem:[#allocation2 + $0x80] sm:$0xff] %vm924, 0.0
        %943 = vst.msk [vmem:[#allocation2 + $0x88] sm:$0x3] %vm927, 0.0
        %944 = vst.msk [vmem:[#allocation2 + $0x90] sm:$0xff] %vm924, 0.0
        %945 = vst.msk [vmem:[#allocation2 + $0x98] sm:$0xff] %vm924, 0.0
        %946 = vst.msk [vmem:[#allocation2 + $0xa0] sm:$0x3] %vm927, 0.0
        %947 = vst.msk [vmem:[#allocation2 + $0xa8] sm:$0xff] %vm924, 0.0
        %948 = vst.msk [vmem:[#allocation2 + $0xb0] sm:$0xff] %vm924, 0.0
        %949 = vst.msk [vmem:[#allocation2 + $0xb8] sm:$0x3] %vm927, 0.0
        %950 = vst.msk [vmem:[#allocation2 + $0xc0] sm:$0xff] %vm924, 0.0
        %951 = vst.msk [vmem:[#allocation2 + $0xc8] sm:$0xff] %vm924, 0.0
        %952 = vst.msk [vmem:[#allocation2 + $0xd0] sm:$0x3] %vm927, 0.0
        %953 = vst.msk [vmem:[#allocation2 + $0xd8] sm:$0xff] %vm924, 0.0
        %954 = vst.msk [vmem:[#allocation2 + $0xe0] sm:$0xff] %vm924, 0.0
        %955 = vst.msk [vmem:[#allocation2 + $0xe8] sm:$0x3] %vm927, 0.0
        %956 = vst.msk [vmem:[#allocation2 + $0x1] sm:$0xff] %vm924, %v904
        %957 = vst.msk [vmem:[#allocation2 + $0x9] sm:$0xff] %vm924, %v905
        %958 = vst.msk [vmem:[#allocation2 + $0x19] sm:$0xff] %vm924, %v906
        %959 = vst.msk [vmem:[#allocation2 + $0x21] sm:$0xff] %vm924, %v907
        %960 = vst.msk [vmem:[#allocation2 + $0x31] sm:$0xff] %vm924, %v908
        %961 = vst.msk [vmem:[#allocation2 + $0x39] sm:$0xff] %vm924, %v909
        %962 = vst.msk [vmem:[#allocation2 + $0x49] sm:$0xff] %vm924, %v910
        %963 = vst.msk [vmem:[#allocation2 + $0x51] sm:$0xff] %vm924, %v911
        %964 = vst.msk [vmem:[#allocation2 + $0x61] sm:$0xff] %vm924, %v912
        %965 = vst.msk [vmem:[#allocation2 + $0x69] sm:$0xff] %vm924, %v913
        %966 = vst.msk [vmem:[#allocation2 + $0x79] sm:$0xff] %vm924, %v914
        %967 = vst.msk [vmem:[#allocation2 + $0x81] sm:$0xff] %vm924, %v915
        %968 = vst.msk [vmem:[#allocation2 + $0x91] sm:$0xff] %vm924, %v916
        %969 = vst.msk [vmem:[#allocation2 + $0x99] sm:$0xff] %vm924, %v917
        %970 = vst.msk [vmem:[#allocation2 + $0xa9] sm:$0xff] %vm924, %v918
        %971 = vst.msk [vmem:[#allocation2 + $0xb1] sm:$0xff] %vm924, %v919
        %972 = vst.msk [vmem:[#allocation2 + $0xc1] sm:$0xff] %vm924, %v920
        %973 = vst.msk [vmem:[#allocation2 + $0xc9] sm:$0xff] %vm924, %v921
        %974 = vst.msk [vmem:[#allocation2 + $0xd9] sm:$0xff] %vm924, %v922
        %975 = vst.msk [vmem:[#allocation2 + $0xe1] sm:$0xff] %vm924, %v923
        %v976 = vld [vmem:[#allocation2] sm:$0xff]
        %v977 = vld [vmem:[#allocation2 + $0x8] sm:$0xff]
        %v978 = vld [vmem:[#allocation2 + $0x18] sm:$0xff]
        %v979 = vld [vmem:[#allocation2 + $0x20] sm:$0xff]
        %v980 = vld [vmem:[#allocation2 + $0x30] sm:$0xff]
        %v981 = vld [vmem:[#allocation2 + $0x38] sm:$0xff]
        %v982 = vld [vmem:[#allocation2 + $0x48] sm:$0xff]
        %v983 = vld [vmem:[#allocation2 + $0x50] sm:$0xff]
        %v984 = vld [vmem:[#allocation2 + $0x60] sm:$0xff]
        %v985 = vld [vmem:[#allocation2 + $0x68] sm:$0xff]
        %v986 = vld [vmem:[#allocation2 + $0x78] sm:$0xff]
        %v987 = vld [vmem:[#allocation2 + $0x80] sm:$0xff]
        %v988 = vld [vmem:[#allocation2 + $0x90] sm:$0xff]
        %v989 = vld [vmem:[#allocation2 + $0x98] sm:$0xff]
        %v990 = vld [vmem:[#allocation2 + $0xa8] sm:$0xff]
        %v991 = vld [vmem:[#allocation2 + $0xb0] sm:$0xff]
        %v992 = vpack.c.bf16 %v977, %v976
        %v993 = vpack.c.bf16 %v979, %v978
        %v994 = vpack.c.bf16 %v981, %v980
        %v995 = vpack.c.bf16 %v983, %v982
        %v996 = vpack.c.bf16 %v985, %v984
        %v997 = vpack.c.bf16 %v987, %v986
        %v998 = vpack.c.bf16 %v989, %v988
        %v999 = vpack.c.bf16 %v991, %v990
        %v1000 = vld [vmem:[%s4] sm:$0xf]
        %v1001 = vld [vmem:[#allocation2 + $0x1] sm:$0xff]
        %v1002 = vld [vmem:[#allocation2 + $0x9] sm:$0xff]
        %v1003 = vld [vmem:[#allocation2 + $0x19] sm:$0xff]
        %v1004 = vld [vmem:[#allocation2 + $0x21] sm:$0xff]
        %v1005 = vld [vmem:[#allocation2 + $0x31] sm:$0xff]
        %v1006 = vld [vmem:[#allocation2 + $0x39] sm:$0xff]
        %v1007 = vld [vmem:[#allocation2 + $0x49] sm:$0xff]
        %v1008 = vld [vmem:[#allocation2 + $0x51] sm:$0xff]
        %v1009 = vld [vmem:[#allocation2 + $0x61] sm:$0xff]
        %v1010 = vld [vmem:[#allocation2 + $0x69] sm:$0xff]
        %v1011 = vld [vmem:[#allocation2 + $0x79] sm:$0xff]
        %v1012 = vld [vmem:[#allocation2 + $0x81] sm:$0xff]
        %v1013 = vld [vmem:[#allocation2 + $0x91] sm:$0xff]
        %v1014 = vld [vmem:[#allocation2 + $0x99] sm:$0xff]
        %v1015 = vld [vmem:[#allocation2 + $0xa9] sm:$0xff]
        %v1016 = vld [vmem:[#allocation2 + $0xb1] sm:$0xff]
        %v1017 = vpack.c.bf16 %v1002, %v1001
        %v1018 = vpack.c.bf16 %v1004, %v1003
        %v1019 = vpack.c.bf16 %v1006, %v1005
        %v1020 = vpack.c.bf16 %v1008, %v1007
        %v1021 = vpack.c.bf16 %v1010, %v1009
        %v1022 = vpack.c.bf16 %v1012, %v1011
        %v1023 = vpack.c.bf16 %v1014, %v1013
        %v1024 = vpack.c.bf16 %v1016, %v1015
        %s1025 = scalar_lea.vmem %s4, 4
        %v1026 = vld [vmem:[%s1025] sm:$0xf]
        %v1028 = vsel %vm924, %v1017, 0
        %v1031 = vsel %vm924, %v1018, 0
        %v1034 = vsel %vm924, %v1019, 0
        %v1037 = vsel %vm924, %v1020, 0
        %v1040 = vsel %vm924, %v1021, 0
        %v1043 = vsel %vm924, %v1022, 0
        %v1046 = vsel %vm924, %v1023, 0
        %v1049 = vsel %vm924, %v1024, 0
        %vm1051 = vcmask 1043456
        %v1053 = vsel %vm1051, %v1026, 0
        %1055 = vmatprep.subr.bf16.mxu0 0
        %1056 = vmatpush1.bf16.msra.mxu0 %v1053
        %1057 = vmatprep.subr.bf16.mxu0 0
        %1058 = vmatpush1.bf16.msra.mxu0 0
        %1059 = vmatprep.subr.bf16.mxu0 0
        %1060 = vmatpush1.bf16.msra.mxu0 0
        %1061 = vmatprep.subr.bf16.mxu0 0
        %1062 = vmatpush1.bf16.msra.mxu0 0
        %1063 = vmatprep.subr.bf16.mxu0 0
        %1064 = vmatpush1.bf16.msra.mxu0 0
        %1065 = vmatprep.subr.bf16.mxu0 0
        %1066 = vmatpush1.bf16.msra.mxu0 0
        %1067 = vmatprep.subr.bf16.mxu0 0
        %1068 = vmatpush1.bf16.msra.mxu0 0
        %1069 = vmatprep.subr.bf16.mxu0 0
        %1070 = vmatpush1.bf16.msra.mxu0 0
        %1071 = vmatprep.subr.bf16.mxu0 0
        %1072 = vmatpush1.bf16.msra.mxu0 0
        %1073 = vmatprep.subr.bf16.mxu0 0
        %1074 = vmatpush1.bf16.msra.mxu0 0
        %1075 = vmatprep.subr.bf16.mxu0 0
        %1076 = vmatpush1.bf16.msra.mxu0 0
        %1077 = vmatprep.subr.bf16.mxu0 0
        %1078 = vmatpush1.bf16.msra.mxu0 0
        %1079 = vmatprep.subr.bf16.mxu0 0
        %1080 = vmatpush1.bf16.msra.mxu0 0
        %1081 = vmatprep.subr.bf16.mxu0 0
        %1082 = vmatpush1.bf16.msra.mxu0 0
        %1083 = vmatprep.subr.bf16.mxu0 0
        %1084 = vmatpush1.bf16.msra.mxu0 0
        %1085 = vmatprep.subr.bf16.mxu0 0
        %1086 = vmatpush1.bf16.msra.mxu0 0
        %1087 = vmatprep.mubr.bf16.mxu0 0
        %1088 = vmatmul.mubr.bf16.gmra.mrb[0].mxu0 %v1028
        %v1089 = vpop.f32.mrb[0].mxu0
        %v1090 = vadd.f32 0.0, %v1089
        %v1091 = vpop.f32.mrb[0].mxu0
        %v1092 = vpop.f32.mrb[0].mxu0
        %v1093 = vadd.f32 0.0, %v1092
        %v1094 = vpop.f32.mrb[0].mxu0
        %1095 = vmatprep.mubr.bf16.mxu0 0
        %1096 = vmatmul.mubr.bf16.gmra.mrb[0].mxu0 %v1031
        %v1097 = vpop.f32.mrb[0].mxu0
        %v1098 = vadd.f32 0.0, %v1097
        %v1099 = vpop.f32.mrb[0].mxu0
        %v1100 = vpop.f32.mrb[0].mxu0
        %v1101 = vadd.f32 0.0, %v1100
        %v1102 = vpop.f32.mrb[0].mxu0
        %1103 = vmatprep.mubr.bf16.mxu0 0
        %1104 = vmatmul.mubr.bf16.gmra.mrb[0].mxu0 %v1034
        %v1105 = vpop.f32.mrb[0].mxu0
        %v1106 = vadd.f32 0.0, %v1105
        %v1107 = vpop.f32.mrb[0].mxu0
        %v1108 = vpop.f32.mrb[0].mxu0
        %v1109 = vadd.f32 0.0, %v1108
        %v1110 = vpop.f32.mrb[0].mxu0
        %1111 = vmatprep.mubr.bf16.mxu0 0
        %1112 = vmatmul.mubr.bf16.gmra.mrb[0].mxu0 %v1037
        %v1113 = vpop.f32.mrb[0].mxu0
        %v1114 = vadd.f32 0.0, %v1113
        %v1115 = vpop.f32.mrb[0].mxu0
        %v1116 = vpop.f32.mrb[0].mxu0
        %v1117 = vadd.f32 0.0, %v1116
        %v1118 = vpop.f32.mrb[0].mxu0
        %1119 = vmatprep.mubr.bf16.mxu0 0
        %1120 = vmatmul.mubr.bf16.gmra.mrb[0].mxu0 %v1040
        %v1121 = vpop.f32.mrb[0].mxu0
        %v1122 = vadd.f32 0.0, %v1121
        %v1123 = vpop.f32.mrb[0].mxu0
        %v1124 = vpop.f32.mrb[0].mxu0
        %v1125 = vadd.f32 0.0, %v1124
        %v1126 = vpop.f32.mrb[0].mxu0
        %1127 = vmatprep.mubr.bf16.mxu0 0
        %1128 = vmatmul.mubr.bf16.gmra.mrb[0].mxu0 %v1043
        %v1129 = vpop.f32.mrb[0].mxu0
        %v1130 = vadd.f32 0.0, %v1129
        %v1131 = vpop.f32.mrb[0].mxu0
        %v1132 = vpop.f32.mrb[0].mxu0
        %v1133 = vadd.f32 0.0, %v1132
        %v1134 = vpop.f32.mrb[0].mxu0
        %1135 = vmatprep.mubr.bf16.mxu0 0
        %1136 = vmatmul.mubr.bf16.gmra.mrb[0].mxu0 %v1046
        %v1137 = vpop.f32.mrb[0].mxu0
        %v1138 = vadd.f32 0.0, %v1137
        %v1139 = vpop.f32.mrb[0].mxu0
        %v1140 = vpop.f32.mrb[0].mxu0
        %v1141 = vadd.f32 0.0, %v1140
        %v1142 = vpop.f32.mrb[0].mxu0
        %1143 = vmatprep.mubr.bf16.mxu0 0
        %1144 = vmatmul.mubr.bf16.gmra.mrb[0].mxu0 %v1049
        %v1145 = vpop.f32.mrb[0].mxu0
        %v1146 = vadd.f32 0.0, %v1145
        %v1147 = vpop.f32.mrb[0].mxu0
        %v1148 = vpop.f32.mrb[0].mxu0
        %v1149 = vadd.f32 0.0, %v1148
        %v1150 = vpop.f32.mrb[0].mxu0
        %1151 = vdwg.mxu0
        %v1153 = vsel %vm924, %v992, 0
        %v1156 = vsel %vm924, %v993, 0
        %v1159 = vsel %vm924, %v994, 0
        %v1162 = vsel %vm924, %v995, 0
        %v1165 = vsel %vm924, %v996, 0
        %v1168 = vsel %vm924, %v997, 0
        %v1171 = vsel %vm924, %v998, 0
        %v1174 = vsel %vm924, %v999, 0
        %v1177 = vsel %vm1051, %v1000, 0
        %1179 = vmatprep.subr.bf16.mxu0 0
        %1180 = vmatpush1.bf16.msra.mxu0 %v1177
        %1181 = vmatprep.subr.bf16.mxu0 0
        %1182 = vmatpush1.bf16.msra.mxu0 0
        %1183 = vmatprep.subr.bf16.mxu0 0
        %1184 = vmatpush1.bf16.msra.mxu0 0
        %1185 = vmatprep.subr.bf16.mxu0 0
        %1186 = vmatpush1.bf16.msra.mxu0 0
        %1187 = vmatprep.subr.bf16.mxu0 0
        %1188 = vmatpush1.bf16.msra.mxu0 0
        %1189 = vmatprep.subr.bf16.mxu0 0
        %1190 = vmatpush1.bf16.msra.mxu0 0
        %1191 = vmatprep.subr.bf16.mxu0 0
        %1192 = vmatpush1.bf16.msra.mxu0 0
        %1193 = vmatprep.subr.bf16.mxu0 0
        %1194 = vmatpush1.bf16.msra.mxu0 0
        %1195 = vmatprep.subr.bf16.mxu0 0
        %1196 = vmatpush1.bf16.msra.mxu0 0
        %1197 = vmatprep.subr.bf16.mxu0 0
        %1198 = vmatpush1.bf16.msra.mxu0 0
        %1199 = vmatprep.subr.bf16.mxu0 0
        %1200 = vmatpush1.bf16.msra.mxu0 0
        %1201 = vmatprep.subr.bf16.mxu0 0
        %1202 = vmatpush1.bf16.msra.mxu0 0
        %1203 = vmatprep.subr.bf16.mxu0 0
        %1204 = vmatpush1.bf16.msra.mxu0 0
        %1205 = vmatprep.subr.bf16.mxu0 0
        %1206 = vmatpush1.bf16.msra.mxu0 0
        %1207 = vmatprep.subr.bf16.mxu0 0
        %1208 = vmatpush1.bf16.msra.mxu0 0
        %1209 = vmatprep.subr.bf16.mxu0 0
        %1210 = vmatpush1.bf16.msra.mxu0 0
        %1211 = vmatprep.mubr.bf16.mxu0 0
        %1212 = vmatmul.mubr.bf16.gmra.mrb[0].mxu0 %v1153
        %v1213 = vpop.f32.mrb[0].mxu0
        %v1214 = vadd.f32 %v1090, %v1213
        %v1215 = vpop.f32.mrb[0].mxu0
        %v1216 = vpop.f32.mrb[0].mxu0
        %v1217 = vadd.f32 %v1093, %v1216
        %v1218 = vpop.f32.mrb[0].mxu0
        %1219 = vmatprep.mubr.bf16.mxu0 0
        %1220 = vmatmul.mubr.bf16.gmra.mrb[0].mxu0 %v1156
        %v1221 = vpop.f32.mrb[0].mxu0
        %v1222 = vadd.f32 %v1098, %v1221
        %v1223 = vpop.f32.mrb[0].mxu0
        %v1224 = vpop.f32.mrb[0].mxu0
        %v1225 = vadd.f32 %v1101, %v1224
        %v1226 = vpop.f32.mrb[0].mxu0
        %1227 = vmatprep.mubr.bf16.mxu0 0
        %1228 = vmatmul.mubr.bf16.gmra.mrb[0].mxu0 %v1159
        %v1229 = vpop.f32.mrb[0].mxu0
        %v1230 = vadd.f32 %v1106, %v1229
        %v1231 = vpop.f32.mrb[0].mxu0
        %v1232 = vpop.f32.mrb[0].mxu0
        %v1233 = vadd.f32 %v1109, %v1232
        %v1234 = vpop.f32.mrb[0].mxu0
        %1235 = vmatprep.mubr.bf16.mxu0 0
        %1236 = vmatmul.mubr.bf16.gmra.mrb[0].mxu0 %v1162
        %v1237 = vpop.f32.mrb[0].mxu0
        %v1238 = vadd.f32 %v1114, %v1237
        %v1239 = vpop.f32.mrb[0].mxu0
        %v1240 = vpop.f32.mrb[0].mxu0
        %v1241 = vadd.f32 %v1117, %v1240
        %v1242 = vpop.f32.mrb[0].mxu0
        %1243 = vmatprep.mubr.bf16.mxu0 0
        %1244 = vmatmul.mubr.bf16.gmra.mrb[0].mxu0 %v1165
        %v1245 = vpop.f32.mrb[0].mxu0
        %v1246 = vadd.f32 %v1122, %v1245
        %v1247 = vpop.f32.mrb[0].mxu0
        %v1248 = vpop.f32.mrb[0].mxu0
        %v1249 = vadd.f32 %v1125, %v1248
        %v1250 = vpop.f32.mrb[0].mxu0
        %1251 = vmatprep.mubr.bf16.mxu0 0
        %1252 = vmatmul.mubr.bf16.gmra.mrb[0].mxu0 %v1168
        %v1253 = vpop.f32.mrb[0].mxu0
        %v1254 = vadd.f32 %v1130, %v1253
        %v1255 = vpop.f32.mrb[0].mxu0
        %v1256 = vpop.f32.mrb[0].mxu0
        %v1257 = vadd.f32 %v1133, %v1256
        %v1258 = vpop.f32.mrb[0].mxu0
        %1259 = vmatprep.mubr.bf16.mxu0 0
        %1260 = vmatmul.mubr.bf16.gmra.mrb[0].mxu0 %v1171
        %v1261 = vpop.f32.mrb[0].mxu0
        %v1262 = vadd.f32 %v1138, %v1261
        %v1263 = vpop.f32.mrb[0].mxu0
        %v1264 = vpop.f32.mrb[0].mxu0
        %v1265 = vadd.f32 %v1141, %v1264
        %v1266 = vpop.f32.mrb[0].mxu0
        %1267 = vmatprep.mubr.bf16.mxu0 0
        %1268 = vmatmul.mubr.bf16.gmra.mrb[0].mxu0 %v1174
        %v1269 = vpop.f32.mrb[0].mxu0
        %v1270 = vadd.f32 %v1146, %v1269
        %v1271 = vpop.f32.mrb[0].mxu0
        %v1272 = vpop.f32.mrb[0].mxu0
        %v1273 = vadd.f32 %v1149, %v1272
        %v1274 = vpop.f32.mrb[0].mxu0
        %1275 = vdwg.mxu0
        %v1276 = vld [vmem:[#allocation2 + $0x2] sm:$0xff]
        %v1277 = vld [vmem:[#allocation2 + $0xa] sm:$0xff]
        %v1278 = vld [vmem:[#allocation2 + $0x1a] sm:$0xff]
        %v1279 = vld [vmem:[#allocation2 + $0x22] sm:$0xff]
        %v1280 = vld [vmem:[#allocation2 + $0x32] sm:$0xff]
        %v1281 = vld [vmem:[#allocation2 + $0x3a] sm:$0xff]
        %v1282 = vld [vmem:[#allocation2 + $0x4a] sm:$0xff]
        %v1283 = vld [vmem:[#allocation2 + $0x52] sm:$0xff]
        %v1284 = vld [vmem:[#allocation2 + $0x62] sm:$0xff]
        %v1285 = vld [vmem:[#allocation2 + $0x6a] sm:$0xff]
        %v1286 = vld [vmem:[#allocation2 + $0x7a] sm:$0xff]
        %v1287 = vld [vmem:[#allocation2 + $0x82] sm:$0xff]
        %v1288 = vld [vmem:[#allocation2 + $0x92] sm:$0xff]
        %v1289 = vld [vmem:[#allocation2 + $0x9a] sm:$0xff]
        %v1290 = vld [vmem:[#allocation2 + $0xaa] sm:$0xff]
        %v1291 = vld [vmem:[#allocation2 + $0xb2] sm:$0xff]
        %v1292 = vpack.c.bf16 %v1277, %v1276
        %v1293 = vpack.c.bf16 %v1279, %v1278
        %v1294 = vpack.c.bf16 %v1281, %v1280
        %v1295 = vpack.c.bf16 %v1283, %v1282
        %v1296 = vpack.c.bf16 %v1285, %v1284
        %v1297 = vpack.c.bf16 %v1287, %v1286
        %v1298 = vpack.c.bf16 %v1289, %v1288
        %v1299 = vpack.c.bf16 %v1291, %v1290
        %s1300 = scalar_lea.vmem %s4, 8
        %v1301 = vld [vmem:[%s1300] sm:$0xf]
        %v1303 = vsel %vm924, %v1292, 0
        %v1306 = vsel %vm924, %v1293, 0
        %v1309 = vsel %vm924, %v1294, 0
        %v1312 = vsel %vm924, %v1295, 0
        %v1315 = vsel %vm924, %v1296, 0
        %v1318 = vsel %vm924, %v1297, 0
        %v1321 = vsel %vm924, %v1298, 0
        %v1324 = vsel %vm924, %v1299, 0
        %v1327 = vsel %vm1051, %v1301, 0
        %1329 = vmatprep.subr.bf16.mxu0 0
        %1330 = vmatpush1.bf16.msra.mxu0 %v1327
        %1331 = vmatprep.subr.bf16.mxu0 0
        %1332 = vmatpush1.bf16.msra.mxu0 0
        %1333 = vmatprep.subr.bf16.mxu0 0
        %1334 = vmatpush1.bf16.msra.mxu0 0
        %1335 = vmatprep.subr.bf16.mxu0 0
        %1336 = vmatpush1.bf16.msra.mxu0 0
        %1337 = vmatprep.subr.bf16.mxu0 0
        %1338 = vmatpush1.bf16.msra.mxu0 0
        %1339 = vmatprep.subr.bf16.mxu0 0
        %1340 = vmatpush1.bf16.msra.mxu0 0
        %1341 = vmatprep.subr.bf16.mxu0 0
        %1342 = vmatpush1.bf16.msra.mxu0 0
        %1343 = vmatprep.subr.bf16.mxu0 0
        %1344 = vmatpush1.bf16.msra.mxu0 0
        %1345 = vmatprep.subr.bf16.mxu0 0
        %1346 = vmatpush1.bf16.msra.mxu0 0
        %1347 = vmatprep.subr.bf16.mxu0 0
        %1348 = vmatpush1.bf16.msra.mxu0 0
        %1349 = vmatprep.subr.bf16.mxu0 0
        %1350 = vmatpush1.bf16.msra.mxu0 0
        %1351 = vmatprep.subr.bf16.mxu0 0
        %1352 = vmatpush1.bf16.msra.mxu0 0
        %1353 = vmatprep.subr.bf16.mxu0 0
        %1354 = vmatpush1.bf16.msra.mxu0 0
        %1355 = vmatprep.subr.bf16.mxu0 0
        %1356 = vmatpush1.bf16.msra.mxu0 0
        %1357 = vmatprep.subr.bf16.mxu0 0
        %1358 = vmatpush1.bf16.msra.mxu0 0
        %1359 = vmatprep.subr.bf16.mxu0 0
        %1360 = vmatpush1.bf16.msra.mxu0 0
        %1361 = vmatprep.mubr.bf16.mxu0 0
        %1362 = vmatmul.mubr.bf16.gmra.mrb[0].mxu0 %v1303
        %v1363 = vpop.f32.mrb[0].mxu0
        %v1364 = vadd.f32 0.0, %v1363
        %v1365 = vpop.f32.mrb[0].mxu0
        %v1366 = vpop.f32.mrb[0].mxu0
        %v1367 = vadd.f32 0.0, %v1366
        %v1368 = vpop.f32.mrb[0].mxu0
        %1369 = vmatprep.mubr.bf16.mxu0 0
        %1370 = vmatmul.mubr.bf16.gmra.mrb[0].mxu0 %v1306
        %v1371 = vpop.f32.mrb[0].mxu0
        %v1372 = vadd.f32 0.0, %v1371
        %v1373 = vpop.f32.mrb[0].mxu0
        %v1374 = vpop.f32.mrb[0].mxu0
        %v1375 = vadd.f32 0.0, %v1374
        %v1376 = vpop.f32.mrb[0].mxu0
        %1377 = vmatprep.mubr.bf16.mxu0 0
        %1378 = vmatmul.mubr.bf16.gmra.mrb[0].mxu0 %v1309
        %v1379 = vpop.f32.mrb[0].mxu0
        %v1380 = vadd.f32 0.0, %v1379
        %v1381 = vpop.f32.mrb[0].mxu0
        %v1382 = vpop.f32.mrb[0].mxu0
        %v1383 = vadd.f32 0.0, %v1382
        %v1384 = vpop.f32.mrb[0].mxu0
        %1385 = vmatprep.mubr.bf16.mxu0 0
        %1386 = vmatmul.mubr.bf16.gmra.mrb[0].mxu0 %v1312
        %v1387 = vpop.f32.mrb[0].mxu0
        %v1388 = vadd.f32 0.0, %v1387
        %v1389 = vpop.f32.mrb[0].mxu0
        %v1390 = vpop.f32.mrb[0].mxu0
        %v1391 = vadd.f32 0.0, %v1390
        %v1392 = vpop.f32.mrb[0].mxu0
        %1393 = vmatprep.mubr.bf16.mxu0 0
        %1394 = vmatmul.mubr.bf16.gmra.mrb[0].mxu0 %v1315
        %v1395 = vpop.f32.mrb[0].mxu0
        %v1396 = vadd.f32 0.0, %v1395
        %v1397 = vpop.f32.mrb[0].mxu0
        %v1398 = vpop.f32.mrb[0].mxu0
        %v1399 = vadd.f32 0.0, %v1398
        %v1400 = vpop.f32.mrb[0].mxu0
        %1401 = vmatprep.mubr.bf16.mxu0 0
        %1402 = vmatmul.mubr.bf16.gmra.mrb[0].mxu0 %v1318
        %v1403 = vpop.f32.mrb[0].mxu0
        %v1404 = vadd.f32 0.0, %v1403
        %v1405 = vpop.f32.mrb[0].mxu0
        %v1406 = vpop.f32.mrb[0].mxu0
        %v1407 = vadd.f32 0.0, %v1406
        %v1408 = vpop.f32.mrb[0].mxu0
        %1409 = vmatprep.mubr.bf16.mxu0 0
        %1410 = vmatmul.mubr.bf16.gmra.mrb[0].mxu0 %v1321
        %v1411 = vpop.f32.mrb[0].mxu0
        %v1412 = vadd.f32 0.0, %v1411
        %v1413 = vpop.f32.mrb[0].mxu0
        %v1414 = vpop.f32.mrb[0].mxu0
        %v1415 = vadd.f32 0.0, %v1414
        %v1416 = vpop.f32.mrb[0].mxu0
        %1417 = vmatprep.mubr.bf16.mxu0 0
        %1418 = vmatmul.mubr.bf16.gmra.mrb[0].mxu0 %v1324
        %v1419 = vpop.f32.mrb[0].mxu0
        %v1420 = vadd.f32 0.0, %v1419
        %v1421 = vpop.f32.mrb[0].mxu0
        %v1422 = vpop.f32.mrb[0].mxu0
        %v1423 = vadd.f32 0.0, %v1422
        %v1424 = vpop.f32.mrb[0].mxu0
        %1425 = vdwg.mxu0
        %v1426 = vadd.f32 %v1214, %v1364
        %v1427 = vadd.f32 %v1217, %v1367
        %v1428 = vadd.f32 %v1222, %v1372
        %v1429 = vadd.f32 %v1225, %v1375
        %v1430 = vadd.f32 %v1230, %v1380
        %v1431 = vadd.f32 %v1233, %v1383
        %v1432 = vadd.f32 %v1238, %v1388
        %v1433 = vadd.f32 %v1241, %v1391
        %v1434 = vadd.f32 %v1246, %v1396
        %v1435 = vadd.f32 %v1249, %v1399
        %v1436 = vadd.f32 %v1254, %v1404
        %v1437 = vadd.f32 %v1257, %v1407
        %v1438 = vadd.f32 %v1262, %v1412
        %v1439 = vadd.f32 %v1265, %v1415
        %v1440 = vadd.f32 %v1270, %v1420
        %v1441 = vadd.f32 %v1273, %v1423
        %s1442 = scalar_lea.vmem [#allocation2], 24
        %v1443 = vld [vmem:[%s1442] sm:$0xff]
        %v1444 = vld [vmem:[%s1442 + $0x8] sm:$0xff]
        %v1445 = vld [vmem:[%s1442 + $0x18] sm:$0xff]
        %v1446 = vld [vmem:[%s1442 + $0x20] sm:$0xff]
        %v1447 = vld [vmem:[%s1442 + $0x30] sm:$0xff]
        %v1448 = vld [vmem:[%s1442 + $0x38] sm:$0xff]
        %v1449 = vld [vmem:[%s1442 + $0x48] sm:$0xff]
        %v1450 = vld [vmem:[%s1442 + $0x50] sm:$0xff]
        %v1451 = vld [vmem:[%s1442 + $0x60] sm:$0xff]
        %v1452 = vld [vmem:[%s1442 + $0x68] sm:$0xff]
        %v1453 = vld [vmem:[%s1442 + $0x78] sm:$0xff]
        %v1454 = vld [vmem:[%s1442 + $0x80] sm:$0xff]
        %v1455 = vld [vmem:[%s1442 + $0x90] sm:$0xff]
        %v1456 = vld [vmem:[%s1442 + $0x98] sm:$0xff]
        %v1457 = vld [vmem:[%s1442 + $0xa8] sm:$0xff]
        %v1458 = vld [vmem:[%s1442 + $0xb0] sm:$0xff]
        %v1459 = vpack.c.bf16 %v1444, %v1443
        %v1460 = vpack.c.bf16 %v1446, %v1445
        %v1461 = vpack.c.bf16 %v1448, %v1447
        %v1462 = vpack.c.bf16 %v1450, %v1449
        %v1463 = vpack.c.bf16 %v1452, %v1451
        %v1464 = vpack.c.bf16 %v1454, %v1453
        %v1465 = vpack.c.bf16 %v1456, %v1455
        %v1466 = vpack.c.bf16 %v1458, %v1457
        %s1467 = scalar_lea.vmem %s4, 12
        %v1468 = vld [vmem:[%s1467] sm:$0xf]
        %v1470 = vsel %vm924, %v1459, 0
        %v1473 = vsel %vm924, %v1460, 0
        %v1476 = vsel %vm924, %v1461, 0
        %v1479 = vsel %vm924, %v1462, 0
        %v1482 = vsel %vm924, %v1463, 0
        %v1485 = vsel %vm924, %v1464, 0
        %v1488 = vsel %vm924, %v1465, 0
        %v1491 = vsel %vm924, %v1466, 0
        %v1494 = vsel %vm1051, %v1468, 0
        %1496 = vmatprep.subr.bf16.mxu0 0
        %1497 = vmatpush1.bf16.msra.mxu0 %v1494
        %1498 = vmatprep.subr.bf16.mxu0 0
        %1499 = vmatpush1.bf16.msra.mxu0 0
        %1500 = vmatprep.subr.bf16.mxu0 0
        %1501 = vmatpush1.bf16.msra.mxu0 0
        %1502 = vmatprep.subr.bf16.mxu0 0
        %1503 = vmatpush1.bf16.msra.mxu0 0
        %1504 = vmatprep.subr.bf16.mxu0 0
        %1505 = vmatpush1.bf16.msra.mxu0 0
        %1506 = vmatprep.subr.bf16.mxu0 0
        %1507 = vmatpush1.bf16.msra.mxu0 0
        %1508 = vmatprep.subr.bf16.mxu0 0
        %1509 = vmatpush1.bf16.msra.mxu0 0
        %1510 = vmatprep.subr.bf16.mxu0 0
        %1511 = vmatpush1.bf16.msra.mxu0 0
        %1512 = vmatprep.subr.bf16.mxu0 0
        %1513 = vmatpush1.bf16.msra.mxu0 0
        %1514 = vmatprep.subr.bf16.mxu0 0
        %1515 = vmatpush1.bf16.msra.mxu0 0
        %1516 = vmatprep.subr.bf16.mxu0 0
        %1517 = vmatpush1.bf16.msra.mxu0 0
        %1518 = vmatprep.subr.bf16.mxu0 0
        %1519 = vmatpush1.bf16.msra.mxu0 0
        %1520 = vmatprep.subr.bf16.mxu0 0
        %1521 = vmatpush1.bf16.msra.mxu0 0
        %1522 = vmatprep.subr.bf16.mxu0 0
        %1523 = vmatpush1.bf16.msra.mxu0 0
        %1524 = vmatprep.subr.bf16.mxu0 0
        %1525 = vmatpush1.bf16.msra.mxu0 0
        %1526 = vmatprep.subr.bf16.mxu0 0
        %1527 = vmatpush1.bf16.msra.mxu0 0
        %1528 = vmatprep.mubr.bf16.mxu0 0
        %1529 = vmatmul.mubr.bf16.gmra.mrb[0].mxu0 %v1470
        %v1530 = vpop.f32.mrb[0].mxu0
        %v1531 = vadd.f32 0.0, %v1530
        %v1532 = vpop.f32.mrb[0].mxu0
        %v1533 = vpop.f32.mrb[0].mxu0
        %v1534 = vadd.f32 0.0, %v1533
        %v1535 = vpop.f32.mrb[0].mxu0
        %1536 = vmatprep.mubr.bf16.mxu0 0
        %1537 = vmatmul.mubr.bf16.gmra.mrb[0].mxu0 %v1473
        %v1538 = vpop.f32.mrb[0].mxu0
        %v1539 = vadd.f32 0.0, %v1538
        %v1540 = vpop.f32.mrb[0].mxu0
        %v1541 = vpop.f32.mrb[0].mxu0
        %v1542 = vadd.f32 0.0, %v1541
        %v1543 = vpop.f32.mrb[0].mxu0
        %1544 = vmatprep.mubr.bf16.mxu0 0
        %1545 = vmatmul.mubr.bf16.gmra.mrb[0].mxu0 %v1476
        %v1546 = vpop.f32.mrb[0].mxu0
        %v1547 = vadd.f32 0.0, %v1546
        %v1548 = vpop.f32.mrb[0].mxu0
        %v1549 = vpop.f32.mrb[0].mxu0
        %v1550 = vadd.f32 0.0, %v1549
        %v1551 = vpop.f32.mrb[0].mxu0
        %1552 = vmatprep.mubr.bf16.mxu0 0
        %1553 = vmatmul.mubr.bf16.gmra.mrb[0].mxu0 %v1479
        %v1554 = vpop.f32.mrb[0].mxu0
        %v1555 = vadd.f32 0.0, %v1554
        %v1556 = vpop.f32.mrb[0].mxu0
        %v1557 = vpop.f32.mrb[0].mxu0
        %v1558 = vadd.f32 0.0, %v1557
        %v1559 = vpop.f32.mrb[0].mxu0
        %1560 = vmatprep.mubr.bf16.mxu0 0
        %1561 = vmatmul.mubr.bf16.gmra.mrb[0].mxu0 %v1482
        %v1562 = vpop.f32.mrb[0].mxu0
        %v1563 = vadd.f32 0.0, %v1562
        %v1564 = vpop.f32.mrb[0].mxu0
        %v1565 = vpop.f32.mrb[0].mxu0
        %v1566 = vadd.f32 0.0, %v1565
        %v1567 = vpop.f32.mrb[0].mxu0
        %1568 = vmatprep.mubr.bf16.mxu0 0
        %1569 = vmatmul.mubr.bf16.gmra.mrb[0].mxu0 %v1485
        %v1570 = vpop.f32.mrb[0].mxu0
        %v1571 = vadd.f32 0.0, %v1570
        %v1572 = vpop.f32.mrb[0].mxu0
        %v1573 = vpop.f32.mrb[0].mxu0
        %v1574 = vadd.f32 0.0, %v1573
        %v1575 = vpop.f32.mrb[0].mxu0
        %1576 = vmatprep.mubr.bf16.mxu0 0
        %1577 = vmatmul.mubr.bf16.gmra.mrb[0].mxu0 %v1488
        %v1578 = vpop.f32.mrb[0].mxu0
        %v1579 = vadd.f32 0.0, %v1578
        %v1580 = vpop.f32.mrb[0].mxu0
        %v1581 = vpop.f32.mrb[0].mxu0
        %v1582 = vadd.f32 0.0, %v1581
        %v1583 = vpop.f32.mrb[0].mxu0
        %1584 = vmatprep.mubr.bf16.mxu0 0
        %1585 = vmatmul.mubr.bf16.gmra.mrb[0].mxu0 %v1491
        %v1586 = vpop.f32.mrb[0].mxu0
        %v1587 = vadd.f32 0.0, %v1586
        %v1588 = vpop.f32.mrb[0].mxu0
        %v1589 = vpop.f32.mrb[0].mxu0
        %v1590 = vadd.f32 0.0, %v1589
        %v1591 = vpop.f32.mrb[0].mxu0
        %1592 = vdwg.mxu0
        %v1593 = vadd.f32 %v1426, %v1531
        %v1594 = vadd.f32 %v1427, %v1534
        %v1595 = vadd.f32 %v1428, %v1539
        %v1596 = vadd.f32 %v1429, %v1542
        %v1597 = vadd.f32 %v1430, %v1547
        %v1598 = vadd.f32 %v1431, %v1550
        %v1599 = vadd.f32 %v1432, %v1555
        %v1600 = vadd.f32 %v1433, %v1558
        %v1601 = vadd.f32 %v1434, %v1563
        %v1602 = vadd.f32 %v1435, %v1566
        %v1603 = vadd.f32 %v1436, %v1571
        %v1604 = vadd.f32 %v1437, %v1574
        %v1605 = vadd.f32 %v1438, %v1579
        %v1606 = vadd.f32 %v1439, %v1582
        %v1607 = vadd.f32 %v1440, %v1587
        %v1608 = vadd.f32 %v1441, %v1590
        %v1609 = vld [vmem:[%s1442 + $0x1] sm:$0xff]
        %v1610 = vld [vmem:[%s1442 + $0x9] sm:$0xff]
        %v1611 = vld [vmem:[%s1442 + $0x19] sm:$0xff]
        %v1612 = vld [vmem:[%s1442 + $0x21] sm:$0xff]
        %v1613 = vld [vmem:[%s1442 + $0x31] sm:$0xff]
        %v1614 = vld [vmem:[%s1442 + $0x39] sm:$0xff]
        %v1615 = vld [vmem:[%s1442 + $0x49] sm:$0xff]
        %v1616 = vld [vmem:[%s1442 + $0x51] sm:$0xff]
        %v1617 = vld [vmem:[%s1442 + $0x61] sm:$0xff]
        %v1618 = vld [vmem:[%s1442 + $0x69] sm:$0xff]
        %v1619 = vld [vmem:[%s1442 + $0x79] sm:$0xff]
        %v1620 = vld [vmem:[%s1442 + $0x81] sm:$0xff]
        %v1621 = vld [vmem:[%s1442 + $0x91] sm:$0xff]
        %v1622 = vld [vmem:[%s1442 + $0x99] sm:$0xff]
        %v1623 = vld [vmem:[%s1442 + $0xa9] sm:$0xff]
        %v1624 = vld [vmem:[%s1442 + $0xb1] sm:$0xff]
        %v1625 = vpack.c.bf16 %v1610, %v1609
        %v1626 = vpack.c.bf16 %v1612, %v1611
        %v1627 = vpack.c.bf16 %v1614, %v1613
        %v1628 = vpack.c.bf16 %v1616, %v1615
        %v1629 = vpack.c.bf16 %v1618, %v1617
        %v1630 = vpack.c.bf16 %v1620, %v1619
        %v1631 = vpack.c.bf16 %v1622, %v1621
        %v1632 = vpack.c.bf16 %v1624, %v1623
        %s1633 = scalar_lea.vmem %s4, 16
        %v1634 = vld [vmem:[%s1633] sm:$0xf]
        %v1636 = vsel %vm924, %v1625, 0
        %v1639 = vsel %vm924, %v1626, 0
        %v1642 = vsel %vm924, %v1627, 0
        %v1645 = vsel %vm924, %v1628, 0
        %v1648 = vsel %vm924, %v1629, 0
        %v1651 = vsel %vm924, %v1630, 0
        %v1654 = vsel %vm924, %v1631, 0
        %v1657 = vsel %vm924, %v1632, 0
        %v1660 = vsel %vm1051, %v1634, 0
        %1662 = vmatprep.subr.bf16.mxu0 0
        %1663 = vmatpush1.bf16.msra.mxu0 %v1660
        %1664 = vmatprep.subr.bf16.mxu0 0
        %1665 = vmatpush1.bf16.msra.mxu0 0
        %1666 = vmatprep.subr.bf16.mxu0 0
        %1667 = vmatpush1.bf16.msra.mxu0 0
        %1668 = vmatprep.subr.bf16.mxu0 0
        %1669 = vmatpush1.bf16.msra.mxu0 0
        %1670 = vmatprep.subr.bf16.mxu0 0
        %1671 = vmatpush1.bf16.msra.mxu0 0
        %1672 = vmatprep.subr.bf16.mxu0 0
        %1673 = vmatpush1.bf16.msra.mxu0 0
        %1674 = vmatprep.subr.bf16.mxu0 0
        %1675 = vmatpush1.bf16.msra.mxu0 0
        %1676 = vmatprep.subr.bf16.mxu0 0
        %1677 = vmatpush1.bf16.msra.mxu0 0
        %1678 = vmatprep.subr.bf16.mxu0 0
        %1679 = vmatpush1.bf16.msra.mxu0 0
        %1680 = vmatprep.subr.bf16.mxu0 0
        %1681 = vmatpush1.bf16.msra.mxu0 0
        %1682 = vmatprep.subr.bf16.mxu0 0
        %1683 = vmatpush1.bf16.msra.mxu0 0
        %1684 = vmatprep.subr.bf16.mxu0 0
        %1685 = vmatpush1.bf16.msra.mxu0 0
        %1686 = vmatprep.subr.bf16.mxu0 0
        %1687 = vmatpush1.bf16.msra.mxu0 0
        %1688 = vmatprep.subr.bf16.mxu0 0
        %1689 = vmatpush1.bf16.msra.mxu0 0
        %1690 = vmatprep.subr.bf16.mxu0 0
        %1691 = vmatpush1.bf16.msra.mxu0 0
        %1692 = vmatprep.subr.bf16.mxu0 0
        %1693 = vmatpush1.bf16.msra.mxu0 0
        %1694 = vmatprep.mubr.bf16.mxu0 0
        %1695 = vmatmul.mubr.bf16.gmra.mrb[0].mxu0 %v1636
        %v1696 = vpop.f32.mrb[0].mxu0
        %v1697 = vadd.f32 0.0, %v1696
        %v1698 = vpop.f32.mrb[0].mxu0
        %v1699 = vpop.f32.mrb[0].mxu0
        %v1700 = vadd.f32 0.0, %v1699
        %v1701 = vpop.f32.mrb[0].mxu0
        %1702 = vmatprep.mubr.bf16.mxu0 0
        %1703 = vmatmul.mubr.bf16.gmra.mrb[0].mxu0 %v1639
        %v1704 = vpop.f32.mrb[0].mxu0
        %v1705 = vadd.f32 0.0, %v1704
        %v1706 = vpop.f32.mrb[0].mxu0
        %v1707 = vpop.f32.mrb[0].mxu0
        %v1708 = vadd.f32 0.0, %v1707
        %v1709 = vpop.f32.mrb[0].mxu0
        %1710 = vmatprep.mubr.bf16.mxu0 0
        %1711 = vmatmul.mubr.bf16.gmra.mrb[0].mxu0 %v1642
        %v1712 = vpop.f32.mrb[0].mxu0
        %v1713 = vadd.f32 0.0, %v1712
        %v1714 = vpop.f32.mrb[0].mxu0
        %v1715 = vpop.f32.mrb[0].mxu0
        %v1716 = vadd.f32 0.0, %v1715
        %v1717 = vpop.f32.mrb[0].mxu0
        %1718 = vmatprep.mubr.bf16.mxu0 0
        %1719 = vmatmul.mubr.bf16.gmra.mrb[0].mxu0 %v1645
        %v1720 = vpop.f32.mrb[0].mxu0
        %v1721 = vadd.f32 0.0, %v1720
        %v1722 = vpop.f32.mrb[0].mxu0
        %v1723 = vpop.f32.mrb[0].mxu0
        %v1724 = vadd.f32 0.0, %v1723
        %v1725 = vpop.f32.mrb[0].mxu0
        %1726 = vmatprep.mubr.bf16.mxu0 0
        %1727 = vmatmul.mubr.bf16.gmra.mrb[0].mxu0 %v1648
        %v1728 = vpop.f32.mrb[0].mxu0
        %v1729 = vadd.f32 0.0, %v1728
        %v1730 = vpop.f32.mrb[0].mxu0
        %v1731 = vpop.f32.mrb[0].mxu0
        %v1732 = vadd.f32 0.0, %v1731
        %v1733 = vpop.f32.mrb[0].mxu0
        %1734 = vmatprep.mubr.bf16.mxu0 0
        %1735 = vmatmul.mubr.bf16.gmra.mrb[0].mxu0 %v1651
        %v1736 = vpop.f32.mrb[0].mxu0
        %v1737 = vadd.f32 0.0, %v1736
        %v1738 = vpop.f32.mrb[0].mxu0
        %v1739 = vpop.f32.mrb[0].mxu0
        %v1740 = vadd.f32 0.0, %v1739
        %v1741 = vpop.f32.mrb[0].mxu0
        %1742 = vmatprep.mubr.bf16.mxu0 0
        %1743 = vmatmul.mubr.bf16.gmra.mrb[0].mxu0 %v1654
        %v1744 = vpop.f32.mrb[0].mxu0
        %v1745 = vadd.f32 0.0, %v1744
        %v1746 = vpop.f32.mrb[0].mxu0
        %v1747 = vpop.f32.mrb[0].mxu0
        %v1748 = vadd.f32 0.0, %v1747
        %v1749 = vpop.f32.mrb[0].mxu0
        %1750 = vmatprep.mubr.bf16.mxu0 0
        %1751 = vmatmul.mubr.bf16.gmra.mrb[0].mxu0 %v1657
        %v1752 = vpop.f32.mrb[0].mxu0
        %v1753 = vadd.f32 0.0, %v1752
        %v1754 = vpop.f32.mrb[0].mxu0
        %v1755 = vpop.f32.mrb[0].mxu0
        %v1756 = vadd.f32 0.0, %v1755
        %v1757 = vpop.f32.mrb[0].mxu0
        %1758 = vdwg.mxu0
        %v1759 = vadd.f32 %v1593, %v1697
        %v1760 = vadd.f32 %v1594, %v1700
        %v1761 = vadd.f32 %v1595, %v1705
        %v1762 = vadd.f32 %v1596, %v1708
        %v1763 = vadd.f32 %v1597, %v1713
        %v1764 = vadd.f32 %v1598, %v1716
        %v1765 = vadd.f32 %v1599, %v1721
        %v1766 = vadd.f32 %v1600, %v1724
        %v1767 = vadd.f32 %v1601, %v1729
        %v1768 = vadd.f32 %v1602, %v1732
        %v1769 = vadd.f32 %v1603, %v1737
        %v1770 = vadd.f32 %v1604, %v1740
        %v1771 = vadd.f32 %v1605, %v1745
        %v1772 = vadd.f32 %v1606, %v1748
        %v1773 = vadd.f32 %v1607, %v1753
        %v1774 = vadd.f32 %v1608, %v1756
        %v1775 = vld [vmem:[%s1442 + $0x2] sm:$0xff]
        %v1776 = vld [vmem:[%s1442 + $0xa] sm:$0xff]
        %v1777 = vld [vmem:[%s1442 + $0x1a] sm:$0xff]
        %v1778 = vld [vmem:[%s1442 + $0x22] sm:$0xff]
        %v1779 = vld [vmem:[%s1442 + $0x32] sm:$0xff]
        %v1780 = vld [vmem:[%s1442 + $0x3a] sm:$0xff]
        %v1781 = vld [vmem:[%s1442 + $0x4a] sm:$0xff]
        %v1782 = vld [vmem:[%s1442 + $0x52] sm:$0xff]
        %v1783 = vld [vmem:[%s1442 + $0x62] sm:$0xff]
        %v1784 = vld [vmem:[%s1442 + $0x6a] sm:$0xff]
        %v1785 = vld [vmem:[%s1442 + $0x7a] sm:$0xff]
        %v1786 = vld [vmem:[%s1442 + $0x82] sm:$0xff]
        %v1787 = vld [vmem:[%s1442 + $0x92] sm:$0xff]
        %v1788 = vld [vmem:[%s1442 + $0x9a] sm:$0xff]
        %v1789 = vld [vmem:[%s1442 + $0xaa] sm:$0xff]
        %v1790 = vld [vmem:[%s1442 + $0xb2] sm:$0xff]
        %v1791 = vpack.c.bf16 %v1776, %v1775
        %v1792 = vpack.c.bf16 %v1778, %v1777
        %v1793 = vpack.c.bf16 %v1780, %v1779
        %v1794 = vpack.c.bf16 %v1782, %v1781
        %v1795 = vpack.c.bf16 %v1784, %v1783
        %v1796 = vpack.c.bf16 %v1786, %v1785
        %v1797 = vpack.c.bf16 %v1788, %v1787
        %v1798 = vpack.c.bf16 %v1790, %v1789
        %s1799 = scalar_lea.vmem %s4, 20
        %v1800 = vld [vmem:[%s1799] sm:$0xf]
        %v1802 = vsel %vm924, %v1791, 0
        %v1805 = vsel %vm924, %v1792, 0
        %v1808 = vsel %vm924, %v1793, 0
        %v1811 = vsel %vm924, %v1794, 0
        %v1814 = vsel %vm924, %v1795, 0
        %v1817 = vsel %vm924, %v1796, 0
        %v1820 = vsel %vm924, %v1797, 0
        %v1823 = vsel %vm924, %v1798, 0
        %v1826 = vsel %vm1051, %v1800, 0
        %1828 = vmatprep.subr.bf16.mxu0 0
        %1829 = vmatpush1.bf16.msra.mxu0 %v1826
        %1830 = vmatprep.subr.bf16.mxu0 0
        %1831 = vmatpush1.bf16.msra.mxu0 0
        %1832 = vmatprep.subr.bf16.mxu0 0
        %1833 = vmatpush1.bf16.msra.mxu0 0
        %1834 = vmatprep.subr.bf16.mxu0 0
        %1835 = vmatpush1.bf16.msra.mxu0 0
        %1836 = vmatprep.subr.bf16.mxu0 0
        %1837 = vmatpush1.bf16.msra.mxu0 0
        %1838 = vmatprep.subr.bf16.mxu0 0
        %1839 = vmatpush1.bf16.msra.mxu0 0
        %1840 = vmatprep.subr.bf16.mxu0 0
        %1841 = vmatpush1.bf16.msra.mxu0 0
        %1842 = vmatprep.subr.bf16.mxu0 0
        %1843 = vmatpush1.bf16.msra.mxu0 0
        %1844 = vmatprep.subr.bf16.mxu0 0
        %1845 = vmatpush1.bf16.msra.mxu0 0
        %1846 = vmatprep.subr.bf16.mxu0 0
        %1847 = vmatpush1.bf16.msra.mxu0 0
        %1848 = vmatprep.subr.bf16.mxu0 0
        %1849 = vmatpush1.bf16.msra.mxu0 0
        %1850 = vmatprep.subr.bf16.mxu0 0
        %1851 = vmatpush1.bf16.msra.mxu0 0
        %1852 = vmatprep.subr.bf16.mxu0 0
        %1853 = vmatpush1.bf16.msra.mxu0 0
        %1854 = vmatprep.subr.bf16.mxu0 0
        %1855 = vmatpush1.bf16.msra.mxu0 0
        %1856 = vmatprep.subr.bf16.mxu0 0
        %1857 = vmatpush1.bf16.msra.mxu0 0
        %1858 = vmatprep.subr.bf16.mxu0 0
        %1859 = vmatpush1.bf16.msra.mxu0 0
        %1860 = vmatprep.mubr.bf16.mxu0 0
        %1861 = vmatmul.mubr.bf16.gmra.mrb[0].mxu0 %v1802
        %v1862 = vpop.f32.mrb[0].mxu0
        %v1863 = vadd.f32 0.0, %v1862
        %v1864 = vpop.f32.mrb[0].mxu0
        %v1865 = vpop.f32.mrb[0].mxu0
        %v1866 = vadd.f32 0.0, %v1865
        %v1867 = vpop.f32.mrb[0].mxu0
        %1868 = vmatprep.mubr.bf16.mxu0 0
        %1869 = vmatmul.mubr.bf16.gmra.mrb[0].mxu0 %v1805
        %v1870 = vpop.f32.mrb[0].mxu0
        %v1871 = vadd.f32 0.0, %v1870
        %v1872 = vpop.f32.mrb[0].mxu0
        %v1873 = vpop.f32.mrb[0].mxu0
        %v1874 = vadd.f32 0.0, %v1873
        %v1875 = vpop.f32.mrb[0].mxu0
        %1876 = vmatprep.mubr.bf16.mxu0 0
        %1877 = vmatmul.mubr.bf16.gmra.mrb[0].mxu0 %v1808
        %v1878 = vpop.f32.mrb[0].mxu0
        %v1879 = vadd.f32 0.0, %v1878
        %v1880 = vpop.f32.mrb[0].mxu0
        %v1881 = vpop.f32.mrb[0].mxu0
        %v1882 = vadd.f32 0.0, %v1881
        %v1883 = vpop.f32.mrb[0].mxu0
        %1884 = vmatprep.mubr.bf16.mxu0 0
        %1885 = vmatmul.mubr.bf16.gmra.mrb[0].mxu0 %v1811
        %v1886 = vpop.f32.mrb[0].mxu0
        %v1887 = vadd.f32 0.0, %v1886
        %v1888 = vpop.f32.mrb[0].mxu0
        %v1889 = vpop.f32.mrb[0].mxu0
        %v1890 = vadd.f32 0.0, %v1889
        %v1891 = vpop.f32.mrb[0].mxu0
        %1892 = vmatprep.mubr.bf16.mxu0 0
        %1893 = vmatmul.mubr.bf16.gmra.mrb[0].mxu0 %v1814
        %v1894 = vpop.f32.mrb[0].mxu0
        %v1895 = vadd.f32 0.0, %v1894
        %v1896 = vpop.f32.mrb[0].mxu0
        %v1897 = vpop.f32.mrb[0].mxu0
        %v1898 = vadd.f32 0.0, %v1897
        %v1899 = vpop.f32.mrb[0].mxu0
        %1900 = vmatprep.mubr.bf16.mxu0 0
        %1901 = vmatmul.mubr.bf16.gmra.mrb[0].mxu0 %v1817
        %v1902 = vpop.f32.mrb[0].mxu0
        %v1903 = vadd.f32 0.0, %v1902
        %v1904 = vpop.f32.mrb[0].mxu0
        %v1905 = vpop.f32.mrb[0].mxu0
        %v1906 = vadd.f32 0.0, %v1905
        %v1907 = vpop.f32.mrb[0].mxu0
        %1908 = vmatprep.mubr.bf16.mxu0 0
        %1909 = vmatmul.mubr.bf16.gmra.mrb[0].mxu0 %v1820
        %v1910 = vpop.f32.mrb[0].mxu0
        %v1911 = vadd.f32 0.0, %v1910
        %v1912 = vpop.f32.mrb[0].mxu0
        %v1913 = vpop.f32.mrb[0].mxu0
        %v1914 = vadd.f32 0.0, %v1913
        %v1915 = vpop.f32.mrb[0].mxu0
        %1916 = vmatprep.mubr.bf16.mxu0 0
        %1917 = vmatmul.mubr.bf16.gmra.mrb[0].mxu0 %v1823
        %v1918 = vpop.f32.mrb[0].mxu0
        %v1919 = vadd.f32 0.0, %v1918
        %v1920 = vpop.f32.mrb[0].mxu0
        %v1921 = vpop.f32.mrb[0].mxu0
        %v1922 = vadd.f32 0.0, %v1921
        %v1923 = vpop.f32.mrb[0].mxu0
        %1924 = vdwg.mxu0
        %v1925 = vadd.f32 %v1759, %v1863
        %v1926 = vadd.f32 %v1760, %v1866
        %v1927 = vadd.f32 %v1761, %v1871
        %v1928 = vadd.f32 %v1762, %v1874
        %v1929 = vadd.f32 %v1763, %v1879
        %v1930 = vadd.f32 %v1764, %v1882
        %v1931 = vadd.f32 %v1765, %v1887
        %v1932 = vadd.f32 %v1766, %v1890
        %v1933 = vadd.f32 %v1767, %v1895
        %v1934 = vadd.f32 %v1768, %v1898
        %v1935 = vadd.f32 %v1769, %v1903
        %v1936 = vadd.f32 %v1770, %v1906
        %v1937 = vadd.f32 %v1771, %v1911
        %v1938 = vadd.f32 %v1772, %v1914
        %v1939 = vadd.f32 %v1773, %v1919
        %v1940 = vadd.f32 %v1774, %v1922
        %s1941 = scalar_lea.vmem [#allocation2], 48
        %v1942 = vld [vmem:[%s1941] sm:$0xff]
        %v1943 = vld [vmem:[%s1941 + $0x8] sm:$0xff]
        %v1944 = vld [vmem:[%s1941 + $0x18] sm:$0xff]
        %v1945 = vld [vmem:[%s1941 + $0x20] sm:$0xff]
        %v1946 = vld [vmem:[%s1941 + $0x30] sm:$0xff]
        %v1947 = vld [vmem:[%s1941 + $0x38] sm:$0xff]
        %v1948 = vld [vmem:[%s1941 + $0x48] sm:$0xff]
        %v1949 = vld [vmem:[%s1941 + $0x50] sm:$0xff]
        %v1950 = vld [vmem:[%s1941 + $0x60] sm:$0xff]
        %v1951 = vld [vmem:[%s1941 + $0x68] sm:$0xff]
        %v1952 = vld [vmem:[%s1941 + $0x78] sm:$0xff]
        %v1953 = vld [vmem:[%s1941 + $0x80] sm:$0xff]
        %v1954 = vld [vmem:[%s1941 + $0x90] sm:$0xff]
        %v1955 = vld [vmem:[%s1941 + $0x98] sm:$0xff]
        %v1956 = vld [vmem:[%s1941 + $0xa8] sm:$0xff]
        %v1957 = vld [vmem:[%s1941 + $0xb0] sm:$0xff]
        %v1958 = vpack.c.bf16 %v1943, %v1942
        %v1959 = vpack.c.bf16 %v1945, %v1944
        %v1960 = vpack.c.bf16 %v1947, %v1946
        %v1961 = vpack.c.bf16 %v1949, %v1948
        %v1962 = vpack.c.bf16 %v1951, %v1950
        %v1963 = vpack.c.bf16 %v1953, %v1952
        %v1964 = vpack.c.bf16 %v1955, %v1954
        %v1965 = vpack.c.bf16 %v1957, %v1956
        %s1966 = scalar_lea.vmem %s4, 24
        %v1967 = vld [vmem:[%s1966] sm:$0xf]
        %v1969 = vsel %vm924, %v1958, 0
        %v1972 = vsel %vm924, %v1959, 0
        %v1975 = vsel %vm924, %v1960, 0
        %v1978 = vsel %vm924, %v1961, 0
        %v1981 = vsel %vm924, %v1962, 0
        %v1984 = vsel %vm924, %v1963, 0
        %v1987 = vsel %vm924, %v1964, 0
        %v1990 = vsel %vm924, %v1965, 0
        %v1993 = vsel %vm1051, %v1967, 0
        %1995 = vmatprep.subr.bf16.mxu0 0
        %1996 = vmatpush1.bf16.msra.mxu0 %v1993
        %1997 = vmatprep.subr.bf16.mxu0 0
        %1998 = vmatpush1.bf16.msra.mxu0 0
        %1999 = vmatprep.subr.bf16.mxu0 0
        %2000 = vmatpush1.bf16.msra.mxu0 0
        %2001 = vmatprep.subr.bf16.mxu0 0
        %2002 = vmatpush1.bf16.msra.mxu0 0
        %2003 = vmatprep.subr.bf16.mxu0 0
        %2004 = vmatpush1.bf16.msra.mxu0 0
        %2005 = vmatprep.subr.bf16.mxu0 0
        %2006 = vmatpush1.bf16.msra.mxu0 0
        %2007 = vmatprep.subr.bf16.mxu0 0
        %2008 = vmatpush1.bf16.msra.mxu0 0
        %2009 = vmatprep.subr.bf16.mxu0 0
        %2010 = vmatpush1.bf16.msra.mxu0 0
        %2011 = vmatprep.subr.bf16.mxu0 0
        %2012 = vmatpush1.bf16.msra.mxu0 0
        %2013 = vmatprep.subr.bf16.mxu0 0
        %2014 = vmatpush1.bf16.msra.mxu0 0
        %2015 = vmatprep.subr.bf16.mxu0 0
        %2016 = vmatpush1.bf16.msra.mxu0 0
        %2017 = vmatprep.subr.bf16.mxu0 0
        %2018 = vmatpush1.bf16.msra.mxu0 0
        %2019 = vmatprep.subr.bf16.mxu0 0
        %2020 = vmatpush1.bf16.msra.mxu0 0
        %2021 = vmatprep.subr.bf16.mxu0 0
        %2022 = vmatpush1.bf16.msra.mxu0 0
        %2023 = vmatprep.subr.bf16.mxu0 0
        %2024 = vmatpush1.bf16.msra.mxu0 0
        %2025 = vmatprep.subr.bf16.mxu0 0
        %2026 = vmatpush1.bf16.msra.mxu0 0
        %2027 = vmatprep.mubr.bf16.mxu0 0
        %2028 = vmatmul.mubr.bf16.gmra.mrb[0].mxu0 %v1969
        %v2029 = vpop.f32.mrb[0].mxu0
        %v2030 = vadd.f32 0.0, %v2029
        %v2031 = vpop.f32.mrb[0].mxu0
        %v2032 = vpop.f32.mrb[0].mxu0
        %v2033 = vadd.f32 0.0, %v2032
        %v2034 = vpop.f32.mrb[0].mxu0
        %2035 = vmatprep.mubr.bf16.mxu0 0
        %2036 = vmatmul.mubr.bf16.gmra.mrb[0].mxu0 %v1972
        %v2037 = vpop.f32.mrb[0].mxu0
        %v2038 = vadd.f32 0.0, %v2037
        %v2039 = vpop.f32.mrb[0].mxu0
        %v2040 = vpop.f32.mrb[0].mxu0
        %v2041 = vadd.f32 0.0, %v2040
        %v2042 = vpop.f32.mrb[0].mxu0
        %2043 = vmatprep.mubr.bf16.mxu0 0
        %2044 = vmatmul.mubr.bf16.gmra.mrb[0].mxu0 %v1975
        %v2045 = vpop.f32.mrb[0].mxu0
        %v2046 = vadd.f32 0.0, %v2045
        %v2047 = vpop.f32.mrb[0].mxu0
        %v2048 = vpop.f32.mrb[0].mxu0
        %v2049 = vadd.f32 0.0, %v2048
        %v2050 = vpop.f32.mrb[0].mxu0
        %2051 = vmatprep.mubr.bf16.mxu0 0
        %2052 = vmatmul.mubr.bf16.gmra.mrb[0].mxu0 %v1978
        %v2053 = vpop.f32.mrb[0].mxu0
        %v2054 = vadd.f32 0.0, %v2053
        %v2055 = vpop.f32.mrb[0].mxu0
        %v2056 = vpop.f32.mrb[0].mxu0
        %v2057 = vadd.f32 0.0, %v2056
        %v2058 = vpop.f32.mrb[0].mxu0
        %2059 = vmatprep.mubr.bf16.mxu0 0
        %2060 = vmatmul.mubr.bf16.gmra.mrb[0].mxu0 %v1981
        %v2061 = vpop.f32.mrb[0].mxu0
        %v2062 = vadd.f32 0.0, %v2061
        %v2063 = vpop.f32.mrb[0].mxu0
        %v2064 = vpop.f32.mrb[0].mxu0
        %v2065 = vadd.f32 0.0, %v2064
        %v2066 = vpop.f32.mrb[0].mxu0
        %2067 = vmatprep.mubr.bf16.mxu0 0
        %2068 = vmatmul.mubr.bf16.gmra.mrb[0].mxu0 %v1984
        %v2069 = vpop.f32.mrb[0].mxu0
        %v2070 = vadd.f32 0.0, %v2069
        %v2071 = vpop.f32.mrb[0].mxu0
        %v2072 = vpop.f32.mrb[0].mxu0
        %v2073 = vadd.f32 0.0, %v2072
        %v2074 = vpop.f32.mrb[0].mxu0
        %2075 = vmatprep.mubr.bf16.mxu0 0
        %2076 = vmatmul.mubr.bf16.gmra.mrb[0].mxu0 %v1987
        %v2077 = vpop.f32.mrb[0].mxu0
        %v2078 = vadd.f32 0.0, %v2077
        %v2079 = vpop.f32.mrb[0].mxu0
        %v2080 = vpop.f32.mrb[0].mxu0
        %v2081 = vadd.f32 0.0, %v2080
        %v2082 = vpop.f32.mrb[0].mxu0
        %2083 = vmatprep.mubr.bf16.mxu0 0
        %2084 = vmatmul.mubr.bf16.gmra.mrb[0].mxu0 %v1990
        %v2085 = vpop.f32.mrb[0].mxu0
        %v2086 = vadd.f32 0.0, %v2085
        %v2087 = vpop.f32.mrb[0].mxu0
        %v2088 = vpop.f32.mrb[0].mxu0
        %v2089 = vadd.f32 0.0, %v2088
        %v2090 = vpop.f32.mrb[0].mxu0
        %2091 = vdwg.mxu0
        %v2092 = vadd.f32 %v1925, %v2030
        %v2093 = vadd.f32 %v1926, %v2033
        %v2094 = vadd.f32 %v1927, %v2038
        %v2095 = vadd.f32 %v1928, %v2041
        %v2096 = vadd.f32 %v1929, %v2046
        %v2097 = vadd.f32 %v1930, %v2049
        %v2098 = vadd.f32 %v1931, %v2054
        %v2099 = vadd.f32 %v1932, %v2057
        %v2100 = vadd.f32 %v1933, %v2062
        %v2101 = vadd.f32 %v1934, %v2065
        %v2102 = vadd.f32 %v1935, %v2070
        %v2103 = vadd.f32 %v1936, %v2073
        %v2104 = vadd.f32 %v1937, %v2078
        %v2105 = vadd.f32 %v1938, %v2081
        %v2106 = vadd.f32 %v1939, %v2086
        %v2107 = vadd.f32 %v1940, %v2089
        %v2108 = vld [vmem:[%s1941 + $0x1] sm:$0xff]
        %v2109 = vld [vmem:[%s1941 + $0x9] sm:$0xff]
        %v2110 = vld [vmem:[%s1941 + $0x19] sm:$0xff]
        %v2111 = vld [vmem:[%s1941 + $0x21] sm:$0xff]
        %v2112 = vld [vmem:[%s1941 + $0x31] sm:$0xff]
        %v2113 = vld [vmem:[%s1941 + $0x39] sm:$0xff]
        %v2114 = vld [vmem:[%s1941 + $0x49] sm:$0xff]
        %v2115 = vld [vmem:[%s1941 + $0x51] sm:$0xff]
        %v2116 = vld [vmem:[%s1941 + $0x61] sm:$0xff]
        %v2117 = vld [vmem:[%s1941 + $0x69] sm:$0xff]
        %v2118 = vld [vmem:[%s1941 + $0x79] sm:$0xff]
        %v2119 = vld [vmem:[%s1941 + $0x81] sm:$0xff]
        %v2120 = vld [vmem:[%s1941 + $0x91] sm:$0xff]
        %v2121 = vld [vmem:[%s1941 + $0x99] sm:$0xff]
        %v2122 = vld [vmem:[%s1941 + $0xa9] sm:$0xff]
        %v2123 = vld [vmem:[%s1941 + $0xb1] sm:$0xff]
        %v2124 = vpack.c.bf16 %v2109, %v2108
        %v2125 = vpack.c.bf16 %v2111, %v2110
        %v2126 = vpack.c.bf16 %v2113, %v2112
        %v2127 = vpack.c.bf16 %v2115, %v2114
        %v2128 = vpack.c.bf16 %v2117, %v2116
        %v2129 = vpack.c.bf16 %v2119, %v2118
        %v2130 = vpack.c.bf16 %v2121, %v2120
        %v2131 = vpack.c.bf16 %v2123, %v2122
        %s2132 = scalar_lea.vmem %s4, 28
        %v2133 = vld [vmem:[%s2132] sm:$0xf]
        %v2135 = vsel %vm924, %v2124, 0
        %v2138 = vsel %vm924, %v2125, 0
        %v2141 = vsel %vm924, %v2126, 0
        %v2144 = vsel %vm924, %v2127, 0
        %v2147 = vsel %vm924, %v2128, 0
        %v2150 = vsel %vm924, %v2129, 0
        %v2153 = vsel %vm924, %v2130, 0
        %v2156 = vsel %vm924, %v2131, 0
        %v2159 = vsel %vm1051, %v2133, 0
        %2161 = vmatprep.subr.bf16.mxu0 0
        %2162 = vmatpush1.bf16.msra.mxu0 %v2159
        %2163 = vmatprep.subr.bf16.mxu0 0
        %2164 = vmatpush1.bf16.msra.mxu0 0
        %2165 = vmatprep.subr.bf16.mxu0 0
        %2166 = vmatpush1.bf16.msra.mxu0 0
        %2167 = vmatprep.subr.bf16.mxu0 0
        %2168 = vmatpush1.bf16.msra.mxu0 0
        %2169 = vmatprep.subr.bf16.mxu0 0
        %2170 = vmatpush1.bf16.msra.mxu0 0
        %2171 = vmatprep.subr.bf16.mxu0 0
        %2172 = vmatpush1.bf16.msra.mxu0 0
        %2173 = vmatprep.subr.bf16.mxu0 0
        %2174 = vmatpush1.bf16.msra.mxu0 0
        %2175 = vmatprep.subr.bf16.mxu0 0
        %2176 = vmatpush1.bf16.msra.mxu0 0
        %2177 = vmatprep.subr.bf16.mxu0 0
        %2178 = vmatpush1.bf16.msra.mxu0 0
        %2179 = vmatprep.subr.bf16.mxu0 0
        %2180 = vmatpush1.bf16.msra.mxu0 0
        %2181 = vmatprep.subr.bf16.mxu0 0
        %2182 = vmatpush1.bf16.msra.mxu0 0
        %2183 = vmatprep.subr.bf16.mxu0 0
        %2184 = vmatpush1.bf16.msra.mxu0 0
        %2185 = vmatprep.subr.bf16.mxu0 0
        %2186 = vmatpush1.bf16.msra.mxu0 0
        %2187 = vmatprep.subr.bf16.mxu0 0
        %2188 = vmatpush1.bf16.msra.mxu0 0
        %2189 = vmatprep.subr.bf16.mxu0 0
        %2190 = vmatpush1.bf16.msra.mxu0 0
        %2191 = vmatprep.subr.bf16.mxu0 0
        %2192 = vmatpush1.bf16.msra.mxu0 0
        %2193 = vmatprep.mubr.bf16.mxu0 0
        %2194 = vmatmul.mubr.bf16.gmra.mrb[0].mxu0 %v2135
        %v2195 = vpop.f32.mrb[0].mxu0
        %v2196 = vadd.f32 0.0, %v2195
        %v2197 = vpop.f32.mrb[0].mxu0
        %v2198 = vpop.f32.mrb[0].mxu0
        %v2199 = vadd.f32 0.0, %v2198
        %v2200 = vpop.f32.mrb[0].mxu0
        %2201 = vmatprep.mubr.bf16.mxu0 0
        %2202 = vmatmul.mubr.bf16.gmra.mrb[0].mxu0 %v2138
        %v2203 = vpop.f32.mrb[0].mxu0
        %v2204 = vadd.f32 0.0, %v2203
        %v2205 = vpop.f32.mrb[0].mxu0
        %v2206 = vpop.f32.mrb[0].mxu0
        %v2207 = vadd.f32 0.0, %v2206
        %v2208 = vpop.f32.mrb[0].mxu0
        %2209 = vmatprep.mubr.bf16.mxu0 0
        %2210 = vmatmul.mubr.bf16.gmra.mrb[0].mxu0 %v2141
        %v2211 = vpop.f32.mrb[0].mxu0
        %v2212 = vadd.f32 0.0, %v2211
        %v2213 = vpop.f32.mrb[0].mxu0
        %v2214 = vpop.f32.mrb[0].mxu0
        %v2215 = vadd.f32 0.0, %v2214
        %v2216 = vpop.f32.mrb[0].mxu0
        %2217 = vmatprep.mubr.bf16.mxu0 0
        %2218 = vmatmul.mubr.bf16.gmra.mrb[0].mxu0 %v2144
        %v2219 = vpop.f32.mrb[0].mxu0
        %v2220 = vadd.f32 0.0, %v2219
        %v2221 = vpop.f32.mrb[0].mxu0
        %v2222 = vpop.f32.mrb[0].mxu0
        %v2223 = vadd.f32 0.0, %v2222
        %v2224 = vpop.f32.mrb[0].mxu0
        %2225 = vmatprep.mubr.bf16.mxu0 0
        %2226 = vmatmul.mubr.bf16.gmra.mrb[0].mxu0 %v2147
        %v2227 = vpop.f32.mrb[0].mxu0
        %v2228 = vadd.f32 0.0, %v2227
        %v2229 = vpop.f32.mrb[0].mxu0
        %v2230 = vpop.f32.mrb[0].mxu0
        %v2231 = vadd.f32 0.0, %v2230
        %v2232 = vpop.f32.mrb[0].mxu0
        %2233 = vmatprep.mubr.bf16.mxu0 0
        %2234 = vmatmul.mubr.bf16.gmra.mrb[0].mxu0 %v2150
        %v2235 = vpop.f32.mrb[0].mxu0
        %v2236 = vadd.f32 0.0, %v2235
        %v2237 = vpop.f32.mrb[0].mxu0
        %v2238 = vpop.f32.mrb[0].mxu0
        %v2239 = vadd.f32 0.0, %v2238
        %v2240 = vpop.f32.mrb[0].mxu0
        %2241 = vmatprep.mubr.bf16.mxu0 0
        %2242 = vmatmul.mubr.bf16.gmra.mrb[0].mxu0 %v2153
        %v2243 = vpop.f32.mrb[0].mxu0
        %v2244 = vadd.f32 0.0, %v2243
        %v2245 = vpop.f32.mrb[0].mxu0
        %v2246 = vpop.f32.mrb[0].mxu0
        %v2247 = vadd.f32 0.0, %v2246
        %v2248 = vpop.f32.mrb[0].mxu0
        %2249 = vmatprep.mubr.bf16.mxu0 0
        %2250 = vmatmul.mubr.bf16.gmra.mrb[0].mxu0 %v2156
        %v2251 = vpop.f32.mrb[0].mxu0
        %v2252 = vadd.f32 0.0, %v2251
        %v2253 = vpop.f32.mrb[0].mxu0
        %v2254 = vpop.f32.mrb[0].mxu0
        %v2255 = vadd.f32 0.0, %v2254
        %v2256 = vpop.f32.mrb[0].mxu0
        %2257 = vdwg.mxu0
        %v2258 = vadd.f32 %v2092, %v2196
        %v2259 = vadd.f32 %v2093, %v2199
        %v2260 = vadd.f32 %v2094, %v2204
        %v2261 = vadd.f32 %v2095, %v2207
        %v2262 = vadd.f32 %v2096, %v2212
        %v2263 = vadd.f32 %v2097, %v2215
        %v2264 = vadd.f32 %v2098, %v2220
        %v2265 = vadd.f32 %v2099, %v2223
        %v2266 = vadd.f32 %v2100, %v2228
        %v2267 = vadd.f32 %v2101, %v2231
        %v2268 = vadd.f32 %v2102, %v2236
        %v2269 = vadd.f32 %v2103, %v2239
        %v2270 = vadd.f32 %v2104, %v2244
        %v2271 = vadd.f32 %v2105, %v2247
        %v2272 = vadd.f32 %v2106, %v2252
        %v2273 = vadd.f32 %v2107, %v2255
        %v2274 = vld [vmem:[%s1941 + $0x2] sm:$0xff]
        %v2275 = vld [vmem:[%s1941 + $0xa] sm:$0xff]
        %v2276 = vld [vmem:[%s1941 + $0x1a] sm:$0xff]
        %v2277 = vld [vmem:[%s1941 + $0x22] sm:$0xff]
        %v2278 = vld [vmem:[%s1941 + $0x32] sm:$0xff]
        %v2279 = vld [vmem:[%s1941 + $0x3a] sm:$0xff]
        %v2280 = vld [vmem:[%s1941 + $0x4a] sm:$0xff]
        %v2281 = vld [vmem:[%s1941 + $0x52] sm:$0xff]
        %v2282 = vld [vmem:[%s1941 + $0x62] sm:$0xff]
        %v2283 = vld [vmem:[%s1941 + $0x6a] sm:$0xff]
        %v2284 = vld [vmem:[%s1941 + $0x7a] sm:$0xff]
        %v2285 = vld [vmem:[%s1941 + $0x82] sm:$0xff]
        %v2286 = vld [vmem:[%s1941 + $0x92] sm:$0xff]
        %v2287 = vld [vmem:[%s1941 + $0x9a] sm:$0xff]
        %v2288 = vld [vmem:[%s1941 + $0xaa] sm:$0xff]
        %v2289 = vld [vmem:[%s1941 + $0xb2] sm:$0xff]
        %v2290 = vpack.c.bf16 %v2275, %v2274
        %v2291 = vpack.c.bf16 %v2277, %v2276
        %v2292 = vpack.c.bf16 %v2279, %v2278
        %v2293 = vpack.c.bf16 %v2281, %v2280
        %v2294 = vpack.c.bf16 %v2283, %v2282
        %v2295 = vpack.c.bf16 %v2285, %v2284
        %v2296 = vpack.c.bf16 %v2287, %v2286
        %v2297 = vpack.c.bf16 %v2289, %v2288
        %s2298 = scalar_lea.vmem %s4, 32
        %v2299 = vld [vmem:[%s2298] sm:$0xf]
        %v2301 = vsel %vm924, %v2290, 0
        %v2304 = vsel %vm924, %v2291, 0
        %v2307 = vsel %vm924, %v2292, 0
        %v2310 = vsel %vm924, %v2293, 0
        %v2313 = vsel %vm924, %v2294, 0
        %v2316 = vsel %vm924, %v2295, 0
        %v2319 = vsel %vm924, %v2296, 0
        %v2322 = vsel %vm924, %v2297, 0
        %v2325 = vsel %vm1051, %v2299, 0
        %2327 = vmatprep.subr.bf16.mxu0 0
        %2328 = vmatpush1.bf16.msra.mxu0 %v2325
        %2329 = vmatprep.subr.bf16.mxu0 0
        %2330 = vmatpush1.bf16.msra.mxu0 0
        %2331 = vmatprep.subr.bf16.mxu0 0
        %2332 = vmatpush1.bf16.msra.mxu0 0
        %2333 = vmatprep.subr.bf16.mxu0 0
        %2334 = vmatpush1.bf16.msra.mxu0 0
        %2335 = vmatprep.subr.bf16.mxu0 0
        %2336 = vmatpush1.bf16.msra.mxu0 0
        %2337 = vmatprep.subr.bf16.mxu0 0
        %2338 = vmatpush1.bf16.msra.mxu0 0
        %2339 = vmatprep.subr.bf16.mxu0 0
        %2340 = vmatpush1.bf16.msra.mxu0 0
        %2341 = vmatprep.subr.bf16.mxu0 0
        %2342 = vmatpush1.bf16.msra.mxu0 0
        %2343 = vmatprep.subr.bf16.mxu0 0
        %2344 = vmatpush1.bf16.msra.mxu0 0
        %2345 = vmatprep.subr.bf16.mxu0 0
        %2346 = vmatpush1.bf16.msra.mxu0 0
        %2347 = vmatprep.subr.bf16.mxu0 0
        %2348 = vmatpush1.bf16.msra.mxu0 0
        %2349 = vmatprep.subr.bf16.mxu0 0
        %2350 = vmatpush1.bf16.msra.mxu0 0
        %2351 = vmatprep.subr.bf16.mxu0 0
        %2352 = vmatpush1.bf16.msra.mxu0 0
        %2353 = vmatprep.subr.bf16.mxu0 0
        %2354 = vmatpush1.bf16.msra.mxu0 0
        %2355 = vmatprep.subr.bf16.mxu0 0
        %2356 = vmatpush1.bf16.msra.mxu0 0
        %2357 = vmatprep.subr.bf16.mxu0 0
        %2358 = vmatpush1.bf16.msra.mxu0 0
        %2359 = vmatprep.mubr.bf16.mxu0 0
        %2360 = vmatmul.mubr.bf16.gmra.mrb[0].mxu0 %v2301
        %v2361 = vpop.f32.mrb[0].mxu0
        %v2362 = vadd.f32 0.0, %v2361
        %v2363 = vpop.f32.mrb[0].mxu0
        %v2364 = vpop.f32.mrb[0].mxu0
        %v2365 = vadd.f32 0.0, %v2364
        %v2366 = vpop.f32.mrb[0].mxu0
        %2367 = vmatprep.mubr.bf16.mxu0 0
        %2368 = vmatmul.mubr.bf16.gmra.mrb[0].mxu0 %v2304
        %v2369 = vpop.f32.mrb[0].mxu0
        %v2370 = vadd.f32 0.0, %v2369
        %v2371 = vpop.f32.mrb[0].mxu0
        %v2372 = vpop.f32.mrb[0].mxu0
        %v2373 = vadd.f32 0.0, %v2372
        %v2374 = vpop.f32.mrb[0].mxu0
        %2375 = vmatprep.mubr.bf16.mxu0 0
        %2376 = vmatmul.mubr.bf16.gmra.mrb[0].mxu0 %v2307
        %v2377 = vpop.f32.mrb[0].mxu0
        %v2378 = vadd.f32 0.0, %v2377
        %v2379 = vpop.f32.mrb[0].mxu0
        %v2380 = vpop.f32.mrb[0].mxu0
        %v2381 = vadd.f32 0.0, %v2380
        %v2382 = vpop.f32.mrb[0].mxu0
        %2383 = vmatprep.mubr.bf16.mxu0 0
        %2384 = vmatmul.mubr.bf16.gmra.mrb[0].mxu0 %v2310
        %v2385 = vpop.f32.mrb[0].mxu0
        %v2386 = vadd.f32 0.0, %v2385
        %v2387 = vpop.f32.mrb[0].mxu0
        %v2388 = vpop.f32.mrb[0].mxu0
        %v2389 = vadd.f32 0.0, %v2388
        %v2390 = vpop.f32.mrb[0].mxu0
        %2391 = vmatprep.mubr.bf16.mxu0 0
        %2392 = vmatmul.mubr.bf16.gmra.mrb[0].mxu0 %v2313
        %v2393 = vpop.f32.mrb[0].mxu0
        %v2394 = vadd.f32 0.0, %v2393
        %v2395 = vpop.f32.mrb[0].mxu0
        %v2396 = vpop.f32.mrb[0].mxu0
        %v2397 = vadd.f32 0.0, %v2396
        %v2398 = vpop.f32.mrb[0].mxu0
        %2399 = vmatprep.mubr.bf16.mxu0 0
        %2400 = vmatmul.mubr.bf16.gmra.mrb[0].mxu0 %v2316
        %v2401 = vpop.f32.mrb[0].mxu0
        %v2402 = vadd.f32 0.0, %v2401
        %v2403 = vpop.f32.mrb[0].mxu0
        %v2404 = vpop.f32.mrb[0].mxu0
        %v2405 = vadd.f32 0.0, %v2404
        %v2406 = vpop.f32.mrb[0].mxu0
        %2407 = vmatprep.mubr.bf16.mxu0 0
        %2408 = vmatmul.mubr.bf16.gmra.mrb[0].mxu0 %v2319
        %v2409 = vpop.f32.mrb[0].mxu0
        %v2410 = vadd.f32 0.0, %v2409
        %v2411 = vpop.f32.mrb[0].mxu0
        %v2412 = vpop.f32.mrb[0].mxu0
        %v2413 = vadd.f32 0.0, %v2412
        %v2414 = vpop.f32.mrb[0].mxu0
        %2415 = vmatprep.mubr.bf16.mxu0 0
        %2416 = vmatmul.mubr.bf16.gmra.mrb[0].mxu0 %v2322
        %v2417 = vpop.f32.mrb[0].mxu0
        %v2418 = vadd.f32 0.0, %v2417
        %v2419 = vpop.f32.mrb[0].mxu0
        %v2420 = vpop.f32.mrb[0].mxu0
        %v2421 = vadd.f32 0.0, %v2420
        %v2422 = vpop.f32.mrb[0].mxu0
        %2423 = vdwg.mxu0
        %v2424 = vadd.f32 %v2258, %v2362
        %v2425 = vadd.f32 %v2259, %v2365
        %v2426 = vadd.f32 %v2260, %v2370
        %v2427 = vadd.f32 %v2261, %v2373
        %v2428 = vadd.f32 %v2262, %v2378
        %v2429 = vadd.f32 %v2263, %v2381
        %v2430 = vadd.f32 %v2264, %v2386
        %v2431 = vadd.f32 %v2265, %v2389
        %v2432 = vadd.f32 %v2266, %v2394
        %v2433 = vadd.f32 %v2267, %v2397
        %v2434 = vadd.f32 %v2268, %v2402
        %v2435 = vadd.f32 %v2269, %v2405
        %v2436 = vadd.f32 %v2270, %v2410
        %v2437 = vadd.f32 %v2271, %v2413
        %v2438 = vadd.f32 %v2272, %v2418
        %v2439 = vadd.f32 %v2273, %v2421
        %v2440 = vld [vmem:[%s8] sm:$0x1]
        %v2442 = vlaneseq
        %v2443 = vshrl.u32 %v2442, 7
        %v2444 = vsub.s32 0, %v2443
        %v2445 = vrot.slane %v2440, %v2444
        %v2447 = vmul.f32 %v2424, %v2445
        %v2448 = vmul.f32 %v2425, %v2445
        %v2449 = vmul.f32 %v2426, %v2445
        %v2450 = vmul.f32 %v2427, %v2445
        %v2451 = vmul.f32 %v2428, %v2445
        %v2452 = vmul.f32 %v2429, %v2445
        %v2453 = vmul.f32 %v2430, %v2445
        %v2454 = vmul.f32 %v2431, %v2445
        %v2455 = vmul.f32 %v2432, %v2445
        %v2456 = vmul.f32 %v2433, %v2445
        %v2457 = vmul.f32 %v2434, %v2445
        %v2458 = vmul.f32 %v2435, %v2445
        %v2459 = vmul.f32 %v2436, %v2445
        %v2460 = vmul.f32 %v2437, %v2445
        %v2461 = vmul.f32 %v2438, %v2445
        %v2462 = vmul.f32 %v2439, %v2445
        %v2463 = vld [vmem:[%s9] sm:$0x1]
        %v2465 = vlaneseq
        %v2466 = vshrl.u32 %v2465, 7
        %v2467 = vsub.s32 0, %v2466
        %v2468 = vrot.slane %v2463, %v2467
        %v2470 = vadd.f32 %v2447, %v2468
        %v2471 = vadd.f32 %v2448, %v2468
        %v2472 = vadd.f32 %v2449, %v2468
        %v2473 = vadd.f32 %v2450, %v2468
        %v2474 = vadd.f32 %v2451, %v2468
        %v2475 = vadd.f32 %v2452, %v2468
        %v2476 = vadd.f32 %v2453, %v2468
        %v2477 = vadd.f32 %v2454, %v2468
        %v2478 = vadd.f32 %v2455, %v2468
        %v2479 = vadd.f32 %v2456, %v2468
        %v2480 = vadd.f32 %v2457, %v2468
        %v2481 = vadd.f32 %v2458, %v2468
        %v2482 = vadd.f32 %v2459, %v2468
        %v2483 = vadd.f32 %v2460, %v2468
        %v2484 = vadd.f32 %v2461, %v2468
        %v2485 = vadd.f32 %v2462, %v2468
        %v2486 = vmax.f32 %v2470, 0.0
        %v2487 = vmax.f32 %v2471, 0.0
        %v2488 = vmax.f32 %v2472, 0.0
        %v2489 = vmax.f32 %v2473, 0.0
        %v2490 = vmax.f32 %v2474, 0.0
        %v2491 = vmax.f32 %v2475, 0.0
        %v2492 = vmax.f32 %v2476, 0.0
        %v2493 = vmax.f32 %v2477, 0.0
        %v2494 = vmax.f32 %v2478, 0.0
        %v2495 = vmax.f32 %v2479, 0.0
        %v2496 = vmax.f32 %v2480, 0.0
        %v2497 = vmax.f32 %v2481, 0.0
        %v2498 = vmax.f32 %v2482, 0.0
        %v2499 = vmax.f32 %v2483, 0.0
        %v2500 = vmax.f32 %v2484, 0.0
        %v2501 = vmax.f32 %v2485, 0.0
        %v2502 = vpack.c.bf16 %v2487, %v2486
        %v2503 = vpack.c.bf16 %v2489, %v2488
        %v2504 = vpack.c.bf16 %v2491, %v2490
        %v2505 = vpack.c.bf16 %v2493, %v2492
        %v2506 = vpack.c.bf16 %v2495, %v2494
        %v2507 = vpack.c.bf16 %v2497, %v2496
        %v2508 = vpack.c.bf16 %v2499, %v2498
        %v2509 = vpack.c.bf16 %v2501, %v2500
        %v2510 = vld [vmem:[%s5] sm:$0xf]
        %v2512 = vsel %vm924, %v2502, 0
        %v2515 = vsel %vm924, %v2503, 0
        %v2518 = vsel %vm924, %v2504, 0
        %v2521 = vsel %vm924, %v2505, 0
        %v2524 = vsel %vm924, %v2506, 0
        %v2527 = vsel %vm924, %v2507, 0
        %v2530 = vsel %vm924, %v2508, 0
        %v2533 = vsel %vm924, %v2509, 0
        %v2536 = vsel %vm1051, %v2510, 0
        %2538 = vmatprep.subr.bf16.mxu0 0
        %2539 = vmatpush1.bf16.msra.mxu0 %v2536
        %2540 = vmatprep.subr.bf16.mxu0 0
        %2541 = vmatpush1.bf16.msra.mxu0 0
        %2542 = vmatprep.subr.bf16.mxu0 0
        %2543 = vmatpush1.bf16.msra.mxu0 0
        %2544 = vmatprep.subr.bf16.mxu0 0
        %2545 = vmatpush1.bf16.msra.mxu0 0
        %2546 = vmatprep.subr.bf16.mxu0 0
        %2547 = vmatpush1.bf16.msra.mxu0 0
        %2548 = vmatprep.subr.bf16.mxu0 0
        %2549 = vmatpush1.bf16.msra.mxu0 0
        %2550 = vmatprep.subr.bf16.mxu0 0
        %2551 = vmatpush1.bf16.msra.mxu0 0
        %2552 = vmatprep.subr.bf16.mxu0 0
        %2553 = vmatpush1.bf16.msra.mxu0 0
        %2554 = vmatprep.subr.bf16.mxu0 0
        %2555 = vmatpush1.bf16.msra.mxu0 0
        %2556 = vmatprep.subr.bf16.mxu0 0
        %2557 = vmatpush1.bf16.msra.mxu0 0
        %2558 = vmatprep.subr.bf16.mxu0 0
        %2559 = vmatpush1.bf16.msra.mxu0 0
        %2560 = vmatprep.subr.bf16.mxu0 0
        %2561 = vmatpush1.bf16.msra.mxu0 0
        %2562 = vmatprep.subr.bf16.mxu0 0
        %2563 = vmatpush1.bf16.msra.mxu0 0
        %2564 = vmatprep.subr.bf16.mxu0 0
        %2565 = vmatpush1.bf16.msra.mxu0 0
        %2566 = vmatprep.subr.bf16.mxu0 0
        %2567 = vmatpush1.bf16.msra.mxu0 0
        %2568 = vmatprep.subr.bf16.mxu0 0
        %2569 = vmatpush1.bf16.msra.mxu0 0
        %2570 = vmatprep.mubr.bf16.mxu0 0
        %2571 = vmatmul.mubr.bf16.gmra.mrb[0].mxu0 %v2512
        %v2572 = vpop.f32.mrb[0].mxu0
        %v2573 = vadd.f32 0.0, %v2572
        %v2574 = vpop.f32.mrb[0].mxu0
        %v2575 = vpop.f32.mrb[0].mxu0
        %v2576 = vadd.f32 0.0, %v2575
        %v2577 = vpop.f32.mrb[0].mxu0
        %2578 = vmatprep.mubr.bf16.mxu0 0
        %2579 = vmatmul.mubr.bf16.gmra.mrb[0].mxu0 %v2515
        %v2580 = vpop.f32.mrb[0].mxu0
        %v2581 = vadd.f32 0.0, %v2580
        %v2582 = vpop.f32.mrb[0].mxu0
        %v2583 = vpop.f32.mrb[0].mxu0
        %v2584 = vadd.f32 0.0, %v2583
        %v2585 = vpop.f32.mrb[0].mxu0
        %2586 = vmatprep.mubr.bf16.mxu0 0
        %2587 = vmatmul.mubr.bf16.gmra.mrb[0].mxu0 %v2518
        %v2588 = vpop.f32.mrb[0].mxu0
        %v2589 = vadd.f32 0.0, %v2588
        %v2590 = vpop.f32.mrb[0].mxu0
        %v2591 = vpop.f32.mrb[0].mxu0
        %v2592 = vadd.f32 0.0, %v2591
        %v2593 = vpop.f32.mrb[0].mxu0
        %2594 = vmatprep.mubr.bf16.mxu0 0
        %2595 = vmatmul.mubr.bf16.gmra.mrb[0].mxu0 %v2521
        %v2596 = vpop.f32.mrb[0].mxu0
        %v2597 = vadd.f32 0.0, %v2596
        %v2598 = vpop.f32.mrb[0].mxu0
        %v2599 = vpop.f32.mrb[0].mxu0
        %v2600 = vadd.f32 0.0, %v2599
        %v2601 = vpop.f32.mrb[0].mxu0
        %2602 = vmatprep.mubr.bf16.mxu0 0
        %2603 = vmatmul.mubr.bf16.gmra.mrb[0].mxu0 %v2524
        %v2604 = vpop.f32.mrb[0].mxu0
        %v2605 = vadd.f32 0.0, %v2604
        %v2606 = vpop.f32.mrb[0].mxu0
        %v2607 = vpop.f32.mrb[0].mxu0
        %v2608 = vadd.f32 0.0, %v2607
        %v2609 = vpop.f32.mrb[0].mxu0
        %2610 = vmatprep.mubr.bf16.mxu0 0
        %2611 = vmatmul.mubr.bf16.gmra.mrb[0].mxu0 %v2527
        %v2612 = vpop.f32.mrb[0].mxu0
        %v2613 = vadd.f32 0.0, %v2612
        %v2614 = vpop.f32.mrb[0].mxu0
        %v2615 = vpop.f32.mrb[0].mxu0
        %v2616 = vadd.f32 0.0, %v2615
        %v2617 = vpop.f32.mrb[0].mxu0
        %2618 = vmatprep.mubr.bf16.mxu0 0
        %2619 = vmatmul.mubr.bf16.gmra.mrb[0].mxu0 %v2530
        %v2620 = vpop.f32.mrb[0].mxu0
        %v2621 = vadd.f32 0.0, %v2620
        %v2622 = vpop.f32.mrb[0].mxu0
        %v2623 = vpop.f32.mrb[0].mxu0
        %v2624 = vadd.f32 0.0, %v2623
        %v2625 = vpop.f32.mrb[0].mxu0
        %2626 = vmatprep.mubr.bf16.mxu0 0
        %2627 = vmatmul.mubr.bf16.gmra.mrb[0].mxu0 %v2533
        %v2628 = vpop.f32.mrb[0].mxu0
        %v2629 = vadd.f32 0.0, %v2628
        %v2630 = vpop.f32.mrb[0].mxu0
        %v2631 = vpop.f32.mrb[0].mxu0
        %v2632 = vadd.f32 0.0, %v2631
        %v2633 = vpop.f32.mrb[0].mxu0
        %2634 = vdwg.mxu0
        %v2635 = vld [vmem:[%s10] sm:$0x1]
        %v2637 = vlaneseq
        %v2638 = vshrl.u32 %v2637, 7
        %v2639 = vsub.s32 0, %v2638
        %v2640 = vrot.slane %v2635, %v2639
        %v2642 = vmul.f32 %v2573, %v2640
        %v2643 = vmul.f32 %v2576, %v2640
        %v2644 = vmul.f32 %v2581, %v2640
        %v2645 = vmul.f32 %v2584, %v2640
        %v2646 = vmul.f32 %v2589, %v2640
        %v2647 = vmul.f32 %v2592, %v2640
        %v2648 = vmul.f32 %v2597, %v2640
        %v2649 = vmul.f32 %v2600, %v2640
        %v2650 = vmul.f32 %v2605, %v2640
        %v2651 = vmul.f32 %v2608, %v2640
        %v2652 = vmul.f32 %v2613, %v2640
        %v2653 = vmul.f32 %v2616, %v2640
        %v2654 = vmul.f32 %v2621, %v2640
        %v2655 = vmul.f32 %v2624, %v2640
        %v2656 = vmul.f32 %v2629, %v2640
        %v2657 = vmul.f32 %v2632, %v2640
        %v2658 = vld [vmem:[%s11] sm:$0x1]
        %v2660 = vlaneseq
        %v2661 = vshrl.u32 %v2660, 7
        %v2662 = vsub.s32 0, %v2661
        %v2663 = vrot.slane %v2658, %v2662
        %v2665 = vadd.f32 %v2642, %v2663
        %v2666 = vadd.f32 %v2643, %v2663
        %v2667 = vadd.f32 %v2644, %v2663
        %v2668 = vadd.f32 %v2645, %v2663
        %v2669 = vadd.f32 %v2646, %v2663
        %v2670 = vadd.f32 %v2647, %v2663
        %v2671 = vadd.f32 %v2648, %v2663
        %v2672 = vadd.f32 %v2649, %v2663
        %v2673 = vadd.f32 %v2650, %v2663
        %v2674 = vadd.f32 %v2651, %v2663
        %v2675 = vadd.f32 %v2652, %v2663
        %v2676 = vadd.f32 %v2653, %v2663
        %v2677 = vadd.f32 %v2654, %v2663
        %v2678 = vadd.f32 %v2655, %v2663
        %v2679 = vadd.f32 %v2656, %v2663
        %v2680 = vadd.f32 %v2657, %v2663
        %v2681 = vadd.f32 %v2665, %v571
        %v2682 = vadd.f32 %v2666, %v572
        %v2683 = vadd.f32 %v2667, %v573
        %v2684 = vadd.f32 %v2668, %v574
        %v2685 = vadd.f32 %v2669, %v575
        %v2686 = vadd.f32 %v2670, %v576
        %v2687 = vadd.f32 %v2671, %v577
        %v2688 = vadd.f32 %v2672, %v578
        %v2689 = vadd.f32 %v2673, %v579
        %v2690 = vadd.f32 %v2674, %v580
        %v2691 = vadd.f32 %v2675, %v581
        %v2692 = vadd.f32 %v2676, %v582
        %v2693 = vadd.f32 %v2677, %v583
        %v2694 = vadd.f32 %v2678, %v584
        %v2695 = vadd.f32 %v2679, %v585
        %v2696 = vadd.f32 %v2680, %v586
        %v2697 = vmax.f32 %v2681, 0.0
        %v2698 = vmax.f32 %v2682, 0.0
        %v2699 = vmax.f32 %v2683, 0.0
        %v2700 = vmax.f32 %v2684, 0.0
        %v2701 = vmax.f32 %v2685, 0.0
        %v2702 = vmax.f32 %v2686, 0.0
        %v2703 = vmax.f32 %v2687, 0.0
        %v2704 = vmax.f32 %v2688, 0.0
        %v2705 = vmax.f32 %v2689, 0.0
        %v2706 = vmax.f32 %v2690, 0.0
        %v2707 = vmax.f32 %v2691, 0.0
        %v2708 = vmax.f32 %v2692, 0.0
        %v2709 = vmax.f32 %v2693, 0.0
        %v2710 = vmax.f32 %v2694, 0.0
        %v2711 = vmax.f32 %v2695, 0.0
        %v2712 = vmax.f32 %v2696, 0.0
        %2713 = vst.msk [vmem:[%s559] sm:$0xff] %vm617, %v2697
        %2714 = vst.msk [vmem:[%s559 + $0x8] sm:$0xff] %vm617, %v2698
        %2715 = vst.msk [vmem:[%s559 + $0x10] sm:$0xff] %vm617, %v2699
        %2716 = vst.msk [vmem:[%s559 + $0x18] sm:$0xff] %vm617, %v2700
        %2717 = vst.msk [vmem:[%s559 + $0x20] sm:$0xff] %vm617, %v2701
        %2718 = vst.msk [vmem:[%s559 + $0x28] sm:$0xff] %vm617, %v2702
        %2719 = vst.msk [vmem:[%s559 + $0x30] sm:$0xff] %vm617, %v2703
        %2720 = vst.msk [vmem:[%s559 + $0x38] sm:$0xff] %vm617, %v2704
        %2721 = vst.msk [vmem:[%s559 + $0x40] sm:$0xff] %vm617, %v2705
        %2722 = vst.msk [vmem:[%s559 + $0x48] sm:$0xff] %vm617, %v2706
        %2723 = vst.msk [vmem:[%s559 + $0x50] sm:$0xff] %vm617, %v2707
        %2724 = vst.msk [vmem:[%s559 + $0x58] sm:$0xff] %vm617, %v2708
        %2725 = vst.msk [vmem:[%s559 + $0x60] sm:$0xff] %vm617, %v2709
        %2726 = vst.msk [vmem:[%s559 + $0x68] sm:$0xff] %vm617, %v2710
        %2727 = vst.msk [vmem:[%s559 + $0x70] sm:$0xff] %vm617, %v2711
        %2728 = vst.msk [vmem:[%s559 + $0x78] sm:$0xff] %vm617, %v2712
        %s2729 = sand.u32 %s343, 1
        %s2730 = scalar_lea.sflag [#allocation5], %s2729
        %s2731 = sand.u32 %s343, 1
        %s2732 = smul.addr %s2731, 128
        %s2733 = scalar_lea.vmem [#allocation9], %s2732
        // Predicated region
        $region81: #{tpu_custom_call.1} parent=67 // pred_check
          %p2734 = pneg %p353
        $region82: #{tpu_custom_call.1} parent=67 // pred_check_branch
          %2736 = sbr.rel (%p2734) target = $region84
        $region83: #{tpu_custom_call.1} parent=67 // pred_region
          %s2737 = smul.u32 8, %s37
          %s2739 = ssub.s32 2048, 2048
          %2740 = vsyncadd %s2730, %s2739
          %s2741 = smul.addr %s2737, 2
          %s2742 = smul.addr %s36, 32
          %s2743 = sadd.s32 %s2741, %s2742
          %s2744 = smul.addr %s2743, 128
          %s2745 = scalar_lea.hbm %s12, %s2744
          %s2746 = sshll.u32 %s2733, 4
          %s2747 = int_to_ptr.vmem [resolvable:$true] %s2746
          %2752 = dma.vmem_to_hbm [thread:$0]  %s2747, 2048, %s2745, %s2730, 128, 128, 8
        $region84: #{tpu_custom_call.1} parent=67 // pred_fallthru
          _
      $region68: #{tpu_custom_call.1} parent=5 // pred_fallthru
        _
      %p2753 = scmp.le.s32.totalorder 2, %s27
      // Predicated region
      $region85: #{tpu_custom_call.1} parent=5 // pred_check
        %p2754 = pneg %p2753
      $region86: #{tpu_custom_call.1} parent=5 // pred_check_branch
        %2756 = sbr.rel (%p2754) target = $region88
      $region87: #{tpu_custom_call.1} parent=5 // pred_region
        %s2757 = ssub.s32 %s27, 2
        // Predicated region
        $region89: #{tpu_custom_call.1} parent=87 // pred_check
          %p2758 = pneg %p359
        $region90: #{tpu_custom_call.1} parent=87 // pred_check_branch
          %2760 = sbr.rel (%p2758) target = $region92
        $region91: #{tpu_custom_call.1} parent=87 // pred_region
          %s2761 = sand.u32 %s344, 1
          %s2762 = scalar_lea.sflag [#allocation5], %s2761
          %s2763 = sand.u32 %s344, 1
          %s2764 = smul.addr %s2763, 128
          %s2765 = scalar_lea.vmem [#allocation9], %s2764
          %2766 = dma.done %s2762, 2048
        $region92: #{tpu_custom_call.1} parent=87 // pred_fallthru
          _
      $region88: #{tpu_custom_call.1} parent=5 // pred_fallthru
        _
    $region6: #{tpu_custom_call.1} parent=1 // loop_footer
      %s31 = sadd.s32 1, %s27
    $region7: #{tpu_custom_call.1} parent=1 // loop_footer_branch
      %26 = sbr.rel target = $region3
    $region8: #{tpu_custom_call.1} parent=1 // loop_exit
      _
    %2767 = vsyncpa [#allocation4], 1
    %s2768 = scalar_lea.sflag [#allocation4], 1
    %2769 = vsyncpa %s2768, 1
    %2770 = vsyncpa [#allocation7], 1
    %s2771 = scalar_lea.sflag [#allocation7], 1
    %2772 = vsyncpa %s2771, 1
    %2773 = vsyncpa [#allocation5], 1
    %s2774 = scalar_lea.sflag [#allocation5], 1
    %2775 = vsyncpa %s2774, 1

</llo_original>
